<compile_context>
chip_gen: v6e
topology: v6e:2x2x1
jax: 0.10.0
libtpu: 0.0.40
codegen_flags: <defaults>
</compile_context>

<pallas_src>
import functools
import math

import jax
import jax.numpy as jnp
import numpy as np
from jax.experimental import pallas as pl
from jax.experimental.pallas import tpu as pltpu


def _resblock_kernel(
    x_ref, t_ref, vecs_ref, wt_ref, w1_ref, w2_ref, ws_ref, out_ref,
    *, C_in, C_out, L, Bt, dilation, eps,
):
    g = pl.program_id(0)
    N = Bt * L
    B = t_ref.shape[1]
    d = dilation

    x = x_ref[...]                                             # (C_in, Bt*L) f32

    # Packed per-channel params: columns [g1, bn1, b_t, b_c1, g2, bn2, b_c2, b_s].
    vecs = vecs_ref[...]                                       # (C_max, 8)
    g1, bn1, b_t = vecs[:C_in, 0:1], vecs[:C_in, 1:2], vecs[:C_in, 2:3]
    b_c1, g2, bn2 = vecs[:C_out, 3:4], vecs[:C_out, 4:5], vecs[:C_out, 5:6]
    b_c2, b_s = vecs[:C_out, 6:7], vecs[:C_out, 7:8]

    # Per-lane "which batch row / position inside the row" helpers, hoisted once and
    # shared by both convs and the t broadcast.  Built without integer div/mod.
    col = jax.lax.broadcasted_iota(jnp.int32, (1, N), 1)
    row_idx = jnp.zeros((1, N), jnp.int32)
    for k in range(1, Bt):
        row_idx = row_idx + (col >= k * L).astype(jnp.int32)   # == p // L
    lane_l = col - L * row_idx                                 # == p %  L
    m_minus = lane_l >= d
    m_plus = lane_l < (L - d)

    def layernorm(v, gamma, beta):
        mean = jnp.mean(v, axis=0, keepdims=True)
        var = jnp.mean((v - mean) ** 2, axis=0, keepdims=True)  # unbiased=False
        return (v - mean) * jax.lax.rsqrt(var + eps) * gamma + beta

    def swish(v):
        return v * jax.nn.sigmoid(v)

    def circ_shifts(v):
        # Per-row circular shift along L inside the merged (C, Bt*L) slab.  A roll of
        # the merged slab is correct everywhere except the first/last d lanes of each
        # row; there a second roll (offset by one row length) supplies the wrapped
        # values, so the wrap never crosses a batch boundary.
        vm = jnp.where(m_minus, pltpu.roll(v, d, axis=1),
                       pltpu.roll(v, N - L + d, axis=1))        # v_row[(l - d) % L]
        vp = jnp.where(m_plus, pltpu.roll(v, N - d, axis=1),
                       pltpu.roll(v, L - d, axis=1))            # v_row[(l + d) % L]
        return vm, vp

    def circ_conv3(v, w_cat, bias):
        # Conv1d(kernel 3, dilation d, circular padding) as one MXU matmul against the
        # tap-major stacked slab (no im2col, no extra HBM traffic).
        vm, vp = circ_shifts(v)
        v_cat = jnp.concatenate([vm, v, vp], axis=0)            # (3C, Bt*L)
        return jnp.dot(w_cat, v_cat, preferred_element_type=jnp.float32) + bias

    # ---- norm1 (LayerNorm over channels, per length position) ----
    xn = layernorm(x, g1, bn1)

    # ---- diffusion_proj(t), scattered to this block's rows and broadcast over L ----
    tproj_all = jnp.dot(wt_ref[...], t_ref[...],
                        preferred_element_type=jnp.float32) + b_t          # (C_in, B)
    rowB = jax.lax.broadcasted_iota(jnp.int32, (B, N), 0)
    sel = (rowB == (g * Bt + row_idx)).astype(jnp.float32)                 # (B, Bt*L) 0/1
    tproj = jnp.dot(tproj_all, sel, preferred_element_type=jnp.float32)    # (C_in, Bt*L)

    y = xn + tproj
    h = swish(circ_conv3(y, w1_ref[...], b_c1))                 # (C_out, Bt*L)
    hn = layernorm(h, g2, bn2)
    h2 = swish(circ_conv3(hn, w2_ref[...], b_c2))               # (C_out, Bt*L)

    # 1x1 skip conv on the normalized input.
    skip = jnp.dot(ws_ref[...], xn, preferred_element_type=jnp.float32) + b_s

    out_ref[...] = ((h2 + skip) * (1.0 / math.sqrt(2.0))).astype(out_ref.dtype)


def _pick_batch_tile(B, C_in, C_out, L, vmem_budget_bytes=8 << 20):
    """Batch rows per grid step: as many as comfortably fit VMEM, while keeping
    >= 2 grid steps when possible (v7x megacore sharding of the 'parallel' axis) and a
    lane extent that is a multiple of 128 (unmasked vector stores)."""
    bytes_per_row = 16 * 3 * max(C_in, C_out) * L * 4   # ~16 live f32 (3C, L) slabs, generous
    cap = max(1, vmem_budget_bytes // bytes_per_row)
    ok = [bt for bt in range(1, B + 1)
          if B % bt == 0 and bt <= cap and ((bt * L) % 128 == 0 or bt == B)]
    if not ok:
        return B
    multi = [bt for bt in ok if B // bt >= 2]
    return max(multi) if multi else max(ok)


def residual_block(x, t, params, *, dilation, eps=1e-5, adj=None):
    """x: (B, C_in, L), t: (B, temb) -> ((B, C_out, L) f32, adj)."""
    B, C_in, L = x.shape
    C_out = params["conv1_w"].shape[0]
    assert 0 < dilation < L
    f32 = jnp.float32

    Bt = _pick_batch_tile(B, C_in, C_out, L)
    N = Bt * L

    # ---- layout plumbing (plain-JAX glue) ----
    # Activations go in as (C, B*L), batch-major along lanes, so batch folds straight
    # into the matmul N dimension and every block is lane-dense.
    x_m = jnp.transpose(x.astype(f32), (1, 0, 2)).reshape(C_in, B * L)
    t_T = jnp.transpose(t.astype(f32), (1, 0))                      # (temb, B)

    def conv3_cat(w):   # (C_out, C, 3) -> (C_out, 3*C), tap-major columns
        co, c, k = w.shape
        return jnp.transpose(w, (0, 2, 1)).reshape(co, k * c).astype(f32)

    wt = params["proj_w"].astype(f32)                               # (C_in, temb)
    w1 = conv3_cat(params["conv1_w"])                               # (C_out, 3*C_in)
    w2 = conv3_cat(params["conv2_w"])                               # (C_out, 3*C_out)
    ws = params["convs_w"].reshape(C_out, C_in).astype(f32)         # 1x1 conv weight

    # Pack the eight per-channel scale/bias vectors into one (C_max, 8) grid constant.
    C_max = max(C_in, C_out)
    def col(v):
        v = v.reshape(-1).astype(f32)
        return jnp.pad(v, (0, C_max - v.shape[0]))[:, None]
    vecs = jnp.concatenate(
        [col(params["norm1_g"]), col(params["norm1_b"]), col(params["proj_b"]),
         col(params["conv1_b"]), col(params["norm2_g"]), col(params["norm2_b"]),
         col(params["conv2_b"]), col(params["convs_b"])], axis=1)   # (C_max, 8)

    def const_spec(a):
        zeros = (0,) * a.ndim
        return pl.BlockSpec(a.shape, lambda g, _z=zeros: _z)        # grid-constant block

    kernel = functools.partial(
        _resblock_kernel, C_in=C_in, C_out=C_out, L=L, Bt=Bt,
        dilation=dilation, eps=eps)

    y_m = pl.pallas_call(
        kernel,
        out_shape=jax.ShapeDtypeStruct((C_out, B * L), f32),
        grid=(B // Bt,),
        in_specs=[
            pl.BlockSpec((C_in, N), lambda g: (0, g)),              # Bt batch rows / step
            const_spec(t_T), const_spec(vecs), const_spec(wt),
            const_spec(w1), const_spec(w2), const_spec(ws),
        ],
        out_specs=pl.BlockSpec((C_out, N), lambda g: (0, g)),
        compiler_params=pltpu.CompilerParams(
            dimension_semantics=("parallel",)),
    )(x_m, t_T, vecs, wt, w1, w2, ws)

    y = jnp.transpose(y_m.reshape(C_out, B, L), (1, 0, 2))
    return y, adj


def _reference(x, t, params, *, dilation, eps=1e-5):
    """Pure-JAX reference; convs via lax.conv on explicitly circular-padded input."""
    hi = jax.lax.Precision.HIGHEST

    def layernorm(v, g, b):
        mean = jnp.mean(v, axis=1, keepdims=True)
        var = jnp.mean((v - mean) ** 2, axis=1, keepdims=True)
        return (v - mean) / jnp.sqrt(var + eps) * g + b

    def circ_conv(v, w, b, d):
        k = w.shape[-1]
        pad = d * (k - 1) // 2
        if pad:
            v = jnp.pad(v, ((0, 0), (0, 0), (pad, pad)), mode="wrap")
        out = jax.lax.conv_general_dilated(
            v, w, window_strides=(1,), padding="VALID", rhs_dilation=(d,),
            dimension_numbers=("NCH", "OIH", "NCH"), precision=hi)
        return out + b[None, :, None]

    xn = layernorm(x, params["norm1_g"], params["norm1_b"])
    tp = jnp.dot(t, params["proj_w"].T, precision=hi) + params["proj_b"]
    y = xn + tp[:, :, None]
    h = circ_conv(y, params["conv1_w"], params["conv1_b"], dilation)
    h = h * jax.nn.sigmoid(h)
    hn = layernorm(h, params["norm2_g"], params["norm2_b"])
    h2 = circ_conv(hn, params["conv2_w"], params["conv2_b"], dilation)
    h2 = h2 * jax.nn.sigmoid(h2)
    skip = circ_conv(xn, params["convs_w"], params["convs_b"], 1)
    return (h2 + skip) / np.sqrt(2.0)


if __name__ == "__main__":
    key = jax.random.PRNGKey(0)
    # B=16 exercises batch folding (Bt=8 rows per step) while keeping 2 parallel grid
    # steps for v7x's two TensorCores.
    B, C_IN, C_OUT, L, TEMB, DIL = 16, 8, 16, 128, 32, 2
    ks = jax.random.split(key, 14)

    params = {
        "norm1_g": 1.0 + 0.1 * jax.random.normal(ks[0], (1, C_IN, 1), jnp.float32),
        "norm1_b": 0.1 * jax.random.normal(ks[1], (1, C_IN, 1), jnp.float32),
        "proj_w": jax.random.normal(ks[2], (C_IN, TEMB), jnp.float32) / np.sqrt(TEMB),
        "proj_b": 0.1 * jax.random.normal(ks[3], (C_IN,), jnp.float32),
        "conv1_w": jax.random.normal(ks[4], (C_OUT, C_IN, 3), jnp.float32) / np.sqrt(3 * C_IN),
        "conv1_b": 0.1 * jax.random.normal(ks[5], (C_OUT,), jnp.float32),
        "norm2_g": 1.0 + 0.1 * jax.random.normal(ks[6], (1, C_OUT, 1), jnp.float32),
        "norm2_b": 0.1 * jax.random.normal(ks[7], (1, C_OUT, 1), jnp.float32),
        "conv2_w": jax.random.normal(ks[8], (C_OUT, C_OUT, 3), jnp.float32) / np.sqrt(3 * C_OUT),
        "conv2_b": 0.1 * jax.random.normal(ks[9], (C_OUT,), jnp.float32),
        "convs_w": jax.random.normal(ks[10], (C_OUT, C_IN, 1), jnp.float32) / np.sqrt(C_IN),
        "convs_b": 0.1 * jax.random.normal(ks[11], (C_OUT,), jnp.float32),
    }
    x = jax.random.normal(ks[12], (B, C_IN, L), jnp.float32)
    t = jax.random.normal(ks[13], (B, TEMB), jnp.float32)

    y, adj = residual_block(x, t, params, dilation=DIL)
    y = jax.block_until_ready(y)

    ref = _reference(x, t, params, dilation=DIL)
    assert y.shape == (B, C_OUT, L), y.shape
    assert adj is None
    err = float(jnp.max(jnp.abs(y - ref)))
    # 1e-3 covers MXU pass-decomposition / transcendental differences vs the XLA path.
    assert jnp.allclose(y, ref, atol=1e-3, rtol=1e-3), err

    print("KERNEL_OK")
</pallas_src>

<mosaic_0001>
module attributes {stable_mosaic.version = 11 : i64} {
  func.func @_resblock_kernel(%arg0: i32, %arg1: memref<8x1024xf32, #tpu.memory_space<vmem>>, %arg2: memref<32x16xf32, #tpu.memory_space<vmem>>, %arg3: memref<16x8xf32, #tpu.memory_space<vmem>>, %arg4: memref<8x32xf32, #tpu.memory_space<vmem>>, %arg5: memref<16x24xf32, #tpu.memory_space<vmem>>, %arg6: memref<16x48xf32, #tpu.memory_space<vmem>>, %arg7: memref<16x8xf32, #tpu.memory_space<vmem>>, %arg8: memref<16x1024xf32, #tpu.memory_space<vmem>>) attributes {dimension_semantics = [#tpu.dimension_semantics<parallel>], iteration_bounds = array<i64: 2>, scalar_prefetch = 0 : i64, scratch_operands = 0 : i64, tpu.core_type = #tpu.core_type<tc>, window_params = [{transform_indices = @transform_0, window_bounds = array<i64: 8, 1024>}, {pipeline_mode = #tpu.pipeline_mode<synchronous>, transform_indices = @transform_1, window_bounds = array<i64: 32, 16>}, {pipeline_mode = #tpu.pipeline_mode<synchronous>, transform_indices = @transform_2, window_bounds = array<i64: 16, 8>}, {pipeline_mode = #tpu.pipeline_mode<synchronous>, transform_indices = @transform_3, window_bounds = array<i64: 8, 32>}, {pipeline_mode = #tpu.pipeline_mode<synchronous>, transform_indices = @transform_4, window_bounds = array<i64: 16, 24>}, {pipeline_mode = #tpu.pipeline_mode<synchronous>, transform_indices = @transform_5, window_bounds = array<i64: 16, 48>}, {pipeline_mode = #tpu.pipeline_mode<synchronous>, transform_indices = @transform_6, window_bounds = array<i64: 16, 8>}, {transform_indices = @transform_7, window_bounds = array<i64: 16, 1024>}]} {
    %c0 = arith.constant 0 : index
    %c0_0 = arith.constant 0 : index
    %0 = vector.load %arg1[%c0, %c0_0] : memref<8x1024xf32, #tpu.memory_space<vmem>>, vector<8x1024xf32>
    %c0_1 = arith.constant 0 : index
    %c0_2 = arith.constant 0 : index
    %1 = vector.load %arg3[%c0_1, %c0_2] : memref<16x8xf32, #tpu.memory_space<vmem>>, vector<16x8xf32>
    %2 = vector.extract_strided_slice %1 {offsets = [0, 0], sizes = [8, 1], strides = [1, 1]} : vector<16x8xf32> to vector<8x1xf32>
    %3 = vector.extract_strided_slice %1 {offsets = [0, 1], sizes = [8, 1], strides = [1, 1]} : vector<16x8xf32> to vector<8x1xf32>
    %4 = vector.extract_strided_slice %1 {offsets = [0, 2], sizes = [8, 1], strides = [1, 1]} : vector<16x8xf32> to vector<8x1xf32>
    %5 = vector.extract_strided_slice %1 {offsets = [0, 3], sizes = [16, 1], strides = [1, 1]} : vector<16x8xf32> to vector<16x1xf32>
    %6 = vector.extract_strided_slice %1 {offsets = [0, 4], sizes = [16, 1], strides = [1, 1]} : vector<16x8xf32> to vector<16x1xf32>
    %7 = vector.extract_strided_slice %1 {offsets = [0, 5], sizes = [16, 1], strides = [1, 1]} : vector<16x8xf32> to vector<16x1xf32>
    %8 = vector.extract_strided_slice %1 {offsets = [0, 6], sizes = [16, 1], strides = [1, 1]} : vector<16x8xf32> to vector<16x1xf32>
    %9 = vector.extract_strided_slice %1 {offsets = [0, 7], sizes = [16, 1], strides = [1, 1]} : vector<16x8xf32> to vector<16x1xf32>
    %10 = tpu.iota {dimensions = array<i32: 1>} : vector<1x1024xi32>
    %c0_i32 = arith.constant 0 : i32
    %11 = vector.broadcast %c0_i32 : i32 to vector<1x1024xi32>
    %c128_i32 = arith.constant 128 : i32
    %12 = vector.broadcast %c128_i32 : i32 to vector<1x1024xi32>
    %13 = arith.cmpi sge, %10, %12 : vector<1x1024xi32>
    %14 = arith.extui %13 : vector<1x1024xi1> to vector<1x1024xi32>
    %15 = arith.addi %11, %14 : vector<1x1024xi32>
    %c256_i32 = arith.constant 256 : i32
    %16 = vector.broadcast %c256_i32 : i32 to vector<1x1024xi32>
    %17 = arith.cmpi sge, %10, %16 : vector<1x1024xi32>
    %18 = arith.extui %17 : vector<1x1024xi1> to vector<1x1024xi32>
    %19 = arith.addi %15, %18 : vector<1x1024xi32>
    %c384_i32 = arith.constant 384 : i32
    %20 = vector.broadcast %c384_i32 : i32 to vector<1x1024xi32>
    %21 = arith.cmpi sge, %10, %20 : vector<1x1024xi32>
    %22 = arith.extui %21 : vector<1x1024xi1> to vector<1x1024xi32>
    %23 = arith.addi %19, %22 : vector<1x1024xi32>
    %c512_i32 = arith.constant 512 : i32
    %24 = vector.broadcast %c512_i32 : i32 to vector<1x1024xi32>
    %25 = arith.cmpi sge, %10, %24 : vector<1x1024xi32>
    %26 = arith.extui %25 : vector<1x1024xi1> to vector<1x1024xi32>
    %27 = arith.addi %23, %26 : vector<1x1024xi32>
    %c640_i32 = arith.constant 640 : i32
    %28 = vector.broadcast %c640_i32 : i32 to vector<1x1024xi32>
    %29 = arith.cmpi sge, %10, %28 : vector<1x1024xi32>
    %30 = arith.extui %29 : vector<1x1024xi1> to vector<1x1024xi32>
    %31 = arith.addi %27, %30 : vector<1x1024xi32>
    %c768_i32 = arith.constant 768 : i32
    %32 = vector.broadcast %c768_i32 : i32 to vector<1x1024xi32>
    %33 = arith.cmpi sge, %10, %32 : vector<1x1024xi32>
    %34 = arith.extui %33 : vector<1x1024xi1> to vector<1x1024xi32>
    %35 = arith.addi %31, %34 : vector<1x1024xi32>
    %c896_i32 = arith.constant 896 : i32
    %36 = vector.broadcast %c896_i32 : i32 to vector<1x1024xi32>
    %37 = arith.cmpi sge, %10, %36 : vector<1x1024xi32>
    %38 = arith.extui %37 : vector<1x1024xi1> to vector<1x1024xi32>
    %39 = arith.addi %35, %38 : vector<1x1024xi32>
    %c128_i32_3 = arith.constant 128 : i32
    %40 = vector.broadcast %c128_i32_3 : i32 to vector<1x1024xi32>
    %41 = arith.muli %40, %39 : vector<1x1024xi32>
    %42 = arith.subi %10, %41 : vector<1x1024xi32>
    %c2_i32 = arith.constant 2 : i32
    %43 = vector.broadcast %c2_i32 : i32 to vector<1x1024xi32>
    %44 = arith.cmpi sge, %42, %43 : vector<1x1024xi32>
    %c126_i32 = arith.constant 126 : i32
    %45 = vector.broadcast %c126_i32 : i32 to vector<1x1024xi32>
    %46 = arith.cmpi slt, %42, %45 : vector<1x1024xi32>
    %cst = arith.constant dense<0.000000e+00> : vector<1024xf32>
    %47 = vector.multi_reduction <add>, %0, %cst [0] : vector<8x1024xf32> to vector<1024xf32>
    %48 = vector.shape_cast %47 : vector<1024xf32> to vector<1x1024xf32>
    %cst_4 = arith.constant 8.000000e+00 : f32
    %49 = vector.broadcast %cst_4 : f32 to vector<1x1024xf32>
    %50 = arith.divf %48, %49 : vector<1x1024xf32>
    %51 = vector.broadcast %50 : vector<1x1024xf32> to vector<8x1024xf32>
    %52 = arith.subf %0, %51 : vector<8x1024xf32>
    %53 = arith.mulf %52, %52 : vector<8x1024xf32>
    %cst_5 = arith.constant dense<0.000000e+00> : vector<1024xf32>
    %54 = vector.multi_reduction <add>, %53, %cst_5 [0] : vector<8x1024xf32> to vector<1024xf32>
    %55 = vector.shape_cast %54 : vector<1024xf32> to vector<1x1024xf32>
    %cst_6 = arith.constant 8.000000e+00 : f32
    %56 = vector.broadcast %cst_6 : f32 to vector<1x1024xf32>
    %57 = arith.divf %55, %56 : vector<1x1024xf32>
    %58 = vector.broadcast %50 : vector<1x1024xf32> to vector<8x1024xf32>
    %59 = arith.subf %0, %58 : vector<8x1024xf32>
    %cst_7 = arith.constant 9.99999974E-6 : f32
    %60 = vector.broadcast %cst_7 : f32 to vector<1x1024xf32>
    %61 = arith.addf %57, %60 : vector<1x1024xf32>
    %62 = math.rsqrt %61 : vector<1x1024xf32>
    %63 = vector.broadcast %62 : vector<1x1024xf32> to vector<8x1024xf32>
    %64 = arith.mulf %59, %63 : vector<8x1024xf32>
    %65 = vector.broadcast %2 : vector<8x1xf32> to vector<8x1024xf32>
    %66 = arith.mulf %64, %65 : vector<8x1024xf32>
    %67 = vector.broadcast %3 : vector<8x1xf32> to vector<8x1024xf32>
    %68 = arith.addf %66, %67 : vector<8x1024xf32>
    %c0_8 = arith.constant 0 : index
    %c0_9 = arith.constant 0 : index
    %69 = vector.load %arg4[%c0_8, %c0_9] : memref<8x32xf32, #tpu.memory_space<vmem>>, vector<8x32xf32>
    %c0_10 = arith.constant 0 : index
    %c0_11 = arith.constant 0 : index
    %70 = vector.load %arg2[%c0_10, %c0_11] : memref<32x16xf32, #tpu.memory_space<vmem>>, vector<32x16xf32>
    %cst_12 = arith.constant dense<0.000000e+00> : vector<8x16xf32>
    %71 = tpu.matmul %69, %70, %cst_12 {dimension_numbers = #tpu.dot_dimension_numbers<[1], [0], [0], [1], [0, 0, 1, 1], [], []>} : vector<8x32xf32>, vector<32x16xf32>, vector<8x16xf32> -> vector<8x16xf32>
    %72 = vector.broadcast %4 : vector<8x1xf32> to vector<8x16xf32>
    %73 = arith.addf %71, %72 : vector<8x16xf32>
    %74 = tpu.iota {dimensions = array<i32: 0>} : vector<16x1024xi32>
    %c8_i32 = arith.constant 8 : i32
    %75 = arith.muli %arg0, %c8_i32 : i32
    %76 = vector.broadcast %75 : i32 to vector<1x1024xi32>
    %77 = arith.addi %76, %39 : vector<1x1024xi32>
    %78 = vector.broadcast %77 : vector<1x1024xi32> to vector<16x1024xi32>
    %79 = arith.cmpi eq, %74, %78 : vector<16x1024xi32>
    %80 = arith.extui %79 : vector<16x1024xi1> to vector<16x1024xi32>
    %81 = arith.sitofp %80 : vector<16x1024xi32> to vector<16x1024xf32>
    %cst_13 = arith.constant dense<0.000000e+00> : vector<8x1024xf32>
    %82 = tpu.matmul %73, %81, %cst_13 {dimension_numbers = #tpu.dot_dimension_numbers<[1], [0], [0], [1], [0, 0, 1, 1], [], []>} : vector<8x16xf32>, vector<16x1024xf32>, vector<8x1024xf32> -> vector<8x1024xf32>
    %83 = arith.addf %68, %82 : vector<8x1024xf32>
    %c0_14 = arith.constant 0 : index
    %c0_15 = arith.constant 0 : index
    %84 = vector.load %arg5[%c0_14, %c0_15] : memref<16x24xf32, #tpu.memory_space<vmem>>, vector<16x24xf32>
    %c2_i32_16 = arith.constant 2 : i32
    %85 = tpu.dynamic_rotate %83 by %c2_i32_16 dim 1 : vector<8x1024xf32>, i32 -> vector<8x1024xf32>
    %c898_i32 = arith.constant 898 : i32
    %86 = tpu.dynamic_rotate %83 by %c898_i32 dim 1 : vector<8x1024xf32>, i32 -> vector<8x1024xf32>
    %87 = vector.shape_cast %44 : vector<1x1024xi1> to vector<1x1024xi1>
    %88 = vector.broadcast %87 : vector<1x1024xi1> to vector<8x1024xi1>
    %89 = arith.select %88, %85, %86 : vector<8x1024xi1>, vector<8x1024xf32>
    %c1022_i32 = arith.constant 1022 : i32
    %90 = tpu.dynamic_rotate %83 by %c1022_i32 dim 1 : vector<8x1024xf32>, i32 -> vector<8x1024xf32>
    %c126_i32_17 = arith.constant 126 : i32
    %91 = tpu.dynamic_rotate %83 by %c126_i32_17 dim 1 : vector<8x1024xf32>, i32 -> vector<8x1024xf32>
    %92 = vector.shape_cast %46 : vector<1x1024xi1> to vector<1x1024xi1>
    %93 = vector.broadcast %92 : vector<1x1024xi1> to vector<8x1024xi1>
    %94 = arith.select %93, %90, %91 : vector<8x1024xi1>, vector<8x1024xf32>
    %95 = tpu.concatenate %89, %83, %94 in 0 : vector<8x1024xf32>, vector<8x1024xf32>, vector<8x1024xf32> -> vector<24x1024xf32>
    %cst_18 = arith.constant dense<0.000000e+00> : vector<16x1024xf32>
    %96 = tpu.matmul %84, %95, %cst_18 {dimension_numbers = #tpu.dot_dimension_numbers<[1], [0], [0], [1], [0, 0, 1, 1], [], []>} : vector<16x24xf32>, vector<24x1024xf32>, vector<16x1024xf32> -> vector<16x1024xf32>
    %97 = vector.broadcast %5 : vector<16x1xf32> to vector<16x1024xf32>
    %98 = arith.addf %96, %97 : vector<16x1024xf32>
    %99 = arith.negf %98 : vector<16x1024xf32>
    %100 = math.exp %99 : vector<16x1024xf32>
    %cst_19 = arith.constant 1.000000e+00 : f32
    %101 = vector.broadcast %cst_19 : f32 to vector<16x1024xf32>
    %102 = arith.addf %101, %100 : vector<16x1024xf32>
    %103 = arith.divf %101, %102 : vector<16x1024xf32>
    %104 = arith.mulf %98, %103 : vector<16x1024xf32>
    %cst_20 = arith.constant dense<0.000000e+00> : vector<1024xf32>
    %105 = vector.multi_reduction <add>, %104, %cst_20 [0] : vector<16x1024xf32> to vector<1024xf32>
    %106 = vector.shape_cast %105 : vector<1024xf32> to vector<1x1024xf32>
    %cst_21 = arith.constant 1.600000e+01 : f32
    %107 = vector.broadcast %cst_21 : f32 to vector<1x1024xf32>
    %108 = arith.divf %106, %107 : vector<1x1024xf32>
    %109 = vector.broadcast %108 : vector<1x1024xf32> to vector<16x1024xf32>
    %110 = arith.subf %104, %109 : vector<16x1024xf32>
    %111 = arith.mulf %110, %110 : vector<16x1024xf32>
    %cst_22 = arith.constant dense<0.000000e+00> : vector<1024xf32>
    %112 = vector.multi_reduction <add>, %111, %cst_22 [0] : vector<16x1024xf32> to vector<1024xf32>
    %113 = vector.shape_cast %112 : vector<1024xf32> to vector<1x1024xf32>
    %cst_23 = arith.constant 1.600000e+01 : f32
    %114 = vector.broadcast %cst_23 : f32 to vector<1x1024xf32>
    %115 = arith.divf %113, %114 : vector<1x1024xf32>
    %116 = vector.broadcast %108 : vector<1x1024xf32> to vector<16x1024xf32>
    %117 = arith.subf %104, %116 : vector<16x1024xf32>
    %cst_24 = arith.constant 9.99999974E-6 : f32
    %118 = vector.broadcast %cst_24 : f32 to vector<1x1024xf32>
    %119 = arith.addf %115, %118 : vector<1x1024xf32>
    %120 = math.rsqrt %119 : vector<1x1024xf32>
    %121 = vector.broadcast %120 : vector<1x1024xf32> to vector<16x1024xf32>
    %122 = arith.mulf %117, %121 : vector<16x1024xf32>
    %123 = vector.broadcast %6 : vector<16x1xf32> to vector<16x1024xf32>
    %124 = arith.mulf %122, %123 : vector<16x1024xf32>
    %125 = vector.broadcast %7 : vector<16x1xf32> to vector<16x1024xf32>
    %126 = arith.addf %124, %125 : vector<16x1024xf32>
    %c0_25 = arith.constant 0 : index
    %c0_26 = arith.constant 0 : index
    %127 = vector.load %arg6[%c0_25, %c0_26] : memref<16x48xf32, #tpu.memory_space<vmem>>, vector<16x48xf32>
    %c2_i32_27 = arith.constant 2 : i32
    %128 = tpu.dynamic_rotate %126 by %c2_i32_27 dim 1 : vector<16x1024xf32>, i32 -> vector<16x1024xf32>
    %c898_i32_28 = arith.constant 898 : i32
    %129 = tpu.dynamic_rotate %126 by %c898_i32_28 dim 1 : vector<16x1024xf32>, i32 -> vector<16x1024xf32>
    %130 = vector.shape_cast %44 : vector<1x1024xi1> to vector<1x1024xi1>
    %131 = vector.broadcast %130 : vector<1x1024xi1> to vector<16x1024xi1>
    %132 = arith.select %131, %128, %129 : vector<16x1024xi1>, vector<16x1024xf32>
    %c1022_i32_29 = arith.constant 1022 : i32
    %133 = tpu.dynamic_rotate %126 by %c1022_i32_29 dim 1 : vector<16x1024xf32>, i32 -> vector<16x1024xf32>
    %c126_i32_30 = arith.constant 126 : i32
    %134 = tpu.dynamic_rotate %126 by %c126_i32_30 dim 1 : vector<16x1024xf32>, i32 -> vector<16x1024xf32>
    %135 = vector.shape_cast %46 : vector<1x1024xi1> to vector<1x1024xi1>
    %136 = vector.broadcast %135 : vector<1x1024xi1> to vector<16x1024xi1>
    %137 = arith.select %136, %133, %134 : vector<16x1024xi1>, vector<16x1024xf32>
    %138 = tpu.concatenate %132, %126, %137 in 0 : vector<16x1024xf32>, vector<16x1024xf32>, vector<16x1024xf32> -> vector<48x1024xf32>
    %cst_31 = arith.constant dense<0.000000e+00> : vector<16x1024xf32>
    %139 = tpu.matmul %127, %138, %cst_31 {dimension_numbers = #tpu.dot_dimension_numbers<[1], [0], [0], [1], [0, 0, 1, 1], [], []>} : vector<16x48xf32>, vector<48x1024xf32>, vector<16x1024xf32> -> vector<16x1024xf32>
    %140 = vector.broadcast %8 : vector<16x1xf32> to vector<16x1024xf32>
    %141 = arith.addf %139, %140 : vector<16x1024xf32>
    %142 = arith.negf %141 : vector<16x1024xf32>
    %143 = math.exp %142 : vector<16x1024xf32>
    %cst_32 = arith.constant 1.000000e+00 : f32
    %144 = vector.broadcast %cst_32 : f32 to vector<16x1024xf32>
    %145 = arith.addf %144, %143 : vector<16x1024xf32>
    %146 = arith.divf %144, %145 : vector<16x1024xf32>
    %147 = arith.mulf %141, %146 : vector<16x1024xf32>
    %c0_33 = arith.constant 0 : index
    %c0_34 = arith.constant 0 : index
    %148 = vector.load %arg7[%c0_33, %c0_34] : memref<16x8xf32, #tpu.memory_space<vmem>>, vector<16x8xf32>
    %cst_35 = arith.constant dense<0.000000e+00> : vector<16x1024xf32>
    %149 = tpu.matmul %148, %68, %cst_35 {dimension_numbers = #tpu.dot_dimension_numbers<[1], [0], [0], [1], [0, 0, 1, 1], [], []>} : vector<16x8xf32>, vector<8x1024xf32>, vector<16x1024xf32> -> vector<16x1024xf32>
    %150 = vector.broadcast %9 : vector<16x1xf32> to vector<16x1024xf32>
    %151 = arith.addf %149, %150 : vector<16x1024xf32>
    %152 = arith.addf %147, %151 : vector<16x1024xf32>
    %cst_36 = arith.constant 0.707106769 : f32
    %153 = vector.broadcast %cst_36 : f32 to vector<16x1024xf32>
    %154 = arith.mulf %152, %153 : vector<16x1024xf32>
    %c0_37 = arith.constant 0 : index
    %c0_38 = arith.constant 0 : index
    %155 = vector.load %arg8[%c0_37, %c0_38] : memref<16x1024xf32, #tpu.memory_space<vmem>>, vector<16x1024xf32>
    tpu.vector_store %arg8[%c0_37, %c0_38], %154 {strides = array<i32>} : memref<16x1024xf32, #tpu.memory_space<vmem>>, vector<16x1024xf32>,
    return
  }
  func.func @transform_0(%arg0: i32) -> (i32, i32) {
    %c0_i32 = arith.constant 0 : i32
    %c0_i32_0 = arith.constant 0 : i32
    return %c0_i32, %arg0 : i32, i32
  }
  func.func @transform_1(%arg0: i32) -> (i32, i32) {
    %c0_i32 = arith.constant 0 : i32
    %c0_i32_0 = arith.constant 0 : i32
    %c0_i32_1 = arith.constant 0 : i32
    return %c0_i32, %c0_i32_0 : i32, i32
  }
  func.func @transform_2(%arg0: i32) -> (i32, i32) {
    %c0_i32 = arith.constant 0 : i32
    %c0_i32_0 = arith.constant 0 : i32
    %c0_i32_1 = arith.constant 0 : i32
    return %c0_i32, %c0_i32_0 : i32, i32
  }
  func.func @transform_3(%arg0: i32) -> (i32, i32) {
    %c0_i32 = arith.constant 0 : i32
    %c0_i32_0 = arith.constant 0 : i32
    %c0_i32_1 = arith.constant 0 : i32
    return %c0_i32, %c0_i32_0 : i32, i32
  }
  func.func @transform_4(%arg0: i32) -> (i32, i32) {
    %c0_i32 = arith.constant 0 : i32
    %c0_i32_0 = arith.constant 0 : i32
    %c0_i32_1 = arith.constant 0 : i32
    return %c0_i32, %c0_i32_0 : i32, i32
  }
  func.func @transform_5(%arg0: i32) -> (i32, i32) {
    %c0_i32 = arith.constant 0 : i32
    %c0_i32_0 = arith.constant 0 : i32
    %c0_i32_1 = arith.constant 0 : i32
    return %c0_i32, %c0_i32_0 : i32, i32
  }
  func.func @transform_6(%arg0: i32) -> (i32, i32) {
    %c0_i32 = arith.constant 0 : i32
    %c0_i32_0 = arith.constant 0 : i32
    %c0_i32_1 = arith.constant 0 : i32
    return %c0_i32, %c0_i32_0 : i32, i32
  }
  func.func @transform_7(%arg0: i32) -> (i32, i32) {
    %c0_i32 = arith.constant 0 : i32
    %c0_i32_0 = arith.constant 0 : i32
    return %c0_i32, %arg0 : i32, i32
  }
}

</mosaic_0001>

<llo_original>
// kernel: tpu_custom_call.1
$region0: #{tpu_custom_call.1}
  #allocation0 [shape = 'u32[]', space=smem, size = 0x4, offset = 0x4, fixed_abs, tag = 'smem constant byte address 0x4 - core index']
  #allocation1 [shape = 'u32[144,128]{1,0:T(1,128)}', space=vmem, size = 0x12000, scoped, tag = 'internal scratch']
  %s0 = inlined_call_operand.hbm [shape: f32[8,2048], index: 0, kind: input, shape index: {}]
  %s1 = inlined_call_operand.vmem [shape: f32[32,16], index: 1, kind: input, shape index: {}]
  %s2 = inlined_call_operand.vmem [shape: f32[16,8], index: 2, kind: input, shape index: {}]
  %s3 = inlined_call_operand.vmem [shape: f32[8,32], index: 3, kind: input, shape index: {}]
  %s4 = inlined_call_operand.vmem [shape: f32[16,24], index: 4, kind: input, shape index: {}]
  %s5 = inlined_call_operand.vmem [shape: f32[16,48], index: 5, kind: input, shape index: {}]
  %s6 = inlined_call_operand.vmem [shape: f32[16,8], index: 6, kind: input, shape index: {}]
  %s7 = inlined_call_operand.hbm [shape: f32[16,2048], index: 7, kind: output, shape index: {}]
  %s8 = sld [smem:[#allocation0]]
  $region65: #{tpu_custom_call.1} parent=0
    _
  %s10 = ssub.s32 1, %s8
  %s11 = scalar_select 0, %s10, %s8
  $region1: #{tpu_custom_call.1} parent=0
    #allocation2 [shape = 'u8[65536]{0}', space=vmem, size = 0x10000, scoped, tag = 'input window, operand 0']
    #allocation3 [shape = 's32[2]{0}', space=sflag, size = 0x8, scoped, tag = 'scoped memory for tpu_custom_call.1']
    #allocation4 [shape = 's32[2]{0}', space=sflag, size = 0x8, scoped, tag = 'scoped memory for tpu_custom_call.1']
    #allocation5 [shape = 'u8[131072]{0}', space=vmem, size = 0x20000, scoped, tag = 'output window, operand 0']
    %12 = vsyncpa [#allocation3], 0
    %s13 = scalar_lea.sflag [#allocation3], 1
    %14 = vsyncpa %s13, 0
    %15 = vsyncpa [#allocation4], 0
    %s16 = scalar_lea.sflag [#allocation4], 1
    %17 = vsyncpa %s16, 0
    loop: start=0, step=1, limit=4
    $region2: #{tpu_custom_call.1} parent=1 // loop_pre_header
      _
    $region3: #{tpu_custom_call.1} parent=1 // loop_header
      %s19 = sphi 0, %s23
      %p20 = scmp.ge.s32.totalorder %s19, 4
      %s29 = sphi 0, %s31
      %s32 = sphi 0, %s29
      %s33 = sphi 0, %s32
      %s49 = sphi 0, %s33
      %s53 = sphi 0, %s53
      %s55 = sphi 0, %s53
      %s56 = sphi 0, %s55
      %s70 = sphi 0, %s56
      %s74 = sphi 0, %s74
      %s76 = sphi 0, %s74
      %s77 = sphi 0, %s76
      %s91 = sphi 0, %s77
      %s95 = sphi 0, %s95
      %s97 = sphi 0, %s95
      %s98 = sphi 0, %s97
      %s112 = sphi 0, %s98
      %s116 = sphi 0, %s116
      %s118 = sphi 0, %s116
      %s119 = sphi 0, %s118
      %s133 = sphi 0, %s119
      %s137 = sphi 0, %s137
      %s139 = sphi 0, %s137
      %s140 = sphi 0, %s139
      %s154 = sphi 0, %s140
      %s158 = sphi 0, %s158
      %s160 = sphi 0, %s158
      %s161 = sphi 0, %s160
      %s175 = sphi 0, %s161
      %s181 = sphi 0, %s183
      %s184 = sphi 0, %s181
      %s185 = sphi 0, %s184
      %s201 = sphi 0, %s185
    $region4: #{tpu_custom_call.1} parent=1 // loop_header_branch
      %22 = sbr.rel (%p20) target = $region8
    $region5: #{tpu_custom_call.1} parent=1 // loop_body
      %s24 = ssub.s32 %s19, 1
      %s25 = ssub.s32 %s19, 2
      %s26 = sadd.s32 %s19, 1
      %s27 = ssub.s32 %s19, %s26
      %p28 = scmp.eq.s32.totalorder %s27, 0
      %s30 = sadd.s32 %s29, 1
      %s31 = scalar_select %p28, %s29, %s30
      %p34 = pneg %p28
      %p35 = scmp.eq.s32.totalorder %s19, 1
      %p36 = por %p34, %p35
      %p37 = scmp.ne.s32.totalorder %s29, %s32
      %p38 = scmp.eq.s32.totalorder %s19, 0
      %p39 = por %p37, %p38
      %p40 = scmp.ne.s32.totalorder %s29, %s32
      %p41 = scmp.eq.s32.totalorder %s24, 1
      %p42 = por %p40, %p41
      %p43 = scmp.ne.s32.totalorder %s32, %s33
      %p44 = scmp.eq.s32.totalorder %s24, 0
      %p45 = por %p43, %p44
      %p46 = scmp.ne.s32.totalorder %s32, %s33
      %p47 = scmp.eq.s32.totalorder %s25, 1
      %p48 = por %p46, %p47
      %p50 = scmp.ne.s32.totalorder %s33, %s49
      %p51 = scmp.eq.s32.totalorder %s25, 0
      %p52 = por %p50, %p51
      %s54 = sadd.s32 %s53, 1
      %p57 = scmp.eq.s32.totalorder %s19, 1
      %p58 = scmp.ne.s32.totalorder %s53, %s55
      %p59 = scmp.eq.s32.totalorder %s19, 0
      %p60 = por %p58, %p59
      %p61 = scmp.ne.s32.totalorder %s53, %s55
      %p62 = scmp.eq.s32.totalorder %s24, 1
      %p63 = por %p61, %p62
      %p64 = scmp.ne.s32.totalorder %s55, %s56
      %p65 = scmp.eq.s32.totalorder %s24, 0
      %p66 = por %p64, %p65
      %p67 = scmp.ne.s32.totalorder %s55, %s56
      %p68 = scmp.eq.s32.totalorder %s25, 1
      %p69 = por %p67, %p68
      %p71 = scmp.ne.s32.totalorder %s56, %s70
      %p72 = scmp.eq.s32.totalorder %s25, 0
      %p73 = por %p71, %p72
      %s75 = sadd.s32 %s74, 1
      %p78 = scmp.eq.s32.totalorder %s19, 1
      %p79 = scmp.ne.s32.totalorder %s74, %s76
      %p80 = scmp.eq.s32.totalorder %s19, 0
      %p81 = por %p79, %p80
      %p82 = scmp.ne.s32.totalorder %s74, %s76
      %p83 = scmp.eq.s32.totalorder %s24, 1
      %p84 = por %p82, %p83
      %p85 = scmp.ne.s32.totalorder %s76, %s77
      %p86 = scmp.eq.s32.totalorder %s24, 0
      %p87 = por %p85, %p86
      %p88 = scmp.ne.s32.totalorder %s76, %s77
      %p89 = scmp.eq.s32.totalorder %s25, 1
      %p90 = por %p88, %p89
      %p92 = scmp.ne.s32.totalorder %s77, %s91
      %p93 = scmp.eq.s32.totalorder %s25, 0
      %p94 = por %p92, %p93
      %s96 = sadd.s32 %s95, 1
      %p99 = scmp.eq.s32.totalorder %s19, 1
      %p100 = scmp.ne.s32.totalorder %s95, %s97
      %p101 = scmp.eq.s32.totalorder %s19, 0
      %p102 = por %p100, %p101
      %p103 = scmp.ne.s32.totalorder %s95, %s97
      %p104 = scmp.eq.s32.totalorder %s24, 1
      %p105 = por %p103, %p104
      %p106 = scmp.ne.s32.totalorder %s97, %s98
      %p107 = scmp.eq.s32.totalorder %s24, 0
      %p108 = por %p106, %p107
      %p109 = scmp.ne.s32.totalorder %s97, %s98
      %p110 = scmp.eq.s32.totalorder %s25, 1
      %p111 = por %p109, %p110
      %p113 = scmp.ne.s32.totalorder %s98, %s112
      %p114 = scmp.eq.s32.totalorder %s25, 0
      %p115 = por %p113, %p114
      %s117 = sadd.s32 %s116, 1
      %p120 = scmp.eq.s32.totalorder %s19, 1
      %p121 = scmp.ne.s32.totalorder %s116, %s118
      %p122 = scmp.eq.s32.totalorder %s19, 0
      %p123 = por %p121, %p122
      %p124 = scmp.ne.s32.totalorder %s116, %s118
      %p125 = scmp.eq.s32.totalorder %s24, 1
      %p126 = por %p124, %p125
      %p127 = scmp.ne.s32.totalorder %s118, %s119
      %p128 = scmp.eq.s32.totalorder %s24, 0
      %p129 = por %p127, %p128
      %p130 = scmp.ne.s32.totalorder %s118, %s119
      %p131 = scmp.eq.s32.totalorder %s25, 1
      %p132 = por %p130, %p131
      %p134 = scmp.ne.s32.totalorder %s119, %s133
      %p135 = scmp.eq.s32.totalorder %s25, 0
      %p136 = por %p134, %p135
      %s138 = sadd.s32 %s137, 1
      %p141 = scmp.eq.s32.totalorder %s19, 1
      %p142 = scmp.ne.s32.totalorder %s137, %s139
      %p143 = scmp.eq.s32.totalorder %s19, 0
      %p144 = por %p142, %p143
      %p145 = scmp.ne.s32.totalorder %s137, %s139
      %p146 = scmp.eq.s32.totalorder %s24, 1
      %p147 = por %p145, %p146
      %p148 = scmp.ne.s32.totalorder %s139, %s140
      %p149 = scmp.eq.s32.totalorder %s24, 0
      %p150 = por %p148, %p149
      %p151 = scmp.ne.s32.totalorder %s139, %s140
      %p152 = scmp.eq.s32.totalorder %s25, 1
      %p153 = por %p151, %p152
      %p155 = scmp.ne.s32.totalorder %s140, %s154
      %p156 = scmp.eq.s32.totalorder %s25, 0
      %p157 = por %p155, %p156
      %s159 = sadd.s32 %s158, 1
      %p162 = scmp.eq.s32.totalorder %s19, 1
      %p163 = scmp.ne.s32.totalorder %s158, %s160
      %p164 = scmp.eq.s32.totalorder %s19, 0
      %p165 = por %p163, %p164
      %p166 = scmp.ne.s32.totalorder %s158, %s160
      %p167 = scmp.eq.s32.totalorder %s24, 1
      %p168 = por %p166, %p167
      %p169 = scmp.ne.s32.totalorder %s160, %s161
      %p170 = scmp.eq.s32.totalorder %s24, 0
      %p171 = por %p169, %p170
      %p172 = scmp.ne.s32.totalorder %s160, %s161
      %p173 = scmp.eq.s32.totalorder %s25, 1
      %p174 = por %p172, %p173
      %p176 = scmp.ne.s32.totalorder %s161, %s175
      %p177 = scmp.eq.s32.totalorder %s25, 0
      %p178 = por %p176, %p177
      %s179 = ssub.s32 %s19, %s26
      %p180 = scmp.eq.s32.totalorder %s179, 0
      %s182 = sadd.s32 %s181, 1
      %s183 = scalar_select %p180, %s181, %s182
      %p186 = pneg %p180
      %p187 = scmp.eq.s32.totalorder %s19, 1
      %p188 = por %p186, %p187
      %p189 = scmp.ne.s32.totalorder %s181, %s184
      %p190 = scmp.eq.s32.totalorder %s19, 0
      %p191 = por %p189, %p190
      %p192 = scmp.ne.s32.totalorder %s181, %s184
      %p193 = scmp.eq.s32.totalorder %s24, 1
      %p194 = por %p192, %p193
      %p195 = scmp.ne.s32.totalorder %s184, %s185
      %p196 = scmp.eq.s32.totalorder %s24, 0
      %p197 = por %p195, %p196
      %p198 = scmp.ne.s32.totalorder %s184, %s185
      %p199 = scmp.eq.s32.totalorder %s25, 1
      %p200 = por %p198, %p199
      %p202 = scmp.ne.s32.totalorder %s185, %s201
      %p203 = scmp.eq.s32.totalorder %s25, 0
      %p204 = por %p202, %p203
      %p205 = scmp.le.s32.totalorder 1, %s19
      %p206 = scmp.lt.s32.totalorder %s19, 3
      %p207 = pnand %p205, %p206
      %p208 = pneg %p207
      // Predicated region
      $region9: #{tpu_custom_call.1} parent=5 // pred_check
        _
      $region10: #{tpu_custom_call.1} parent=5 // pred_check_branch
        %210 = sbr.rel (%p207) target = $region12
      $region11: #{tpu_custom_call.1} parent=5 // pred_region
        %s211 = ssub.s32 %s19, 1
        // Predicated region
        $region13: #{tpu_custom_call.1} parent=11 // pred_check
          %p212 = pneg %p66
        $region14: #{tpu_custom_call.1} parent=11 // pred_check_branch
          %214 = sbr.rel (%p212) target = $region16
        $region15: #{tpu_custom_call.1} parent=11 // pred_region
          _
        $region16: #{tpu_custom_call.1} parent=11 // pred_fallthru
          _
        // Predicated region
        $region17: #{tpu_custom_call.1} parent=11 // pred_check
          %p215 = pneg %p87
        $region18: #{tpu_custom_call.1} parent=11 // pred_check_branch
          %217 = sbr.rel (%p215) target = $region20
        $region19: #{tpu_custom_call.1} parent=11 // pred_region
          _
        $region20: #{tpu_custom_call.1} parent=11 // pred_fallthru
          _
        // Predicated region
        $region21: #{tpu_custom_call.1} parent=11 // pred_check
          %p218 = pneg %p108
        $region22: #{tpu_custom_call.1} parent=11 // pred_check_branch
          %220 = sbr.rel (%p218) target = $region24
        $region23: #{tpu_custom_call.1} parent=11 // pred_region
          _
        $region24: #{tpu_custom_call.1} parent=11 // pred_fallthru
          _
        // Predicated region
        $region25: #{tpu_custom_call.1} parent=11 // pred_check
          %p221 = pneg %p129
        $region26: #{tpu_custom_call.1} parent=11 // pred_check_branch
          %223 = sbr.rel (%p221) target = $region28
        $region27: #{tpu_custom_call.1} parent=11 // pred_region
          _
        $region28: #{tpu_custom_call.1} parent=11 // pred_fallthru
          _
        // Predicated region
        $region29: #{tpu_custom_call.1} parent=11 // pred_check
          %p224 = pneg %p150
        $region30: #{tpu_custom_call.1} parent=11 // pred_check_branch
          %226 = sbr.rel (%p224) target = $region32
        $region31: #{tpu_custom_call.1} parent=11 // pred_region
          _
        $region32: #{tpu_custom_call.1} parent=11 // pred_fallthru
          _
        // Predicated region
        $region33: #{tpu_custom_call.1} parent=11 // pred_check
          %p227 = pneg %p171
        $region34: #{tpu_custom_call.1} parent=11 // pred_check_branch
          %229 = sbr.rel (%p227) target = $region36
        $region35: #{tpu_custom_call.1} parent=11 // pred_region
          _
        $region36: #{tpu_custom_call.1} parent=11 // pred_fallthru
          _
      $region12: #{tpu_custom_call.1} parent=5 // pred_fallthru
        _
      %p230 = scmp.lt.s32.totalorder %s19, 2
      // Predicated region
      $region37: #{tpu_custom_call.1} parent=5 // pred_check
        %p231 = pneg %p230
      $region38: #{tpu_custom_call.1} parent=5 // pred_check_branch
        %233 = sbr.rel (%p231) target = $region40
      $region39: #{tpu_custom_call.1} parent=5 // pred_region
        // Predicated region
        $region41: #{tpu_custom_call.1} parent=39 // pred_check
          %p234 = pneg %p39
        $region42: #{tpu_custom_call.1} parent=39 // pred_check_branch
          %236 = sbr.rel (%p234) target = $region44
        $region43: #{tpu_custom_call.1} parent=39 // pred_region
          %s237 = sand.u32 %s29, 1
          %s238 = scalar_lea.sflag [#allocation3], %s237
          %s239 = sand.u32 %s29, 1
          %s240 = smul.addr %s239, 64
          %s241 = scalar_lea.vmem [#allocation2], %s240
          %s242 = smul.u32 8, %s19
          %s244 = ssub.s32 1024, 1024
          %245 = vsyncadd %s238, %s244
          %s246 = smul.addr %s242, 128
          %s247 = scalar_lea.hbm %s0, %s246
          %s249 = sshll.u32 %s241, 4
          %s250 = int_to_ptr.vmem [resolvable:$true] %s249
          %252 = dma.hbm_to_vmem [thread:$0]  %s247, 1024, %s250, %s238
        $region44: #{tpu_custom_call.1} parent=39 // pred_fallthru
          _
      $region40: #{tpu_custom_call.1} parent=5 // pred_fallthru
        _
      %p253 = scmp.le.s32.totalorder 1, %s19
      %p254 = scmp.lt.s32.totalorder %s19, 3
      %p255 = pnand %p253, %p254
      %p256 = pneg %p255
      // Predicated region
      $region45: #{tpu_custom_call.1} parent=5 // pred_check
        _
      $region46: #{tpu_custom_call.1} parent=5 // pred_check_branch
        %258 = sbr.rel (%p255) target = $region48
      $region47: #{tpu_custom_call.1} parent=5 // pred_region
        %s259 = ssub.s32 %s19, 1
        %s260 = sand.u32 %s32, 1
        %s261 = scalar_lea.sflag [#allocation3], %s260
        %s262 = sand.u32 %s32, 1
        %s263 = smul.addr %s262, 64
        %s264 = scalar_lea.vmem [#allocation2], %s263
        // Predicated region
        $region49: #{tpu_custom_call.1} parent=47 // pred_check
          %p265 = pneg %p45
        $region50: #{tpu_custom_call.1} parent=47 // pred_check_branch
          %267 = sbr.rel (%p265) target = $region52
        $region51: #{tpu_custom_call.1} parent=47 // pred_region
          %268 = dma.done %s261, 1024
        $region52: #{tpu_custom_call.1} parent=47 // pred_fallthru
          _
        %s269 = sand.u32 %s32, 1
        %s270 = scalar_lea.sflag [#allocation3], %s269
        %s271 = sand.u32 %s32, 1
        %s272 = smul.addr %s271, 64
        %s273 = scalar_lea.vmem [#allocation2], %s272
        %p274 = pneg %p45
        %p275 = pneg %p42
        %p276 = pneg %p66
        %p277 = pneg %p63
        %p278 = pneg %p87
        %p279 = pneg %p84
        %p280 = pneg %p108
        %p281 = pneg %p105
        %p282 = pneg %p129
        %p283 = pneg %p126
        %p284 = pneg %p150
        %p285 = pneg %p147
        %p286 = pneg %p171
        %p287 = pneg %p168
        %p288 = pneg %p197
        %p289 = pneg %p194
        %s290 = sand.u32 %s184, 1
        %s291 = scalar_lea.sflag [#allocation4], %s290
        %s292 = sand.u32 %s184, 1
        %s293 = smul.addr %s292, 128
        %s294 = scalar_lea.vmem [#allocation5], %s293
        %s295 = smul.u32 8, %s24
        %s296 = smul.u32 8, %s24
        %v297 = vld [vmem:[%s264] sm:$0xff]
        %v298 = vld [vmem:[%s264 + $0x8] sm:$0xff]
        %v299 = vld [vmem:[%s264 + $0x10] sm:$0xff]
        %v300 = vld [vmem:[%s264 + $0x18] sm:$0xff]
        %v301 = vld [vmem:[%s264 + $0x20] sm:$0xff]
        %v302 = vld [vmem:[%s264 + $0x28] sm:$0xff]
        %v303 = vld [vmem:[%s264 + $0x30] sm:$0xff]
        %v304 = vld [vmem:[%s264 + $0x38] sm:$0xff]
        %v305 = vld [vmem:[%s2] sm:$0xff]
        %v306 = vld [vmem:[%s2 + $0x8] sm:$0xff]
        %v307 = vlaneseq
        %v308 = vand.u32 %v307, 127
        %v309 = vadd.s32 %v308, 128
        %v310 = vadd.s32 %v308, 256
        %v311 = vadd.s32 %v308, 384
        %v312 = vadd.s32 %v308, 512
        %v313 = vadd.s32 %v308, 640
        %v314 = vadd.s32 %v308, 768
        %v315 = vadd.s32 %v308, 896
        %vm316 = vcmp.ge.s32.totalorder %v308, 128
        %vm317 = vcmp.ge.s32.totalorder %v309, 128
        %vm318 = vcmp.ge.s32.totalorder %v310, 128
        %vm319 = vcmp.ge.s32.totalorder %v311, 128
        %vm320 = vcmp.ge.s32.totalorder %v312, 128
        %vm321 = vcmp.ge.s32.totalorder %v313, 128
        %vm322 = vcmp.ge.s32.totalorder %v314, 128
        %vm323 = vcmp.ge.s32.totalorder %v315, 128
        %v324 = vsel %vm316, 1, 0
        %v325 = vsel %vm317, 1, 0
        %v326 = vsel %vm318, 1, 0
        %v327 = vsel %vm319, 1, 0
        %v328 = vsel %vm320, 1, 0
        %v329 = vsel %vm321, 1, 0
        %v330 = vsel %vm322, 1, 0
        %v331 = vsel %vm323, 1, 0
        %vm332 = vcmp.ge.s32.totalorder %v308, 256
        %vm333 = vcmp.ge.s32.totalorder %v309, 256
        %vm334 = vcmp.ge.s32.totalorder %v310, 256
        %vm335 = vcmp.ge.s32.totalorder %v311, 256
        %vm336 = vcmp.ge.s32.totalorder %v312, 256
        %vm337 = vcmp.ge.s32.totalorder %v313, 256
        %vm338 = vcmp.ge.s32.totalorder %v314, 256
        %vm339 = vcmp.ge.s32.totalorder %v315, 256
        %v340 = vsel %vm332, 1, 0
        %v341 = vsel %vm333, 1, 0
        %v342 = vsel %vm334, 1, 0
        %v343 = vsel %vm335, 1, 0
        %v344 = vsel %vm336, 1, 0
        %v345 = vsel %vm337, 1, 0
        %v346 = vsel %vm338, 1, 0
        %v347 = vsel %vm339, 1, 0
        %v348 = vadd.s32 %v324, %v340
        %v349 = vadd.s32 %v325, %v341
        %v350 = vadd.s32 %v326, %v342
        %v351 = vadd.s32 %v327, %v343
        %v352 = vadd.s32 %v328, %v344
        %v353 = vadd.s32 %v329, %v345
        %v354 = vadd.s32 %v330, %v346
        %v355 = vadd.s32 %v331, %v347
        %vm356 = vcmp.ge.s32.totalorder %v308, 384
        %vm357 = vcmp.ge.s32.totalorder %v309, 384
        %vm358 = vcmp.ge.s32.totalorder %v310, 384
        %vm359 = vcmp.ge.s32.totalorder %v311, 384
        %vm360 = vcmp.ge.s32.totalorder %v312, 384
        %vm361 = vcmp.ge.s32.totalorder %v313, 384
        %vm362 = vcmp.ge.s32.totalorder %v314, 384
        %vm363 = vcmp.ge.s32.totalorder %v315, 384
        %v364 = vsel %vm356, 1, 0
        %v365 = vsel %vm357, 1, 0
        %v366 = vsel %vm358, 1, 0
        %v367 = vsel %vm359, 1, 0
        %v368 = vsel %vm360, 1, 0
        %v369 = vsel %vm361, 1, 0
        %v370 = vsel %vm362, 1, 0
        %v371 = vsel %vm363, 1, 0
        %v372 = vadd.s32 %v348, %v364
        %v373 = vadd.s32 %v349, %v365
        %v374 = vadd.s32 %v350, %v366
        %v375 = vadd.s32 %v351, %v367
        %v376 = vadd.s32 %v352, %v368
        %v377 = vadd.s32 %v353, %v369
        %v378 = vadd.s32 %v354, %v370
        %v379 = vadd.s32 %v355, %v371
        %vm380 = vcmp.ge.s32.totalorder %v308, 512
        %vm381 = vcmp.ge.s32.totalorder %v309, 512
        %vm382 = vcmp.ge.s32.totalorder %v310, 512
        %vm383 = vcmp.ge.s32.totalorder %v311, 512
        %vm384 = vcmp.ge.s32.totalorder %v312, 512
        %vm385 = vcmp.ge.s32.totalorder %v313, 512
        %vm386 = vcmp.ge.s32.totalorder %v314, 512
        %vm387 = vcmp.ge.s32.totalorder %v315, 512
        %v388 = vsel %vm380, 1, 0
        %v389 = vsel %vm381, 1, 0
        %v390 = vsel %vm382, 1, 0
        %v391 = vsel %vm383, 1, 0
        %v392 = vsel %vm384, 1, 0
        %v393 = vsel %vm385, 1, 0
        %v394 = vsel %vm386, 1, 0
        %v395 = vsel %vm387, 1, 0
        %v396 = vadd.s32 %v372, %v388
        %v397 = vadd.s32 %v373, %v389
        %v398 = vadd.s32 %v374, %v390
        %v399 = vadd.s32 %v375, %v391
        %v400 = vadd.s32 %v376, %v392
        %v401 = vadd.s32 %v377, %v393
        %v402 = vadd.s32 %v378, %v394
        %v403 = vadd.s32 %v379, %v395
        %vm404 = vcmp.ge.s32.totalorder %v308, 640
        %vm405 = vcmp.ge.s32.totalorder %v309, 640
        %vm406 = vcmp.ge.s32.totalorder %v310, 640
        %vm407 = vcmp.ge.s32.totalorder %v311, 640
        %vm408 = vcmp.ge.s32.totalorder %v312, 640
        %vm409 = vcmp.ge.s32.totalorder %v313, 640
        %vm410 = vcmp.ge.s32.totalorder %v314, 640
        %vm411 = vcmp.ge.s32.totalorder %v315, 640
        %v412 = vsel %vm404, 1, 0
        %v413 = vsel %vm405, 1, 0
        %v414 = vsel %vm406, 1, 0
        %v415 = vsel %vm407, 1, 0
        %v416 = vsel %vm408, 1, 0
        %v417 = vsel %vm409, 1, 0
        %v418 = vsel %vm410, 1, 0
        %v419 = vsel %vm411, 1, 0
        %v420 = vadd.s32 %v396, %v412
        %v421 = vadd.s32 %v397, %v413
        %v422 = vadd.s32 %v398, %v414
        %v423 = vadd.s32 %v399, %v415
        %v424 = vadd.s32 %v400, %v416
        %v425 = vadd.s32 %v401, %v417
        %v426 = vadd.s32 %v402, %v418
        %v427 = vadd.s32 %v403, %v419
        %vm428 = vcmp.ge.s32.totalorder %v308, 768
        %vm429 = vcmp.ge.s32.totalorder %v309, 768
        %vm430 = vcmp.ge.s32.totalorder %v310, 768
        %vm431 = vcmp.ge.s32.totalorder %v311, 768
        %vm432 = vcmp.ge.s32.totalorder %v312, 768
        %vm433 = vcmp.ge.s32.totalorder %v313, 768
        %vm434 = vcmp.ge.s32.totalorder %v314, 768
        %vm435 = vcmp.ge.s32.totalorder %v315, 768
        %v436 = vsel %vm428, 1, 0
        %v437 = vsel %vm429, 1, 0
        %v438 = vsel %vm430, 1, 0
        %v439 = vsel %vm431, 1, 0
        %v440 = vsel %vm432, 1, 0
        %v441 = vsel %vm433, 1, 0
        %v442 = vsel %vm434, 1, 0
        %v443 = vsel %vm435, 1, 0
        %v444 = vadd.s32 %v420, %v436
        %v445 = vadd.s32 %v421, %v437
        %v446 = vadd.s32 %v422, %v438
        %v447 = vadd.s32 %v423, %v439
        %v448 = vadd.s32 %v424, %v440
        %v449 = vadd.s32 %v425, %v441
        %v450 = vadd.s32 %v426, %v442
        %v451 = vadd.s32 %v427, %v443
        %vm452 = vcmp.ge.s32.totalorder %v308, 896
        %vm453 = vcmp.ge.s32.totalorder %v309, 896
        %vm454 = vcmp.ge.s32.totalorder %v310, 896
        %vm455 = vcmp.ge.s32.totalorder %v311, 896
        %vm456 = vcmp.ge.s32.totalorder %v312, 896
        %vm457 = vcmp.ge.s32.totalorder %v313, 896
        %vm458 = vcmp.ge.s32.totalorder %v314, 896
        %vm459 = vcmp.ge.s32.totalorder %v315, 896
        %v460 = vsel %vm452, 1, 0
        %v461 = vsel %vm453, 1, 0
        %v462 = vsel %vm454, 1, 0
        %v463 = vsel %vm455, 1, 0
        %v464 = vsel %vm456, 1, 0
        %v465 = vsel %vm457, 1, 0
        %v466 = vsel %vm458, 1, 0
        %v467 = vsel %vm459, 1, 0
        %v468 = vadd.s32 %v444, %v460
        %v469 = vadd.s32 %v445, %v461
        %v470 = vadd.s32 %v446, %v462
        %v471 = vadd.s32 %v447, %v463
        %v472 = vadd.s32 %v448, %v464
        %v473 = vadd.s32 %v449, %v465
        %v474 = vadd.s32 %v450, %v466
        %v475 = vadd.s32 %v451, %v467
        %v476 = vmul.u32 %v468, 128
        %v477 = vmul.u32 %v469, 128
        %v478 = vmul.u32 %v470, 128
        %v479 = vmul.u32 %v471, 128
        %v480 = vmul.u32 %v472, 128
        %v481 = vmul.u32 %v473, 128
        %v482 = vmul.u32 %v474, 128
        %v483 = vmul.u32 %v475, 128
        %v484 = vsub.s32 %v308, %v476
        %v485 = vsub.s32 %v309, %v477
        %v486 = vsub.s32 %v310, %v478
        %v487 = vsub.s32 %v311, %v479
        %v488 = vsub.s32 %v312, %v480
        %v489 = vsub.s32 %v313, %v481
        %v490 = vsub.s32 %v314, %v482
        %v491 = vsub.s32 %v315, %v483
        %vm492 = vcmp.ge.s32.totalorder %v484, 2
        %vm493 = vcmp.ge.s32.totalorder %v485, 2
        %vm494 = vcmp.ge.s32.totalorder %v486, 2
        %vm495 = vcmp.ge.s32.totalorder %v487, 2
        %vm496 = vcmp.ge.s32.totalorder %v488, 2
        %vm497 = vcmp.ge.s32.totalorder %v489, 2
        %vm498 = vcmp.ge.s32.totalorder %v490, 2
        %vm499 = vcmp.ge.s32.totalorder %v491, 2
        %vm500 = vcmp.lt.s32.totalorder %v484, 126
        %vm501 = vcmp.lt.s32.totalorder %v485, 126
        %vm502 = vcmp.lt.s32.totalorder %v486, 126
        %vm503 = vcmp.lt.s32.totalorder %v487, 126
        %vm504 = vcmp.lt.s32.totalorder %v488, 126
        %vm505 = vcmp.lt.s32.totalorder %v489, 126
        %vm506 = vcmp.lt.s32.totalorder %v490, 126
        %vm507 = vcmp.lt.s32.totalorder %v491, 126
        %v508 = vrot.slane %v297, 4
        %v509 = vadd.f32 %v297, %v508
        %v510 = vrot.slane %v509, 2
        %v511 = vadd.f32 %v509, %v510
        %v512 = vrot.slane %v511, 1
        %v513 = vadd.f32 %v511, %v512
        %v514 = vrot.slane %v298, 4
        %v515 = vadd.f32 %v298, %v514
        %v516 = vrot.slane %v515, 2
        %v517 = vadd.f32 %v515, %v516
        %v518 = vrot.slane %v517, 1
        %v519 = vadd.f32 %v517, %v518
        %v520 = vrot.slane %v299, 4
        %v521 = vadd.f32 %v299, %v520
        %v522 = vrot.slane %v521, 2
        %v523 = vadd.f32 %v521, %v522
        %v524 = vrot.slane %v523, 1
        %v525 = vadd.f32 %v523, %v524
        %v526 = vrot.slane %v300, 4
        %v527 = vadd.f32 %v300, %v526
        %v528 = vrot.slane %v527, 2
        %v529 = vadd.f32 %v527, %v528
        %v530 = vrot.slane %v529, 1
        %v531 = vadd.f32 %v529, %v530
        %v532 = vrot.slane %v301, 4
        %v533 = vadd.f32 %v301, %v532
        %v534 = vrot.slane %v533, 2
        %v535 = vadd.f32 %v533, %v534
        %v536 = vrot.slane %v535, 1
        %v537 = vadd.f32 %v535, %v536
        %v538 = vrot.slane %v302, 4
        %v539 = vadd.f32 %v302, %v538
        %v540 = vrot.slane %v539, 2
        %v541 = vadd.f32 %v539, %v540
        %v542 = vrot.slane %v541, 1
        %v543 = vadd.f32 %v541, %v542
        %v544 = vrot.slane %v303, 4
        %v545 = vadd.f32 %v303, %v544
        %v546 = vrot.slane %v545, 2
        %v547 = vadd.f32 %v545, %v546
        %v548 = vrot.slane %v547, 1
        %v549 = vadd.f32 %v547, %v548
        %v550 = vrot.slane %v304, 4
        %v551 = vadd.f32 %v304, %v550
        %v552 = vrot.slane %v551, 2
        %v553 = vadd.f32 %v551, %v552
        %v554 = vrot.slane %v553, 1
        %v555 = vadd.f32 %v553, %v554
        %v556 = vrcp.pop 8.0
        %v557 = vmul.f32 %v513, %v556
        %v558 = vmul.f32 %v519, %v556
        %v559 = vmul.f32 %v525, %v556
        %v560 = vmul.f32 %v531, %v556
        %v561 = vmul.f32 %v537, %v556
        %v562 = vmul.f32 %v543, %v556
        %v563 = vmul.f32 %v549, %v556
        %v564 = vmul.f32 %v555, %v556
        %v565 = vsub.f32 %v297, %v557
        %v566 = vsub.f32 %v298, %v558
        %v567 = vsub.f32 %v299, %v559
        %v568 = vsub.f32 %v300, %v560
        %v569 = vsub.f32 %v301, %v561
        %v570 = vsub.f32 %v302, %v562
        %v571 = vsub.f32 %v303, %v563
        %v572 = vsub.f32 %v304, %v564
        %v573 = vmul.f32 %v565, %v565
        %v574 = vmul.f32 %v566, %v566
        %v575 = vmul.f32 %v567, %v567
        %v576 = vmul.f32 %v568, %v568
        %v577 = vmul.f32 %v569, %v569
        %v578 = vmul.f32 %v570, %v570
        %v579 = vmul.f32 %v571, %v571
        %v580 = vmul.f32 %v572, %v572
        %v581 = vrot.slane %v573, 4
        %v582 = vadd.f32 %v573, %v581
        %v583 = vrot.slane %v582, 2
        %v584 = vadd.f32 %v582, %v583
        %v585 = vrot.slane %v584, 1
        %v586 = vadd.f32 %v584, %v585
        %v587 = vrot.slane %v574, 4
        %v588 = vadd.f32 %v574, %v587
        %v589 = vrot.slane %v588, 2
        %v590 = vadd.f32 %v588, %v589
        %v591 = vrot.slane %v590, 1
        %v592 = vadd.f32 %v590, %v591
        %v593 = vrot.slane %v575, 4
        %v594 = vadd.f32 %v575, %v593
        %v595 = vrot.slane %v594, 2
        %v596 = vadd.f32 %v594, %v595
        %v597 = vrot.slane %v596, 1
        %v598 = vadd.f32 %v596, %v597
        %v599 = vrot.slane %v576, 4
        %v600 = vadd.f32 %v576, %v599
        %v601 = vrot.slane %v600, 2
        %v602 = vadd.f32 %v600, %v601
        %v603 = vrot.slane %v602, 1
        %v604 = vadd.f32 %v602, %v603
        %v605 = vrot.slane %v577, 4
        %v606 = vadd.f32 %v577, %v605
        %v607 = vrot.slane %v606, 2
        %v608 = vadd.f32 %v606, %v607
        %v609 = vrot.slane %v608, 1
        %v610 = vadd.f32 %v608, %v609
        %v611 = vrot.slane %v578, 4
        %v612 = vadd.f32 %v578, %v611
        %v613 = vrot.slane %v612, 2
        %v614 = vadd.f32 %v612, %v613
        %v615 = vrot.slane %v614, 1
        %v616 = vadd.f32 %v614, %v615
        %v617 = vrot.slane %v579, 4
        %v618 = vadd.f32 %v579, %v617
        %v619 = vrot.slane %v618, 2
        %v620 = vadd.f32 %v618, %v619
        %v621 = vrot.slane %v620, 1
        %v622 = vadd.f32 %v620, %v621
        %v623 = vrot.slane %v580, 4
        %v624 = vadd.f32 %v580, %v623
        %v625 = vrot.slane %v624, 2
        %v626 = vadd.f32 %v624, %v625
        %v627 = vrot.slane %v626, 1
        %v628 = vadd.f32 %v626, %v627
        %v629 = vmul.f32 %v586, %v556
        %v630 = vmul.f32 %v592, %v556
        %v631 = vmul.f32 %v598, %v556
        %v632 = vmul.f32 %v604, %v556
        %v633 = vmul.f32 %v610, %v556
        %v634 = vmul.f32 %v616, %v556
        %v635 = vmul.f32 %v622, %v556
        %v636 = vmul.f32 %v628, %v556
        %v637 = vadd.f32 %v629, 1e-05
        %v638 = vadd.f32 %v630, 1e-05
        %v639 = vadd.f32 %v631, 1e-05
        %v640 = vadd.f32 %v632, 1e-05
        %v641 = vadd.f32 %v633, 1e-05
        %v642 = vadd.f32 %v634, 1e-05
        %v643 = vadd.f32 %v635, 1e-05
        %v644 = vadd.f32 %v636, 1e-05
        %v645 = vrsqrt.pop %v637
        %v646 = vrsqrt.pop %v638
        %v647 = vrsqrt.pop %v639
        %v648 = vrsqrt.pop %v640
        %v649 = vrsqrt.pop %v641
        %v650 = vrsqrt.pop %v642
        %v651 = vrsqrt.pop %v643
        %v652 = vrsqrt.pop %v644
        %v653 = vmul.f32 %v565, %v645
        %v654 = vmul.f32 %v566, %v646
        %v655 = vmul.f32 %v567, %v647
        %v656 = vmul.f32 %v568, %v648
        %v657 = vmul.f32 %v569, %v649
        %v658 = vmul.f32 %v570, %v650
        %v659 = vmul.f32 %v571, %v651
        %v660 = vmul.f32 %v572, %v652
        %662 = vset.pattern.permute.xlu0 0
        %663 = vperm.xlu0 %662, %v305
        %v664 = vpop.permute.xlu0 %663
        %v666 = vmul.f32 %v653, %v664
        %v667 = vmul.f32 %v654, %v664
        %v668 = vmul.f32 %v655, %v664
        %v669 = vmul.f32 %v656, %v664
        %v670 = vmul.f32 %v657, %v664
        %v671 = vmul.f32 %v658, %v664
        %v672 = vmul.f32 %v659, %v664
        %v673 = vmul.f32 %v660, %v664
        %674 = vset.pattern.permute.xlu0 1
        %675 = vperm.xlu0 %674, %v305
        %v676 = vpop.permute.xlu0 %675
        %v678 = vadd.f32 %v666, %v676
        %v679 = vadd.f32 %v667, %v676
        %v680 = vadd.f32 %v668, %v676
        %v681 = vadd.f32 %v669, %v676
        %v682 = vadd.f32 %v670, %v676
        %v683 = vadd.f32 %v671, %v676
        %v684 = vadd.f32 %v672, %v676
        %v685 = vadd.f32 %v673, %v676
        %v686 = vld [vmem:[%s3] sm:$0xff]
        %v687 = vld [vmem:[%s1] sm:$0xff]
        %v688 = vld [vmem:[%s1 + $0x8] sm:$0xff]
        %v689 = vld [vmem:[%s1 + $0x10] sm:$0xff]
        %v690 = vld [vmem:[%s1 + $0x18] sm:$0xff]
        %691 = vset.pattern.permute.xlu0 2
        %692 = vperm.xlu0 %691, %v305
        %v693 = vpop.permute.xlu0 %692
        %vm695 = vcmask 261120
        %v697 = vsel %vm695, %v686, 0
        %699 = vmatprep.subr.mxu0 0.0
        %700 = vmatpush1.msra.mxu0 0.0
        %701 = vmatprep.subr.mxu0 0.0
        %702 = vmatpush1.msra.mxu0 0.0
        %703 = vmatprep.subr.mxu0 0.0
        %704 = vmatpush1.msra.mxu0 0.0
        %705 = vmatprep.subr.mxu0 0.0
        %706 = vmatpush1.msra.mxu0 0.0
        %707 = vmatprep.subr.mxu0 0.0
        %708 = vmatpush1.msra.mxu0 0.0
        %709 = vmatprep.subr.mxu0 0.0
        %710 = vmatpush1.msra.mxu0 0.0
        %711 = vmatprep.subr.mxu0 0.0
        %712 = vmatpush1.msra.mxu0 0.0
        %713 = vmatprep.subr.mxu0 0.0
        %714 = vmatpush1.msra.mxu0 0.0
        %715 = vmatprep.subr.mxu0 0.0
        %716 = vmatpush1.msra.mxu0 0.0
        %717 = vmatprep.subr.mxu0 0.0
        %718 = vmatpush1.msra.mxu0 0.0
        %719 = vmatprep.subr.mxu0 0.0
        %720 = vmatpush1.msra.mxu0 0.0
        %721 = vmatprep.subr.mxu0 0.0
        %722 = vmatpush1.msra.mxu0 0.0
        %723 = vmatprep.subr.mxu0 0.0
        %724 = vmatpush1.msra.mxu0 %v690
        %725 = vmatprep.subr.mxu0 0.0
        %726 = vmatpush1.msra.mxu0 %v689
        %727 = vmatprep.subr.mxu0 0.0
        %728 = vmatpush1.msra.mxu0 %v688
        %729 = vmatprep.subr.mxu0 0.0
        %730 = vmatpush1.msra.mxu0 %v687
        %731 = vmatprep.subr.mxu0 0.0
        %732 = vmatpush2.msra.mxu0 0.0
        %733 = vmatprep.subr.mxu0 0.0
        %734 = vmatpush2.msra.mxu0 0.0
        %735 = vmatprep.subr.mxu0 0.0
        %736 = vmatpush2.msra.mxu0 0.0
        %737 = vmatprep.subr.mxu0 0.0
        %738 = vmatpush2.msra.mxu0 0.0
        %739 = vmatprep.subr.mxu0 0.0
        %740 = vmatpush2.msra.mxu0 0.0
        %741 = vmatprep.subr.mxu0 0.0
        %742 = vmatpush2.msra.mxu0 0.0
        %743 = vmatprep.subr.mxu0 0.0
        %744 = vmatpush2.msra.mxu0 0.0
        %745 = vmatprep.subr.mxu0 0.0
        %746 = vmatpush2.msra.mxu0 0.0
        %747 = vmatprep.subr.mxu0 0.0
        %748 = vmatpush2.msra.mxu0 0.0
        %749 = vmatprep.subr.mxu0 0.0
        %750 = vmatpush2.msra.mxu0 0.0
        %751 = vmatprep.subr.mxu0 0.0
        %752 = vmatpush2.msra.mxu0 0.0
        %753 = vmatprep.subr.mxu0 0.0
        %754 = vmatpush2.msra.mxu0 0.0
        %755 = vmatprep.subr.mxu0 0.0
        %756 = vmatpush2.msra.mxu0 0.0
        %757 = vmatprep.subr.mxu0 0.0
        %758 = vmatpush2.msra.mxu0 0.0
        %759 = vmatprep.subr.mxu0 0.0
        %760 = vmatpush2.msra.mxu0 0.0
        %761 = vmatprep.subr.mxu0 0.0
        %762 = vmatpush2.msra.mxu0 0.0
        %763 = vmatprep.mubr.f32.mxu0 0.0
        %764 = vmatmul.mubr.f32.gmra.mxu0 %v697
        %v765 = vpop.f32.mrf.mxu0
        %v766 = vadd.f32 %v693, %v765
        %v767 = vpop.f32.mrf.mxu0
        %768 = vdwg.mxu0
        %v769 = vlaneseq
        %v770 = vshrl.u32 %v769, 7
        %v771 = vadd.s32 %v770, 8
        %s772 = smul.u32 %s24, 8
        %v773 = vstv %s772
        %v774 = vadd.s32 %v773, %v468
        %v775 = vadd.s32 %v773, %v469
        %v776 = vadd.s32 %v773, %v470
        %v777 = vadd.s32 %v773, %v471
        %v778 = vadd.s32 %v773, %v472
        %v779 = vadd.s32 %v773, %v473
        %v780 = vadd.s32 %v773, %v474
        %v781 = vadd.s32 %v773, %v475
        %vm782 = vcmp.eq.s32.totalorder %v770, %v774
        %vm783 = vcmp.eq.s32.totalorder %v770, %v775
        %vm784 = vcmp.eq.s32.totalorder %v770, %v776
        %vm785 = vcmp.eq.s32.totalorder %v770, %v777
        %vm786 = vcmp.eq.s32.totalorder %v770, %v778
        %vm787 = vcmp.eq.s32.totalorder %v770, %v779
        %vm788 = vcmp.eq.s32.totalorder %v770, %v780
        %vm789 = vcmp.eq.s32.totalorder %v770, %v781
        %vm790 = vcmp.eq.s32.totalorder %v771, %v774
        %vm791 = vcmp.eq.s32.totalorder %v771, %v775
        %vm792 = vcmp.eq.s32.totalorder %v771, %v776
        %vm793 = vcmp.eq.s32.totalorder %v771, %v777
        %vm794 = vcmp.eq.s32.totalorder %v771, %v778
        %vm795 = vcmp.eq.s32.totalorder %v771, %v779
        %vm796 = vcmp.eq.s32.totalorder %v771, %v780
        %vm797 = vcmp.eq.s32.totalorder %v771, %v781
        %v798 = vsel %vm782, 1, 0
        %v799 = vsel %vm783, 1, 0
        %v800 = vsel %vm784, 1, 0
        %v801 = vsel %vm785, 1, 0
        %v802 = vsel %vm786, 1, 0
        %v803 = vsel %vm787, 1, 0
        %v804 = vsel %vm788, 1, 0
        %v805 = vsel %vm789, 1, 0
        %v806 = vsel %vm790, 1, 0
        %v807 = vsel %vm791, 1, 0
        %v808 = vsel %vm792, 1, 0
        %v809 = vsel %vm793, 1, 0
        %v810 = vsel %vm794, 1, 0
        %v811 = vsel %vm795, 1, 0
        %v812 = vsel %vm796, 1, 0
        %v813 = vsel %vm797, 1, 0
        %v814 = vcvt.s32.f32 %v798
        %v815 = vcvt.s32.f32 %v799
        %v816 = vcvt.s32.f32 %v800
        %v817 = vcvt.s32.f32 %v801
        %v818 = vcvt.s32.f32 %v802
        %v819 = vcvt.s32.f32 %v803
        %v820 = vcvt.s32.f32 %v804
        %v821 = vcvt.s32.f32 %v805
        %v822 = vcvt.s32.f32 %v806
        %v823 = vcvt.s32.f32 %v807
        %v824 = vcvt.s32.f32 %v808
        %v825 = vcvt.s32.f32 %v809
        %v826 = vcvt.s32.f32 %v810
        %v827 = vcvt.s32.f32 %v811
        %v828 = vcvt.s32.f32 %v812
        %v829 = vcvt.s32.f32 %v813
        %vm830 = vcmask 130048
        %v832 = vsel %vm830, %v766, 0
        %834 = vmatprep.subr.mxu0 0.0
        %835 = vmatpush1.msra.mxu0 0.0
        %836 = vmatprep.subr.mxu0 0.0
        %837 = vmatpush1.msra.mxu0 0.0
        %838 = vmatprep.subr.mxu0 0.0
        %839 = vmatpush1.msra.mxu0 0.0
        %840 = vmatprep.subr.mxu0 0.0
        %841 = vmatpush1.msra.mxu0 0.0
        %842 = vmatprep.subr.mxu0 0.0
        %843 = vmatpush1.msra.mxu0 0.0
        %844 = vmatprep.subr.mxu0 0.0
        %845 = vmatpush1.msra.mxu0 0.0
        %846 = vmatprep.subr.mxu0 0.0
        %847 = vmatpush1.msra.mxu0 0.0
        %848 = vmatprep.subr.mxu0 0.0
        %849 = vmatpush1.msra.mxu0 0.0
        %850 = vmatprep.subr.mxu0 0.0
        %851 = vmatpush1.msra.mxu0 0.0
        %852 = vmatprep.subr.mxu0 0.0
        %853 = vmatpush1.msra.mxu0 0.0
        %854 = vmatprep.subr.mxu0 0.0
        %855 = vmatpush1.msra.mxu0 0.0
        %856 = vmatprep.subr.mxu0 0.0
        %857 = vmatpush1.msra.mxu0 0.0
        %858 = vmatprep.subr.mxu0 0.0
        %859 = vmatpush1.msra.mxu0 0.0
        %860 = vmatprep.subr.mxu0 0.0
        %861 = vmatpush1.msra.mxu0 0.0
        %862 = vmatprep.subr.mxu0 %v823
        %863 = vmatpush1.msra.mxu0 %v822
        %864 = vmatprep.subr.mxu0 %v815
        %865 = vmatpush1.msra.mxu0 %v814
        %866 = vmatprep.subr.mxu0 0.0
        %867 = vmatpush2.msra.mxu0 0.0
        %868 = vmatprep.subr.mxu0 0.0
        %869 = vmatpush2.msra.mxu0 0.0
        %870 = vmatprep.subr.mxu0 0.0
        %871 = vmatpush2.msra.mxu0 0.0
        %872 = vmatprep.subr.mxu0 0.0
        %873 = vmatpush2.msra.mxu0 0.0
        %874 = vmatprep.subr.mxu0 0.0
        %875 = vmatpush2.msra.mxu0 0.0
        %876 = vmatprep.subr.mxu0 0.0
        %877 = vmatpush2.msra.mxu0 0.0
        %878 = vmatprep.subr.mxu0 0.0
        %879 = vmatpush2.msra.mxu0 0.0
        %880 = vmatprep.subr.mxu0 0.0
        %881 = vmatpush2.msra.mxu0 0.0
        %882 = vmatprep.subr.mxu0 0.0
        %883 = vmatpush2.msra.mxu0 0.0
        %884 = vmatprep.subr.mxu0 0.0
        %885 = vmatpush2.msra.mxu0 0.0
        %886 = vmatprep.subr.mxu0 0.0
        %887 = vmatpush2.msra.mxu0 0.0
        %888 = vmatprep.subr.mxu0 0.0
        %889 = vmatpush2.msra.mxu0 0.0
        %890 = vmatprep.subr.mxu0 0.0
        %891 = vmatpush2.msra.mxu0 0.0
        %892 = vmatprep.subr.mxu0 0.0
        %893 = vmatpush2.msra.mxu0 0.0
        %894 = vmatprep.subr.mxu0 0.0
        %895 = vmatpush2.msra.mxu0 0.0
        %896 = vmatprep.subr.mxu0 0.0
        %897 = vmatpush2.msra.mxu0 0.0
        %898 = vmatprep.mubr.f32.mxu0 0.0
        %899 = vmatmul.mubr.f32.gmra.mxu0 %v832
        %v900 = vpop.f32.mrf.mxu0
        %v901 = vadd.f32 0.0, %v900
        %v902 = vpop.f32.mrf.mxu0
        %v903 = vadd.f32 0.0, %v902
        %904 = vdwg.mxu0
        %905 = vmatprep.subr.mxu0 0.0
        %906 = vmatpush1.msra.mxu0 0.0
        %907 = vmatprep.subr.mxu0 0.0
        %908 = vmatpush1.msra.mxu0 0.0
        %909 = vmatprep.subr.mxu0 0.0
        %910 = vmatpush1.msra.mxu0 0.0
        %911 = vmatprep.subr.mxu0 0.0
        %912 = vmatpush1.msra.mxu0 0.0
        %913 = vmatprep.subr.mxu0 0.0
        %914 = vmatpush1.msra.mxu0 0.0
        %915 = vmatprep.subr.mxu0 0.0
        %916 = vmatpush1.msra.mxu0 0.0
        %917 = vmatprep.subr.mxu0 0.0
        %918 = vmatpush1.msra.mxu0 0.0
        %919 = vmatprep.subr.mxu0 0.0
        %920 = vmatpush1.msra.mxu0 0.0
        %921 = vmatprep.subr.mxu0 0.0
        %922 = vmatpush1.msra.mxu0 0.0
        %923 = vmatprep.subr.mxu0 0.0
        %924 = vmatpush1.msra.mxu0 0.0
        %925 = vmatprep.subr.mxu0 0.0
        %926 = vmatpush1.msra.mxu0 0.0
        %927 = vmatprep.subr.mxu0 0.0
        %928 = vmatpush1.msra.mxu0 0.0
        %929 = vmatprep.subr.mxu0 0.0
        %930 = vmatpush1.msra.mxu0 0.0
        %931 = vmatprep.subr.mxu0 0.0
        %932 = vmatpush1.msra.mxu0 0.0
        %933 = vmatprep.subr.mxu0 %v825
        %934 = vmatpush1.msra.mxu0 %v824
        %935 = vmatprep.subr.mxu0 %v817
        %936 = vmatpush1.msra.mxu0 %v816
        %937 = vmatprep.subr.mxu0 0.0
        %938 = vmatpush2.msra.mxu0 0.0
        %939 = vmatprep.subr.mxu0 0.0
        %940 = vmatpush2.msra.mxu0 0.0
        %941 = vmatprep.subr.mxu0 0.0
        %942 = vmatpush2.msra.mxu0 0.0
        %943 = vmatprep.subr.mxu0 0.0
        %944 = vmatpush2.msra.mxu0 0.0
        %945 = vmatprep.subr.mxu0 0.0
        %946 = vmatpush2.msra.mxu0 0.0
        %947 = vmatprep.subr.mxu0 0.0
        %948 = vmatpush2.msra.mxu0 0.0
        %949 = vmatprep.subr.mxu0 0.0
        %950 = vmatpush2.msra.mxu0 0.0
        %951 = vmatprep.subr.mxu0 0.0
        %952 = vmatpush2.msra.mxu0 0.0
        %953 = vmatprep.subr.mxu0 0.0
        %954 = vmatpush2.msra.mxu0 0.0
        %955 = vmatprep.subr.mxu0 0.0
        %956 = vmatpush2.msra.mxu0 0.0
        %957 = vmatprep.subr.mxu0 0.0
        %958 = vmatpush2.msra.mxu0 0.0
        %959 = vmatprep.subr.mxu0 0.0
        %960 = vmatpush2.msra.mxu0 0.0
        %961 = vmatprep.subr.mxu0 0.0
        %962 = vmatpush2.msra.mxu0 0.0
        %963 = vmatprep.subr.mxu0 0.0
        %964 = vmatpush2.msra.mxu0 0.0
        %965 = vmatprep.subr.mxu0 0.0
        %966 = vmatpush2.msra.mxu0 0.0
        %967 = vmatprep.subr.mxu0 0.0
        %968 = vmatpush2.msra.mxu0 0.0
        %969 = vmatprep.mubr.f32.mxu0 0.0
        %970 = vmatmul.mubr.f32.gmra.mxu0 %v832
        %v971 = vpop.f32.mrf.mxu0
        %v972 = vadd.f32 0.0, %v971
        %v973 = vpop.f32.mrf.mxu0
        %v974 = vadd.f32 0.0, %v973
        %975 = vdwg.mxu0
        %976 = vmatprep.subr.mxu0 0.0
        %977 = vmatpush1.msra.mxu0 0.0
        %978 = vmatprep.subr.mxu0 0.0
        %979 = vmatpush1.msra.mxu0 0.0
        %980 = vmatprep.subr.mxu0 0.0
        %981 = vmatpush1.msra.mxu0 0.0
        %982 = vmatprep.subr.mxu0 0.0
        %983 = vmatpush1.msra.mxu0 0.0
        %984 = vmatprep.subr.mxu0 0.0
        %985 = vmatpush1.msra.mxu0 0.0
        %986 = vmatprep.subr.mxu0 0.0
        %987 = vmatpush1.msra.mxu0 0.0
        %988 = vmatprep.subr.mxu0 0.0
        %989 = vmatpush1.msra.mxu0 0.0
        %990 = vmatprep.subr.mxu0 0.0
        %991 = vmatpush1.msra.mxu0 0.0
        %992 = vmatprep.subr.mxu0 0.0
        %993 = vmatpush1.msra.mxu0 0.0
        %994 = vmatprep.subr.mxu0 0.0
        %995 = vmatpush1.msra.mxu0 0.0
        %996 = vmatprep.subr.mxu0 0.0
        %997 = vmatpush1.msra.mxu0 0.0
        %998 = vmatprep.subr.mxu0 0.0
        %999 = vmatpush1.msra.mxu0 0.0
        %1000 = vmatprep.subr.mxu0 0.0
        %1001 = vmatpush1.msra.mxu0 0.0
        %1002 = vmatprep.subr.mxu0 0.0
        %1003 = vmatpush1.msra.mxu0 0.0
        %1004 = vmatprep.subr.mxu0 %v827
        %1005 = vmatpush1.msra.mxu0 %v826
        %1006 = vmatprep.subr.mxu0 %v819
        %1007 = vmatpush1.msra.mxu0 %v818
        %1008 = vmatprep.subr.mxu0 0.0
        %1009 = vmatpush2.msra.mxu0 0.0
        %1010 = vmatprep.subr.mxu0 0.0
        %1011 = vmatpush2.msra.mxu0 0.0
        %1012 = vmatprep.subr.mxu0 0.0
        %1013 = vmatpush2.msra.mxu0 0.0
        %1014 = vmatprep.subr.mxu0 0.0
        %1015 = vmatpush2.msra.mxu0 0.0
        %1016 = vmatprep.subr.mxu0 0.0
        %1017 = vmatpush2.msra.mxu0 0.0
        %1018 = vmatprep.subr.mxu0 0.0
        %1019 = vmatpush2.msra.mxu0 0.0
        %1020 = vmatprep.subr.mxu0 0.0
        %1021 = vmatpush2.msra.mxu0 0.0
        %1022 = vmatprep.subr.mxu0 0.0
        %1023 = vmatpush2.msra.mxu0 0.0
        %1024 = vmatprep.subr.mxu0 0.0
        %1025 = vmatpush2.msra.mxu0 0.0
        %1026 = vmatprep.subr.mxu0 0.0
        %1027 = vmatpush2.msra.mxu0 0.0
        %1028 = vmatprep.subr.mxu0 0.0
        %1029 = vmatpush2.msra.mxu0 0.0
        %1030 = vmatprep.subr.mxu0 0.0
        %1031 = vmatpush2.msra.mxu0 0.0
        %1032 = vmatprep.subr.mxu0 0.0
        %1033 = vmatpush2.msra.mxu0 0.0
        %1034 = vmatprep.subr.mxu0 0.0
        %1035 = vmatpush2.msra.mxu0 0.0
        %1036 = vmatprep.subr.mxu0 0.0
        %1037 = vmatpush2.msra.mxu0 0.0
        %1038 = vmatprep.subr.mxu0 0.0
        %1039 = vmatpush2.msra.mxu0 0.0
        %1040 = vmatprep.mubr.f32.mxu0 0.0
        %1041 = vmatmul.mubr.f32.gmra.mxu0 %v832
        %v1042 = vpop.f32.mrf.mxu0
        %v1043 = vadd.f32 0.0, %v1042
        %v1044 = vpop.f32.mrf.mxu0
        %v1045 = vadd.f32 0.0, %v1044
        %1046 = vdwg.mxu0
        %1047 = vmatprep.subr.mxu0 0.0
        %1048 = vmatpush1.msra.mxu0 0.0
        %1049 = vmatprep.subr.mxu0 0.0
        %1050 = vmatpush1.msra.mxu0 0.0
        %1051 = vmatprep.subr.mxu0 0.0
        %1052 = vmatpush1.msra.mxu0 0.0
        %1053 = vmatprep.subr.mxu0 0.0
        %1054 = vmatpush1.msra.mxu0 0.0
        %1055 = vmatprep.subr.mxu0 0.0
        %1056 = vmatpush1.msra.mxu0 0.0
        %1057 = vmatprep.subr.mxu0 0.0
        %1058 = vmatpush1.msra.mxu0 0.0
        %1059 = vmatprep.subr.mxu0 0.0
        %1060 = vmatpush1.msra.mxu0 0.0
        %1061 = vmatprep.subr.mxu0 0.0
        %1062 = vmatpush1.msra.mxu0 0.0
        %1063 = vmatprep.subr.mxu0 0.0
        %1064 = vmatpush1.msra.mxu0 0.0
        %1065 = vmatprep.subr.mxu0 0.0
        %1066 = vmatpush1.msra.mxu0 0.0
        %1067 = vmatprep.subr.mxu0 0.0
        %1068 = vmatpush1.msra.mxu0 0.0
        %1069 = vmatprep.subr.mxu0 0.0
        %1070 = vmatpush1.msra.mxu0 0.0
        %1071 = vmatprep.subr.mxu0 0.0
        %1072 = vmatpush1.msra.mxu0 0.0
        %1073 = vmatprep.subr.mxu0 0.0
        %1074 = vmatpush1.msra.mxu0 0.0
        %1075 = vmatprep.subr.mxu0 %v829
        %1076 = vmatpush1.msra.mxu0 %v828
        %1077 = vmatprep.subr.mxu0 %v821
        %1078 = vmatpush1.msra.mxu0 %v820
        %1079 = vmatprep.subr.mxu0 0.0
        %1080 = vmatpush2.msra.mxu0 0.0
        %1081 = vmatprep.subr.mxu0 0.0
        %1082 = vmatpush2.msra.mxu0 0.0
        %1083 = vmatprep.subr.mxu0 0.0
        %1084 = vmatpush2.msra.mxu0 0.0
        %1085 = vmatprep.subr.mxu0 0.0
        %1086 = vmatpush2.msra.mxu0 0.0
        %1087 = vmatprep.subr.mxu0 0.0
        %1088 = vmatpush2.msra.mxu0 0.0
        %1089 = vmatprep.subr.mxu0 0.0
        %1090 = vmatpush2.msra.mxu0 0.0
        %1091 = vmatprep.subr.mxu0 0.0
        %1092 = vmatpush2.msra.mxu0 0.0
        %1093 = vmatprep.subr.mxu0 0.0
        %1094 = vmatpush2.msra.mxu0 0.0
        %1095 = vmatprep.subr.mxu0 0.0
        %1096 = vmatpush2.msra.mxu0 0.0
        %1097 = vmatprep.subr.mxu0 0.0
        %1098 = vmatpush2.msra.mxu0 0.0
        %1099 = vmatprep.subr.mxu0 0.0
        %1100 = vmatpush2.msra.mxu0 0.0
        %1101 = vmatprep.subr.mxu0 0.0
        %1102 = vmatpush2.msra.mxu0 0.0
        %1103 = vmatprep.subr.mxu0 0.0
        %1104 = vmatpush2.msra.mxu0 0.0
        %1105 = vmatprep.subr.mxu0 0.0
        %1106 = vmatpush2.msra.mxu0 0.0
        %1107 = vmatprep.subr.mxu0 0.0
        %1108 = vmatpush2.msra.mxu0 0.0
        %1109 = vmatprep.subr.mxu0 0.0
        %1110 = vmatpush2.msra.mxu0 0.0
        %1111 = vmatprep.mubr.f32.mxu0 0.0
        %1112 = vmatmul.mubr.f32.gmra.mxu0 %v832
        %v1113 = vpop.f32.mrf.mxu0
        %v1114 = vadd.f32 0.0, %v1113
        %v1115 = vpop.f32.mrf.mxu0
        %v1116 = vadd.f32 0.0, %v1115
        %1117 = vdwg.mxu0
        %v1118 = vadd.f32 %v678, %v901
        %v1119 = vadd.f32 %v679, %v903
        %v1120 = vadd.f32 %v680, %v972
        %v1121 = vadd.f32 %v681, %v974
        %v1122 = vadd.f32 %v682, %v1043
        %v1123 = vadd.f32 %v683, %v1045
        %v1124 = vadd.f32 %v684, %v1114
        %v1125 = vadd.f32 %v685, %v1116
        %v1126 = vld [vmem:[%s4] sm:$0xff]
        %v1127 = vld [vmem:[%s4 + $0x8] sm:$0xff]
        %1128 = vrot.lane.b32.xlu0 %v1118, 2
        %v1129 = vpop.permute.xlu0 %1128
        %1130 = vrot.lane.b32.xlu0 %v1119, 2
        %v1131 = vpop.permute.xlu0 %1130
        %1132 = vrot.lane.b32.xlu0 %v1120, 2
        %v1133 = vpop.permute.xlu0 %1132
        %1134 = vrot.lane.b32.xlu0 %v1121, 2
        %v1135 = vpop.permute.xlu0 %1134
        %1136 = vrot.lane.b32.xlu0 %v1122, 2
        %v1137 = vpop.permute.xlu0 %1136
        %1138 = vrot.lane.b32.xlu0 %v1123, 2
        %v1139 = vpop.permute.xlu0 %1138
        %1140 = vrot.lane.b32.xlu0 %v1124, 2
        %v1141 = vpop.permute.xlu0 %1140
        %1142 = vrot.lane.b32.xlu0 %v1125, 2
        %v1143 = vpop.permute.xlu0 %1142
        %vm1144 = vcmp.lt.s32.totalorder %v308, 2
        %v1145 = vsel %vm1144, %v1141, %v1143
        %v1146 = vsel %vm1144, %v1139, %v1141
        %v1147 = vsel %vm1144, %v1137, %v1139
        %v1148 = vsel %vm1144, %v1135, %v1137
        %v1149 = vsel %vm1144, %v1133, %v1135
        %v1150 = vsel %vm1144, %v1131, %v1133
        %v1151 = vsel %vm1144, %v1129, %v1131
        %v1152 = vsel %vm1144, %v1143, %v1129
        %v1153 = vsel %vm492, 1, 0
        %v1154 = vsel %vm493, 1, 0
        %v1155 = vsel %vm494, 1, 0
        %v1156 = vsel %vm495, 1, 0
        %v1157 = vsel %vm496, 1, 0
        %v1158 = vsel %vm497, 1, 0
        %v1159 = vsel %vm498, 1, 0
        %v1160 = vsel %vm499, 1, 0
        %vm1161 = vcmp.eq.s32.totalorder %v1153, 1
        %vm1162 = vcmp.eq.s32.totalorder %v1154, 1
        %vm1163 = vcmp.eq.s32.totalorder %v1155, 1
        %vm1164 = vcmp.eq.s32.totalorder %v1156, 1
        %vm1165 = vcmp.eq.s32.totalorder %v1157, 1
        %vm1166 = vcmp.eq.s32.totalorder %v1158, 1
        %vm1167 = vcmp.eq.s32.totalorder %v1159, 1
        %vm1168 = vcmp.eq.s32.totalorder %v1160, 1
        %v1169 = vsel %vm1161, %v1152, %v1151
        %v1170 = vsel %vm1162, %v1151, %v1150
        %v1171 = vsel %vm1163, %v1150, %v1149
        %v1172 = vsel %vm1164, %v1149, %v1148
        %v1173 = vsel %vm1165, %v1148, %v1147
        %v1174 = vsel %vm1166, %v1147, %v1146
        %v1175 = vsel %vm1167, %v1146, %v1145
        %v1176 = vsel %vm1168, %v1145, %v1152
        %1177 = vrot.lane.b32.xlu0 %v1118, 126
        %v1178 = vpop.permute.xlu0 %1177
        %1179 = vrot.lane.b32.xlu0 %v1119, 126
        %v1180 = vpop.permute.xlu0 %1179
        %1181 = vrot.lane.b32.xlu0 %v1120, 126
        %v1182 = vpop.permute.xlu0 %1181
        %1183 = vrot.lane.b32.xlu0 %v1121, 126
        %v1184 = vpop.permute.xlu0 %1183
        %1185 = vrot.lane.b32.xlu0 %v1122, 126
        %v1186 = vpop.permute.xlu0 %1185
        %1187 = vrot.lane.b32.xlu0 %v1123, 126
        %v1188 = vpop.permute.xlu0 %1187
        %1189 = vrot.lane.b32.xlu0 %v1124, 126
        %v1190 = vpop.permute.xlu0 %1189
        %1191 = vrot.lane.b32.xlu0 %v1125, 126
        %v1192 = vpop.permute.xlu0 %1191
        %vm1193 = vcmp.lt.s32.totalorder %v308, 126
        %v1194 = vsel %vm1193, %v1190, %v1192
        %v1195 = vsel %vm1193, %v1188, %v1190
        %v1196 = vsel %vm1193, %v1186, %v1188
        %v1197 = vsel %vm1193, %v1184, %v1186
        %v1198 = vsel %vm1193, %v1182, %v1184
        %v1199 = vsel %vm1193, %v1180, %v1182
        %v1200 = vsel %vm1193, %v1178, %v1180
        %v1201 = vsel %vm1193, %v1192, %v1178
        %v1202 = vsel %vm500, 1, 0
        %v1203 = vsel %vm501, 1, 0
        %v1204 = vsel %vm502, 1, 0
        %v1205 = vsel %vm503, 1, 0
        %v1206 = vsel %vm504, 1, 0
        %v1207 = vsel %vm505, 1, 0
        %v1208 = vsel %vm506, 1, 0
        %v1209 = vsel %vm507, 1, 0
        %vm1210 = vcmp.eq.s32.totalorder %v1202, 1
        %vm1211 = vcmp.eq.s32.totalorder %v1203, 1
        %vm1212 = vcmp.eq.s32.totalorder %v1204, 1
        %vm1213 = vcmp.eq.s32.totalorder %v1205, 1
        %vm1214 = vcmp.eq.s32.totalorder %v1206, 1
        %vm1215 = vcmp.eq.s32.totalorder %v1207, 1
        %vm1216 = vcmp.eq.s32.totalorder %v1208, 1
        %vm1217 = vcmp.eq.s32.totalorder %v1209, 1
        %v1218 = vsel %vm1210, %v1200, %v1201
        %v1219 = vsel %vm1211, %v1199, %v1200
        %v1220 = vsel %vm1212, %v1198, %v1199
        %v1221 = vsel %vm1213, %v1197, %v1198
        %v1222 = vsel %vm1214, %v1196, %v1197
        %v1223 = vsel %vm1215, %v1195, %v1196
        %v1224 = vsel %vm1216, %v1194, %v1195
        %v1225 = vsel %vm1217, %v1201, %v1194
        %1226 = vset.pattern.permute.xlu0 3
        %1227 = vperm.xlu0 %1226, %v305
        %v1228 = vpop.permute.xlu0 %1227
        %1231 = vset.pattern.permute.xlu0 3
        %1232 = vperm.xlu0 %1231, %v306
        %v1233 = vpop.permute.xlu0 %1232
        %vm1235 = vcmask 195584
        %v1237 = vsel %vm1235, %v1126, 0
        %v1240 = vsel %vm1235, %v1127, 0
        %1242 = vmatprep.subr.mxu0 0.0
        %1243 = vmatpush1.msra.mxu0 0.0
        %1244 = vmatprep.subr.mxu0 0.0
        %1245 = vmatpush1.msra.mxu0 0.0
        %1246 = vmatprep.subr.mxu0 0.0
        %1247 = vmatpush1.msra.mxu0 0.0
        %1248 = vmatprep.subr.mxu0 0.0
        %1249 = vmatpush1.msra.mxu0 0.0
        %1250 = vmatprep.subr.mxu0 0.0
        %1251 = vmatpush1.msra.mxu0 0.0
        %1252 = vmatprep.subr.mxu0 0.0
        %1253 = vmatpush1.msra.mxu0 0.0
        %1254 = vmatprep.subr.mxu0 0.0
        %1255 = vmatpush1.msra.mxu0 0.0
        %1256 = vmatprep.subr.mxu0 0.0
        %1257 = vmatpush1.msra.mxu0 0.0
        %1258 = vmatprep.subr.mxu0 0.0
        %1259 = vmatpush1.msra.mxu0 0.0
        %1260 = vmatprep.subr.mxu0 0.0
        %1261 = vmatpush1.msra.mxu0 0.0
        %1262 = vmatprep.subr.mxu0 0.0
        %1263 = vmatpush1.msra.mxu0 0.0
        %1264 = vmatprep.subr.mxu0 0.0
        %1265 = vmatpush1.msra.mxu0 0.0
        %1266 = vmatprep.subr.mxu0 0.0
        %1267 = vmatpush1.msra.mxu0 0.0
        %1268 = vmatprep.subr.mxu0 %v1219
        %1269 = vmatpush1.msra.mxu0 %v1218
        %1270 = vmatprep.subr.mxu0 %v1119
        %1271 = vmatpush1.msra.mxu0 %v1118
        %1272 = vmatprep.subr.mxu0 %v1170
        %1273 = vmatpush1.msra.mxu0 %v1169
        %1274 = vmatprep.subr.mxu0 0.0
        %1275 = vmatpush2.msra.mxu0 0.0
        %1276 = vmatprep.subr.mxu0 0.0
        %1277 = vmatpush2.msra.mxu0 0.0
        %1278 = vmatprep.subr.mxu0 0.0
        %1279 = vmatpush2.msra.mxu0 0.0
        %1280 = vmatprep.subr.mxu0 0.0
        %1281 = vmatpush2.msra.mxu0 0.0
        %1282 = vmatprep.subr.mxu0 0.0
        %1283 = vmatpush2.msra.mxu0 0.0
        %1284 = vmatprep.subr.mxu0 0.0
        %1285 = vmatpush2.msra.mxu0 0.0
        %1286 = vmatprep.subr.mxu0 0.0
        %1287 = vmatpush2.msra.mxu0 0.0
        %1288 = vmatprep.subr.mxu0 0.0
        %1289 = vmatpush2.msra.mxu0 0.0
        %1290 = vmatprep.subr.mxu0 0.0
        %1291 = vmatpush2.msra.mxu0 0.0
        %1292 = vmatprep.subr.mxu0 0.0
        %1293 = vmatpush2.msra.mxu0 0.0
        %1294 = vmatprep.subr.mxu0 0.0
        %1295 = vmatpush2.msra.mxu0 0.0
        %1296 = vmatprep.subr.mxu0 0.0
        %1297 = vmatpush2.msra.mxu0 0.0
        %1298 = vmatprep.subr.mxu0 0.0
        %1299 = vmatpush2.msra.mxu0 0.0
        %1300 = vmatprep.subr.mxu0 0.0
        %1301 = vmatpush2.msra.mxu0 0.0
        %1302 = vmatprep.subr.mxu0 0.0
        %1303 = vmatpush2.msra.mxu0 0.0
        %1304 = vmatprep.subr.mxu0 0.0
        %1305 = vmatpush2.msra.mxu0 0.0
        %1306 = vmatprep.mubr.f32.mxu0 0.0
        %1307 = vmatmul.mubr.f32.gmra.mxu0 %v1237
        %v1308 = vpop.f32.mrf.mxu0
        %v1309 = vadd.f32 %v1228, %v1308
        %v1310 = vpop.f32.mrf.mxu0
        %v1311 = vadd.f32 %v1228, %v1310
        %1312 = vmatprep.mubr.f32.mxu0 0.0
        %1313 = vmatmul.mubr.f32.gmra.mxu0 %v1240
        %v1314 = vpop.f32.mrf.mxu0
        %v1315 = vadd.f32 %v1233, %v1314
        %v1316 = vpop.f32.mrf.mxu0
        %v1317 = vadd.f32 %v1233, %v1316
        %1318 = vdwg.mxu0
        %1319 = vmatprep.subr.mxu0 0.0
        %1320 = vmatpush1.msra.mxu0 0.0
        %1321 = vmatprep.subr.mxu0 0.0
        %1322 = vmatpush1.msra.mxu0 0.0
        %1323 = vmatprep.subr.mxu0 0.0
        %1324 = vmatpush1.msra.mxu0 0.0
        %1325 = vmatprep.subr.mxu0 0.0
        %1326 = vmatpush1.msra.mxu0 0.0
        %1327 = vmatprep.subr.mxu0 0.0
        %1328 = vmatpush1.msra.mxu0 0.0
        %1329 = vmatprep.subr.mxu0 0.0
        %1330 = vmatpush1.msra.mxu0 0.0
        %1331 = vmatprep.subr.mxu0 0.0
        %1332 = vmatpush1.msra.mxu0 0.0
        %1333 = vmatprep.subr.mxu0 0.0
        %1334 = vmatpush1.msra.mxu0 0.0
        %1335 = vmatprep.subr.mxu0 0.0
        %1336 = vmatpush1.msra.mxu0 0.0
        %1337 = vmatprep.subr.mxu0 0.0
        %1338 = vmatpush1.msra.mxu0 0.0
        %1339 = vmatprep.subr.mxu0 0.0
        %1340 = vmatpush1.msra.mxu0 0.0
        %1341 = vmatprep.subr.mxu0 0.0
        %1342 = vmatpush1.msra.mxu0 0.0
        %1343 = vmatprep.subr.mxu0 0.0
        %1344 = vmatpush1.msra.mxu0 0.0
        %1345 = vmatprep.subr.mxu0 %v1221
        %1346 = vmatpush1.msra.mxu0 %v1220
        %1347 = vmatprep.subr.mxu0 %v1121
        %1348 = vmatpush1.msra.mxu0 %v1120
        %1349 = vmatprep.subr.mxu0 %v1172
        %1350 = vmatpush1.msra.mxu0 %v1171
        %1351 = vmatprep.subr.mxu0 0.0
        %1352 = vmatpush2.msra.mxu0 0.0
        %1353 = vmatprep.subr.mxu0 0.0
        %1354 = vmatpush2.msra.mxu0 0.0
        %1355 = vmatprep.subr.mxu0 0.0
        %1356 = vmatpush2.msra.mxu0 0.0
        %1357 = vmatprep.subr.mxu0 0.0
        %1358 = vmatpush2.msra.mxu0 0.0
        %1359 = vmatprep.subr.mxu0 0.0
        %1360 = vmatpush2.msra.mxu0 0.0
        %1361 = vmatprep.subr.mxu0 0.0
        %1362 = vmatpush2.msra.mxu0 0.0
        %1363 = vmatprep.subr.mxu0 0.0
        %1364 = vmatpush2.msra.mxu0 0.0
        %1365 = vmatprep.subr.mxu0 0.0
        %1366 = vmatpush2.msra.mxu0 0.0
        %1367 = vmatprep.subr.mxu0 0.0
        %1368 = vmatpush2.msra.mxu0 0.0
        %1369 = vmatprep.subr.mxu0 0.0
        %1370 = vmatpush2.msra.mxu0 0.0
        %1371 = vmatprep.subr.mxu0 0.0
        %1372 = vmatpush2.msra.mxu0 0.0
        %1373 = vmatprep.subr.mxu0 0.0
        %1374 = vmatpush2.msra.mxu0 0.0
        %1375 = vmatprep.subr.mxu0 0.0
        %1376 = vmatpush2.msra.mxu0 0.0
        %1377 = vmatprep.subr.mxu0 0.0
        %1378 = vmatpush2.msra.mxu0 0.0
        %1379 = vmatprep.subr.mxu0 0.0
        %1380 = vmatpush2.msra.mxu0 0.0
        %1381 = vmatprep.subr.mxu0 0.0
        %1382 = vmatpush2.msra.mxu0 0.0
        %1383 = vmatprep.mubr.f32.mxu0 0.0
        %1384 = vmatmul.mubr.f32.gmra.mxu0 %v1237
        %v1385 = vpop.f32.mrf.mxu0
        %v1386 = vadd.f32 %v1228, %v1385
        %v1387 = vpop.f32.mrf.mxu0
        %v1388 = vadd.f32 %v1228, %v1387
        %1389 = vmatprep.mubr.f32.mxu0 0.0
        %1390 = vmatmul.mubr.f32.gmra.mxu0 %v1240
        %v1391 = vpop.f32.mrf.mxu0
        %v1392 = vadd.f32 %v1233, %v1391
        %v1393 = vpop.f32.mrf.mxu0
        %v1394 = vadd.f32 %v1233, %v1393
        %1395 = vdwg.mxu0
        %1396 = vmatprep.subr.mxu0 0.0
        %1397 = vmatpush1.msra.mxu0 0.0
        %1398 = vmatprep.subr.mxu0 0.0
        %1399 = vmatpush1.msra.mxu0 0.0
        %1400 = vmatprep.subr.mxu0 0.0
        %1401 = vmatpush1.msra.mxu0 0.0
        %1402 = vmatprep.subr.mxu0 0.0
        %1403 = vmatpush1.msra.mxu0 0.0
        %1404 = vmatprep.subr.mxu0 0.0
        %1405 = vmatpush1.msra.mxu0 0.0
        %1406 = vmatprep.subr.mxu0 0.0
        %1407 = vmatpush1.msra.mxu0 0.0
        %1408 = vmatprep.subr.mxu0 0.0
        %1409 = vmatpush1.msra.mxu0 0.0
        %1410 = vmatprep.subr.mxu0 0.0
        %1411 = vmatpush1.msra.mxu0 0.0
        %1412 = vmatprep.subr.mxu0 0.0
        %1413 = vmatpush1.msra.mxu0 0.0
        %1414 = vmatprep.subr.mxu0 0.0
        %1415 = vmatpush1.msra.mxu0 0.0
        %1416 = vmatprep.subr.mxu0 0.0
        %1417 = vmatpush1.msra.mxu0 0.0
        %1418 = vmatprep.subr.mxu0 0.0
        %1419 = vmatpush1.msra.mxu0 0.0
        %1420 = vmatprep.subr.mxu0 0.0
        %1421 = vmatpush1.msra.mxu0 0.0
        %1422 = vmatprep.subr.mxu0 %v1223
        %1423 = vmatpush1.msra.mxu0 %v1222
        %1424 = vmatprep.subr.mxu0 %v1123
        %1425 = vmatpush1.msra.mxu0 %v1122
        %1426 = vmatprep.subr.mxu0 %v1174
        %1427 = vmatpush1.msra.mxu0 %v1173
        %1428 = vmatprep.subr.mxu0 0.0
        %1429 = vmatpush2.msra.mxu0 0.0
        %1430 = vmatprep.subr.mxu0 0.0
        %1431 = vmatpush2.msra.mxu0 0.0
        %1432 = vmatprep.subr.mxu0 0.0
        %1433 = vmatpush2.msra.mxu0 0.0
        %1434 = vmatprep.subr.mxu0 0.0
        %1435 = vmatpush2.msra.mxu0 0.0
        %1436 = vmatprep.subr.mxu0 0.0
        %1437 = vmatpush2.msra.mxu0 0.0
        %1438 = vmatprep.subr.mxu0 0.0
        %1439 = vmatpush2.msra.mxu0 0.0
        %1440 = vmatprep.subr.mxu0 0.0
        %1441 = vmatpush2.msra.mxu0 0.0
        %1442 = vmatprep.subr.mxu0 0.0
        %1443 = vmatpush2.msra.mxu0 0.0
        %1444 = vmatprep.subr.mxu0 0.0
        %1445 = vmatpush2.msra.mxu0 0.0
        %1446 = vmatprep.subr.mxu0 0.0
        %1447 = vmatpush2.msra.mxu0 0.0
        %1448 = vmatprep.subr.mxu0 0.0
        %1449 = vmatpush2.msra.mxu0 0.0
        %1450 = vmatprep.subr.mxu0 0.0
        %1451 = vmatpush2.msra.mxu0 0.0
        %1452 = vmatprep.subr.mxu0 0.0
        %1453 = vmatpush2.msra.mxu0 0.0
        %1454 = vmatprep.subr.mxu0 0.0
        %1455 = vmatpush2.msra.mxu0 0.0
        %1456 = vmatprep.subr.mxu0 0.0
        %1457 = vmatpush2.msra.mxu0 0.0
        %1458 = vmatprep.subr.mxu0 0.0
        %1459 = vmatpush2.msra.mxu0 0.0
        %1460 = vmatprep.mubr.f32.mxu0 0.0
        %1461 = vmatmul.mubr.f32.gmra.mxu0 %v1237
        %v1462 = vpop.f32.mrf.mxu0
        %v1463 = vadd.f32 %v1228, %v1462
        %v1464 = vpop.f32.mrf.mxu0
        %v1465 = vadd.f32 %v1228, %v1464
        %1466 = vmatprep.mubr.f32.mxu0 0.0
        %1467 = vmatmul.mubr.f32.gmra.mxu0 %v1240
        %v1468 = vpop.f32.mrf.mxu0
        %v1469 = vadd.f32 %v1233, %v1468
        %v1470 = vpop.f32.mrf.mxu0
        %v1471 = vadd.f32 %v1233, %v1470
        %1472 = vdwg.mxu0
        %1473 = vmatprep.subr.mxu0 0.0
        %1474 = vmatpush1.msra.mxu0 0.0
        %1475 = vmatprep.subr.mxu0 0.0
        %1476 = vmatpush1.msra.mxu0 0.0
        %1477 = vmatprep.subr.mxu0 0.0
        %1478 = vmatpush1.msra.mxu0 0.0
        %1479 = vmatprep.subr.mxu0 0.0
        %1480 = vmatpush1.msra.mxu0 0.0
        %1481 = vmatprep.subr.mxu0 0.0
        %1482 = vmatpush1.msra.mxu0 0.0
        %1483 = vmatprep.subr.mxu0 0.0
        %1484 = vmatpush1.msra.mxu0 0.0
        %1485 = vmatprep.subr.mxu0 0.0
        %1486 = vmatpush1.msra.mxu0 0.0
        %1487 = vmatprep.subr.mxu0 0.0
        %1488 = vmatpush1.msra.mxu0 0.0
        %1489 = vmatprep.subr.mxu0 0.0
        %1490 = vmatpush1.msra.mxu0 0.0
        %1491 = vmatprep.subr.mxu0 0.0
        %1492 = vmatpush1.msra.mxu0 0.0
        %1493 = vmatprep.subr.mxu0 0.0
        %1494 = vmatpush1.msra.mxu0 0.0
        %1495 = vmatprep.subr.mxu0 0.0
        %1496 = vmatpush1.msra.mxu0 0.0
        %1497 = vmatprep.subr.mxu0 0.0
        %1498 = vmatpush1.msra.mxu0 0.0
        %1499 = vmatprep.subr.mxu0 %v1225
        %1500 = vmatpush1.msra.mxu0 %v1224
        %1501 = vmatprep.subr.mxu0 %v1125
        %1502 = vmatpush1.msra.mxu0 %v1124
        %1503 = vmatprep.subr.mxu0 %v1176
        %1504 = vmatpush1.msra.mxu0 %v1175
        %1505 = vmatprep.subr.mxu0 0.0
        %1506 = vmatpush2.msra.mxu0 0.0
        %1507 = vmatprep.subr.mxu0 0.0
        %1508 = vmatpush2.msra.mxu0 0.0
        %1509 = vmatprep.subr.mxu0 0.0
        %1510 = vmatpush2.msra.mxu0 0.0
        %1511 = vmatprep.subr.mxu0 0.0
        %1512 = vmatpush2.msra.mxu0 0.0
        %1513 = vmatprep.subr.mxu0 0.0
        %1514 = vmatpush2.msra.mxu0 0.0
        %1515 = vmatprep.subr.mxu0 0.0
        %1516 = vmatpush2.msra.mxu0 0.0
        %1517 = vmatprep.subr.mxu0 0.0
        %1518 = vmatpush2.msra.mxu0 0.0
        %1519 = vmatprep.subr.mxu0 0.0
        %1520 = vmatpush2.msra.mxu0 0.0
        %1521 = vmatprep.subr.mxu0 0.0
        %1522 = vmatpush2.msra.mxu0 0.0
        %1523 = vmatprep.subr.mxu0 0.0
        %1524 = vmatpush2.msra.mxu0 0.0
        %1525 = vmatprep.subr.mxu0 0.0
        %1526 = vmatpush2.msra.mxu0 0.0
        %1527 = vmatprep.subr.mxu0 0.0
        %1528 = vmatpush2.msra.mxu0 0.0
        %1529 = vmatprep.subr.mxu0 0.0
        %1530 = vmatpush2.msra.mxu0 0.0
        %1531 = vmatprep.subr.mxu0 0.0
        %1532 = vmatpush2.msra.mxu0 0.0
        %1533 = vmatprep.subr.mxu0 0.0
        %1534 = vmatpush2.msra.mxu0 0.0
        %1535 = vmatprep.subr.mxu0 0.0
        %1536 = vmatpush2.msra.mxu0 0.0
        %1537 = vmatprep.mubr.f32.mxu0 0.0
        %1538 = vmatmul.mubr.f32.gmra.mxu0 %v1237
        %v1539 = vpop.f32.mrf.mxu0
        %v1540 = vadd.f32 %v1228, %v1539
        %v1541 = vpop.f32.mrf.mxu0
        %v1542 = vadd.f32 %v1228, %v1541
        %1543 = vmatprep.mubr.f32.mxu0 0.0
        %1544 = vmatmul.mubr.f32.gmra.mxu0 %v1240
        %v1545 = vpop.f32.mrf.mxu0
        %v1546 = vadd.f32 %v1233, %v1545
        %v1547 = vpop.f32.mrf.mxu0
        %v1548 = vadd.f32 %v1233, %v1547
        %1549 = vdwg.mxu0
        %v1550 = vxor.u32 %v1309, 2147483648
        %v1551 = vxor.u32 %v1311, 2147483648
        %v1552 = vxor.u32 %v1386, 2147483648
        %v1553 = vxor.u32 %v1388, 2147483648
        %v1554 = vxor.u32 %v1463, 2147483648
        %v1555 = vxor.u32 %v1465, 2147483648
        %v1556 = vxor.u32 %v1540, 2147483648
        %v1557 = vxor.u32 %v1542, 2147483648
        %v1558 = vxor.u32 %v1315, 2147483648
        %v1559 = vxor.u32 %v1317, 2147483648
        %v1560 = vxor.u32 %v1392, 2147483648
        %v1561 = vxor.u32 %v1394, 2147483648
        %v1562 = vxor.u32 %v1469, 2147483648
        %v1563 = vxor.u32 %v1471, 2147483648
        %v1564 = vxor.u32 %v1546, 2147483648
        %v1565 = vxor.u32 %v1548, 2147483648
        %v1566 = vmul.f32 %v1550, 1.442695
        %v1567 = vpow.pop %v1566
        %v1568 = vmul.f32 %v1551, 1.442695
        %v1569 = vpow.pop %v1568
        %v1570 = vmul.f32 %v1552, 1.442695
        %v1571 = vpow.pop %v1570
        %v1572 = vmul.f32 %v1553, 1.442695
        %v1573 = vpow.pop %v1572
        %v1574 = vmul.f32 %v1554, 1.442695
        %v1575 = vpow.pop %v1574
        %v1576 = vmul.f32 %v1555, 1.442695
        %v1577 = vpow.pop %v1576
        %v1578 = vmul.f32 %v1556, 1.442695
        %v1579 = vpow.pop %v1578
        %v1580 = vmul.f32 %v1557, 1.442695
        %v1581 = vpow.pop %v1580
        %v1582 = vmul.f32 %v1558, 1.442695
        %v1583 = vpow.pop %v1582
        %v1584 = vmul.f32 %v1559, 1.442695
        %v1585 = vpow.pop %v1584
        %v1586 = vmul.f32 %v1560, 1.442695
        %v1587 = vpow.pop %v1586
        %v1588 = vmul.f32 %v1561, 1.442695
        %v1589 = vpow.pop %v1588
        %v1590 = vmul.f32 %v1562, 1.442695
        %v1591 = vpow.pop %v1590
        %v1592 = vmul.f32 %v1563, 1.442695
        %v1593 = vpow.pop %v1592
        %v1594 = vmul.f32 %v1564, 1.442695
        %v1595 = vpow.pop %v1594
        %v1596 = vmul.f32 %v1565, 1.442695
        %v1597 = vpow.pop %v1596
        %v1598 = vadd.f32 %v1567, 1.0
        %v1599 = vadd.f32 %v1569, 1.0
        %v1600 = vadd.f32 %v1571, 1.0
        %v1601 = vadd.f32 %v1573, 1.0
        %v1602 = vadd.f32 %v1575, 1.0
        %v1603 = vadd.f32 %v1577, 1.0
        %v1604 = vadd.f32 %v1579, 1.0
        %v1605 = vadd.f32 %v1581, 1.0
        %v1606 = vadd.f32 %v1583, 1.0
        %v1607 = vadd.f32 %v1585, 1.0
        %v1608 = vadd.f32 %v1587, 1.0
        %v1609 = vadd.f32 %v1589, 1.0
        %v1610 = vadd.f32 %v1591, 1.0
        %v1611 = vadd.f32 %v1593, 1.0
        %v1612 = vadd.f32 %v1595, 1.0
        %v1613 = vadd.f32 %v1597, 1.0
        %v1614 = vrcp.pop %v1598
        %v1615 = vmul.f32 1.0, %v1614
        %v1616 = vrcp.pop %v1599
        %v1617 = vmul.f32 1.0, %v1616
        %v1618 = vrcp.pop %v1600
        %v1619 = vmul.f32 1.0, %v1618
        %v1620 = vrcp.pop %v1601
        %v1621 = vmul.f32 1.0, %v1620
        %v1622 = vrcp.pop %v1602
        %v1623 = vmul.f32 1.0, %v1622
        %v1624 = vrcp.pop %v1603
        %v1625 = vmul.f32 1.0, %v1624
        %v1626 = vrcp.pop %v1604
        %v1627 = vmul.f32 1.0, %v1626
        %v1628 = vrcp.pop %v1605
        %v1629 = vmul.f32 1.0, %v1628
        %v1630 = vrcp.pop %v1606
        %v1631 = vmul.f32 1.0, %v1630
        %v1632 = vrcp.pop %v1607
        %v1633 = vmul.f32 1.0, %v1632
        %v1634 = vrcp.pop %v1608
        %v1635 = vmul.f32 1.0, %v1634
        %v1636 = vrcp.pop %v1609
        %v1637 = vmul.f32 1.0, %v1636
        %v1638 = vrcp.pop %v1610
        %v1639 = vmul.f32 1.0, %v1638
        %v1640 = vrcp.pop %v1611
        %v1641 = vmul.f32 1.0, %v1640
        %v1642 = vrcp.pop %v1612
        %v1643 = vmul.f32 1.0, %v1642
        %v1644 = vrcp.pop %v1613
        %v1645 = vmul.f32 1.0, %v1644
        %v1646 = vmul.f32 %v1309, %v1615
        %v1647 = vmul.f32 %v1311, %v1617
        %v1648 = vmul.f32 %v1386, %v1619
        %v1649 = vmul.f32 %v1388, %v1621
        %v1650 = vmul.f32 %v1463, %v1623
        %v1651 = vmul.f32 %v1465, %v1625
        %v1652 = vmul.f32 %v1540, %v1627
        %v1653 = vmul.f32 %v1542, %v1629
        %v1654 = vmul.f32 %v1315, %v1631
        %v1655 = vmul.f32 %v1317, %v1633
        %v1656 = vmul.f32 %v1392, %v1635
        %v1657 = vmul.f32 %v1394, %v1637
        %v1658 = vmul.f32 %v1469, %v1639
        %v1659 = vmul.f32 %v1471, %v1641
        %v1660 = vmul.f32 %v1546, %v1643
        %v1661 = vmul.f32 %v1548, %v1645
        %v1662 = vadd.f32 %v1646, %v1654
        %v1663 = vrot.slane %v1662, 4
        %v1664 = vadd.f32 %v1662, %v1663
        %v1665 = vrot.slane %v1664, 2
        %v1666 = vadd.f32 %v1664, %v1665
        %v1667 = vrot.slane %v1666, 1
        %v1668 = vadd.f32 %v1666, %v1667
        %v1669 = vadd.f32 %v1647, %v1655
        %v1670 = vrot.slane %v1669, 4
        %v1671 = vadd.f32 %v1669, %v1670
        %v1672 = vrot.slane %v1671, 2
        %v1673 = vadd.f32 %v1671, %v1672
        %v1674 = vrot.slane %v1673, 1
        %v1675 = vadd.f32 %v1673, %v1674
        %v1676 = vadd.f32 %v1648, %v1656
        %v1677 = vrot.slane %v1676, 4
        %v1678 = vadd.f32 %v1676, %v1677
        %v1679 = vrot.slane %v1678, 2
        %v1680 = vadd.f32 %v1678, %v1679
        %v1681 = vrot.slane %v1680, 1
        %v1682 = vadd.f32 %v1680, %v1681
        %v1683 = vadd.f32 %v1649, %v1657
        %v1684 = vrot.slane %v1683, 4
        %v1685 = vadd.f32 %v1683, %v1684
        %v1686 = vrot.slane %v1685, 2
        %v1687 = vadd.f32 %v1685, %v1686
        %v1688 = vrot.slane %v1687, 1
        %v1689 = vadd.f32 %v1687, %v1688
        %v1690 = vadd.f32 %v1650, %v1658
        %v1691 = vrot.slane %v1690, 4
        %v1692 = vadd.f32 %v1690, %v1691
        %v1693 = vrot.slane %v1692, 2
        %v1694 = vadd.f32 %v1692, %v1693
        %v1695 = vrot.slane %v1694, 1
        %v1696 = vadd.f32 %v1694, %v1695
        %v1697 = vadd.f32 %v1651, %v1659
        %v1698 = vrot.slane %v1697, 4
        %v1699 = vadd.f32 %v1697, %v1698
        %v1700 = vrot.slane %v1699, 2
        %v1701 = vadd.f32 %v1699, %v1700
        %v1702 = vrot.slane %v1701, 1
        %v1703 = vadd.f32 %v1701, %v1702
        %v1704 = vadd.f32 %v1652, %v1660
        %v1705 = vrot.slane %v1704, 4
        %v1706 = vadd.f32 %v1704, %v1705
        %v1707 = vrot.slane %v1706, 2
        %v1708 = vadd.f32 %v1706, %v1707
        %v1709 = vrot.slane %v1708, 1
        %v1710 = vadd.f32 %v1708, %v1709
        %v1711 = vadd.f32 %v1653, %v1661
        %v1712 = vrot.slane %v1711, 4
        %v1713 = vadd.f32 %v1711, %v1712
        %v1714 = vrot.slane %v1713, 2
        %v1715 = vadd.f32 %v1713, %v1714
        %v1716 = vrot.slane %v1715, 1
        %v1717 = vadd.f32 %v1715, %v1716
        %v1718 = vrcp.pop 16.0
        %v1719 = vmul.f32 %v1668, %v1718
        %v1720 = vmul.f32 %v1675, %v1718
        %v1721 = vmul.f32 %v1682, %v1718
        %v1722 = vmul.f32 %v1689, %v1718
        %v1723 = vmul.f32 %v1696, %v1718
        %v1724 = vmul.f32 %v1703, %v1718
        %v1725 = vmul.f32 %v1710, %v1718
        %v1726 = vmul.f32 %v1717, %v1718
        %v1727 = vsub.f32 %v1646, %v1719
        %v1728 = vsub.f32 %v1647, %v1720
        %v1729 = vsub.f32 %v1648, %v1721
        %v1730 = vsub.f32 %v1649, %v1722
        %v1731 = vsub.f32 %v1650, %v1723
        %v1732 = vsub.f32 %v1651, %v1724
        %v1733 = vsub.f32 %v1652, %v1725
        %v1734 = vsub.f32 %v1653, %v1726
        %v1735 = vsub.f32 %v1654, %v1719
        %v1736 = vsub.f32 %v1655, %v1720
        %v1737 = vsub.f32 %v1656, %v1721
        %v1738 = vsub.f32 %v1657, %v1722
        %v1739 = vsub.f32 %v1658, %v1723
        %v1740 = vsub.f32 %v1659, %v1724
        %v1741 = vsub.f32 %v1660, %v1725
        %v1742 = vsub.f32 %v1661, %v1726
        %v1743 = vmul.f32 %v1727, %v1727
        %v1744 = vmul.f32 %v1728, %v1728
        %v1745 = vmul.f32 %v1729, %v1729
        %v1746 = vmul.f32 %v1730, %v1730
        %v1747 = vmul.f32 %v1731, %v1731
        %v1748 = vmul.f32 %v1732, %v1732
        %v1749 = vmul.f32 %v1733, %v1733
        %v1750 = vmul.f32 %v1734, %v1734
        %v1751 = vmul.f32 %v1735, %v1735
        %v1752 = vmul.f32 %v1736, %v1736
        %v1753 = vmul.f32 %v1737, %v1737
        %v1754 = vmul.f32 %v1738, %v1738
        %v1755 = vmul.f32 %v1739, %v1739
        %v1756 = vmul.f32 %v1740, %v1740
        %v1757 = vmul.f32 %v1741, %v1741
        %v1758 = vmul.f32 %v1742, %v1742
        %v1759 = vadd.f32 %v1743, %v1751
        %v1760 = vrot.slane %v1759, 4
        %v1761 = vadd.f32 %v1759, %v1760
        %v1762 = vrot.slane %v1761, 2
        %v1763 = vadd.f32 %v1761, %v1762
        %v1764 = vrot.slane %v1763, 1
        %v1765 = vadd.f32 %v1763, %v1764
        %v1766 = vadd.f32 %v1744, %v1752
        %v1767 = vrot.slane %v1766, 4
        %v1768 = vadd.f32 %v1766, %v1767
        %v1769 = vrot.slane %v1768, 2
        %v1770 = vadd.f32 %v1768, %v1769
        %v1771 = vrot.slane %v1770, 1
        %v1772 = vadd.f32 %v1770, %v1771
        %v1773 = vadd.f32 %v1745, %v1753
        %v1774 = vrot.slane %v1773, 4
        %v1775 = vadd.f32 %v1773, %v1774
        %v1776 = vrot.slane %v1775, 2
        %v1777 = vadd.f32 %v1775, %v1776
        %v1778 = vrot.slane %v1777, 1
        %v1779 = vadd.f32 %v1777, %v1778
        %v1780 = vadd.f32 %v1746, %v1754
        %v1781 = vrot.slane %v1780, 4
        %v1782 = vadd.f32 %v1780, %v1781
        %v1783 = vrot.slane %v1782, 2
        %v1784 = vadd.f32 %v1782, %v1783
        %v1785 = vrot.slane %v1784, 1
        %v1786 = vadd.f32 %v1784, %v1785
        %v1787 = vadd.f32 %v1747, %v1755
        %v1788 = vrot.slane %v1787, 4
        %v1789 = vadd.f32 %v1787, %v1788
        %v1790 = vrot.slane %v1789, 2
        %v1791 = vadd.f32 %v1789, %v1790
        %v1792 = vrot.slane %v1791, 1
        %v1793 = vadd.f32 %v1791, %v1792
        %v1794 = vadd.f32 %v1748, %v1756
        %v1795 = vrot.slane %v1794, 4
        %v1796 = vadd.f32 %v1794, %v1795
        %v1797 = vrot.slane %v1796, 2
        %v1798 = vadd.f32 %v1796, %v1797
        %v1799 = vrot.slane %v1798, 1
        %v1800 = vadd.f32 %v1798, %v1799
        %v1801 = vadd.f32 %v1749, %v1757
        %v1802 = vrot.slane %v1801, 4
        %v1803 = vadd.f32 %v1801, %v1802
        %v1804 = vrot.slane %v1803, 2
        %v1805 = vadd.f32 %v1803, %v1804
        %v1806 = vrot.slane %v1805, 1
        %v1807 = vadd.f32 %v1805, %v1806
        %v1808 = vadd.f32 %v1750, %v1758
        %v1809 = vrot.slane %v1808, 4
        %v1810 = vadd.f32 %v1808, %v1809
        %v1811 = vrot.slane %v1810, 2
        %v1812 = vadd.f32 %v1810, %v1811
        %v1813 = vrot.slane %v1812, 1
        %v1814 = vadd.f32 %v1812, %v1813
        %v1815 = vmul.f32 %v1765, %v1718
        %v1816 = vmul.f32 %v1772, %v1718
        %v1817 = vmul.f32 %v1779, %v1718
        %v1818 = vmul.f32 %v1786, %v1718
        %v1819 = vmul.f32 %v1793, %v1718
        %v1820 = vmul.f32 %v1800, %v1718
        %v1821 = vmul.f32 %v1807, %v1718
        %v1822 = vmul.f32 %v1814, %v1718
        %v1823 = vadd.f32 %v1815, 1e-05
        %v1824 = vadd.f32 %v1816, 1e-05
        %v1825 = vadd.f32 %v1817, 1e-05
        %v1826 = vadd.f32 %v1818, 1e-05
        %v1827 = vadd.f32 %v1819, 1e-05
        %v1828 = vadd.f32 %v1820, 1e-05
        %v1829 = vadd.f32 %v1821, 1e-05
        %v1830 = vadd.f32 %v1822, 1e-05
        %v1831 = vrsqrt.pop %v1823
        %v1832 = vrsqrt.pop %v1824
        %v1833 = vrsqrt.pop %v1825
        %v1834 = vrsqrt.pop %v1826
        %v1835 = vrsqrt.pop %v1827
        %v1836 = vrsqrt.pop %v1828
        %v1837 = vrsqrt.pop %v1829
        %v1838 = vrsqrt.pop %v1830
        %v1839 = vmul.f32 %v1727, %v1831
        %v1840 = vmul.f32 %v1728, %v1832
        %v1841 = vmul.f32 %v1729, %v1833
        %v1842 = vmul.f32 %v1730, %v1834
        %v1843 = vmul.f32 %v1731, %v1835
        %v1844 = vmul.f32 %v1732, %v1836
        %v1845 = vmul.f32 %v1733, %v1837
        %v1846 = vmul.f32 %v1734, %v1838
        %v1847 = vmul.f32 %v1735, %v1831
        %v1848 = vmul.f32 %v1736, %v1832
        %v1849 = vmul.f32 %v1737, %v1833
        %v1850 = vmul.f32 %v1738, %v1834
        %v1851 = vmul.f32 %v1739, %v1835
        %v1852 = vmul.f32 %v1740, %v1836
        %v1853 = vmul.f32 %v1741, %v1837
        %v1854 = vmul.f32 %v1742, %v1838
        %1855 = vset.pattern.permute.xlu0 4
        %1856 = vperm.xlu0 %1855, %v305
        %v1857 = vpop.permute.xlu0 %1856
        %1859 = vset.pattern.permute.xlu0 4
        %1860 = vperm.xlu0 %1859, %v306
        %v1861 = vpop.permute.xlu0 %1860
        %v1863 = vmul.f32 %v1839, %v1857
        %v1864 = vmul.f32 %v1840, %v1857
        %v1865 = vmul.f32 %v1841, %v1857
        %v1866 = vmul.f32 %v1842, %v1857
        %v1867 = vmul.f32 %v1843, %v1857
        %v1868 = vmul.f32 %v1844, %v1857
        %v1869 = vmul.f32 %v1845, %v1857
        %v1870 = vmul.f32 %v1846, %v1857
        %v1871 = vmul.f32 %v1847, %v1861
        %v1872 = vmul.f32 %v1848, %v1861
        %v1873 = vmul.f32 %v1849, %v1861
        %v1874 = vmul.f32 %v1850, %v1861
        %v1875 = vmul.f32 %v1851, %v1861
        %v1876 = vmul.f32 %v1852, %v1861
        %v1877 = vmul.f32 %v1853, %v1861
        %v1878 = vmul.f32 %v1854, %v1861
        %1879 = vset.pattern.permute.xlu0 5
        %1880 = vperm.xlu0 %1879, %v305
        %v1881 = vpop.permute.xlu0 %1880
        %1883 = vset.pattern.permute.xlu0 5
        %1884 = vperm.xlu0 %1883, %v306
        %v1885 = vpop.permute.xlu0 %1884
        %v1887 = vadd.f32 %v1863, %v1881
        %v1888 = vadd.f32 %v1864, %v1881
        %v1889 = vadd.f32 %v1865, %v1881
        %v1890 = vadd.f32 %v1866, %v1881
        %v1891 = vadd.f32 %v1867, %v1881
        %v1892 = vadd.f32 %v1868, %v1881
        %v1893 = vadd.f32 %v1869, %v1881
        %v1894 = vadd.f32 %v1870, %v1881
        %v1895 = vadd.f32 %v1871, %v1885
        %v1896 = vadd.f32 %v1872, %v1885
        %v1897 = vadd.f32 %v1873, %v1885
        %v1898 = vadd.f32 %v1874, %v1885
        %v1899 = vadd.f32 %v1875, %v1885
        %v1900 = vadd.f32 %v1876, %v1885
        %v1901 = vadd.f32 %v1877, %v1885
        %v1902 = vadd.f32 %v1878, %v1885
        %v1903 = vld [vmem:[%s5] sm:$0xff]
        %v1904 = vld [vmem:[%s5 + $0x8] sm:$0xff]
        %1905 = vrot.lane.b32.xlu0 %v1887, 2
        %v1906 = vpop.permute.xlu0 %1905
        %1907 = vrot.lane.b32.xlu0 %v1895, 2
        %v1908 = vpop.permute.xlu0 %1907
        %1909 = vrot.lane.b32.xlu0 %v1888, 2
        %v1910 = vpop.permute.xlu0 %1909
        %1911 = vrot.lane.b32.xlu0 %v1896, 2
        %v1912 = vpop.permute.xlu0 %1911
        %1913 = vrot.lane.b32.xlu0 %v1889, 2
        %v1914 = vpop.permute.xlu0 %1913
        %1915 = vrot.lane.b32.xlu0 %v1897, 2
        %v1916 = vpop.permute.xlu0 %1915
        %1917 = vrot.lane.b32.xlu0 %v1890, 2
        %v1918 = vpop.permute.xlu0 %1917
        %1919 = vrot.lane.b32.xlu0 %v1898, 2
        %v1920 = vpop.permute.xlu0 %1919
        %1921 = vrot.lane.b32.xlu0 %v1891, 2
        %v1922 = vpop.permute.xlu0 %1921
        %1923 = vrot.lane.b32.xlu0 %v1899, 2
        %v1924 = vpop.permute.xlu0 %1923
        %1925 = vrot.lane.b32.xlu0 %v1892, 2
        %v1926 = vpop.permute.xlu0 %1925
        %1927 = vrot.lane.b32.xlu0 %v1900, 2
        %v1928 = vpop.permute.xlu0 %1927
        %1929 = vrot.lane.b32.xlu0 %v1893, 2
        %v1930 = vpop.permute.xlu0 %1929
        %1931 = vrot.lane.b32.xlu0 %v1901, 2
        %v1932 = vpop.permute.xlu0 %1931
        %1933 = vrot.lane.b32.xlu0 %v1894, 2
        %v1934 = vpop.permute.xlu0 %1933
        %1935 = vrot.lane.b32.xlu0 %v1902, 2
        %v1936 = vpop.permute.xlu0 %1935
        %v1937 = vsel %vm1144, %v1930, %v1934
        %v1938 = vsel %vm1144, %v1932, %v1936
        %v1939 = vsel %vm1144, %v1926, %v1930
        %v1940 = vsel %vm1144, %v1928, %v1932
        %v1941 = vsel %vm1144, %v1922, %v1926
        %v1942 = vsel %vm1144, %v1924, %v1928
        %v1943 = vsel %vm1144, %v1918, %v1922
        %v1944 = vsel %vm1144, %v1920, %v1924
        %v1945 = vsel %vm1144, %v1914, %v1918
        %v1946 = vsel %vm1144, %v1916, %v1920
        %v1947 = vsel %vm1144, %v1910, %v1914
        %v1948 = vsel %vm1144, %v1912, %v1916
        %v1949 = vsel %vm1144, %v1906, %v1910
        %v1950 = vsel %vm1144, %v1908, %v1912
        %v1951 = vsel %vm1144, %v1934, %v1906
        %v1952 = vsel %vm1144, %v1936, %v1908
        %v1953 = vsel %vm1161, %v1951, %v1949
        %v1954 = vsel %vm1162, %v1949, %v1947
        %v1955 = vsel %vm1163, %v1947, %v1945
        %v1956 = vsel %vm1164, %v1945, %v1943
        %v1957 = vsel %vm1165, %v1943, %v1941
        %v1958 = vsel %vm1166, %v1941, %v1939
        %v1959 = vsel %vm1167, %v1939, %v1937
        %v1960 = vsel %vm1168, %v1937, %v1951
        %v1961 = vsel %vm1161, %v1952, %v1950
        %v1962 = vsel %vm1162, %v1950, %v1948
        %v1963 = vsel %vm1163, %v1948, %v1946
        %v1964 = vsel %vm1164, %v1946, %v1944
        %v1965 = vsel %vm1165, %v1944, %v1942
        %v1966 = vsel %vm1166, %v1942, %v1940
        %v1967 = vsel %vm1167, %v1940, %v1938
        %v1968 = vsel %vm1168, %v1938, %v1952
        %1969 = vrot.lane.b32.xlu0 %v1887, 126
        %v1970 = vpop.permute.xlu0 %1969
        %1971 = vrot.lane.b32.xlu0 %v1895, 126
        %v1972 = vpop.permute.xlu0 %1971
        %1973 = vrot.lane.b32.xlu0 %v1888, 126
        %v1974 = vpop.permute.xlu0 %1973
        %1975 = vrot.lane.b32.xlu0 %v1896, 126
        %v1976 = vpop.permute.xlu0 %1975
        %1977 = vrot.lane.b32.xlu0 %v1889, 126
        %v1978 = vpop.permute.xlu0 %1977
        %1979 = vrot.lane.b32.xlu0 %v1897, 126
        %v1980 = vpop.permute.xlu0 %1979
        %1981 = vrot.lane.b32.xlu0 %v1890, 126
        %v1982 = vpop.permute.xlu0 %1981
        %1983 = vrot.lane.b32.xlu0 %v1898, 126
        %v1984 = vpop.permute.xlu0 %1983
        %1985 = vrot.lane.b32.xlu0 %v1891, 126
        %v1986 = vpop.permute.xlu0 %1985
        %1987 = vrot.lane.b32.xlu0 %v1899, 126
        %v1988 = vpop.permute.xlu0 %1987
        %1989 = vrot.lane.b32.xlu0 %v1892, 126
        %v1990 = vpop.permute.xlu0 %1989
        %1991 = vrot.lane.b32.xlu0 %v1900, 126
        %v1992 = vpop.permute.xlu0 %1991
        %1993 = vrot.lane.b32.xlu0 %v1893, 126
        %v1994 = vpop.permute.xlu0 %1993
        %1995 = vrot.lane.b32.xlu0 %v1901, 126
        %v1996 = vpop.permute.xlu0 %1995
        %1997 = vrot.lane.b32.xlu0 %v1894, 126
        %v1998 = vpop.permute.xlu0 %1997
        %1999 = vrot.lane.b32.xlu0 %v1902, 126
        %v2000 = vpop.permute.xlu0 %1999
        %v2001 = vsel %vm1193, %v1994, %v1998
        %v2002 = vsel %vm1193, %v1996, %v2000
        %v2003 = vsel %vm1193, %v1990, %v1994
        %v2004 = vsel %vm1193, %v1992, %v1996
        %v2005 = vsel %vm1193, %v1986, %v1990
        %v2006 = vsel %vm1193, %v1988, %v1992
        %v2007 = vsel %vm1193, %v1982, %v1986
        %v2008 = vsel %vm1193, %v1984, %v1988
        %v2009 = vsel %vm1193, %v1978, %v1982
        %v2010 = vsel %vm1193, %v1980, %v1984
        %v2011 = vsel %vm1193, %v1974, %v1978
        %v2012 = vsel %vm1193, %v1976, %v1980
        %v2013 = vsel %vm1193, %v1970, %v1974
        %v2014 = vsel %vm1193, %v1972, %v1976
        %v2015 = vsel %vm1193, %v1998, %v1970
        %v2016 = vsel %vm1193, %v2000, %v1972
        %v2017 = vsel %vm1210, %v2013, %v2015
        %v2018 = vsel %vm1211, %v2011, %v2013
        %v2019 = vsel %vm1212, %v2009, %v2011
        %v2020 = vsel %vm1213, %v2007, %v2009
        %v2021 = vsel %vm1214, %v2005, %v2007
        %v2022 = vsel %vm1215, %v2003, %v2005
        %v2023 = vsel %vm1216, %v2001, %v2003
        %v2024 = vsel %vm1217, %v2015, %v2001
        %v2025 = vsel %vm1210, %v2014, %v2016
        %v2026 = vsel %vm1211, %v2012, %v2014
        %v2027 = vsel %vm1212, %v2010, %v2012
        %v2028 = vsel %vm1213, %v2008, %v2010
        %v2029 = vsel %vm1214, %v2006, %v2008
        %v2030 = vsel %vm1215, %v2004, %v2006
        %v2031 = vsel %vm1216, %v2002, %v2004
        %v2032 = vsel %vm1217, %v2016, %v2002
        %2033 = vset.pattern.permute.xlu0 6
        %2034 = vperm.xlu0 %2033, %v305
        %v2035 = vpop.permute.xlu0 %2034
        %2037 = vset.pattern.permute.xlu0 6
        %2038 = vperm.xlu0 %2037, %v306
        %v2039 = vpop.permute.xlu0 %2038
        %vm2041 = vcmask 392192
        %v2043 = vsel %vm2041, %v1903, 0
        %v2046 = vsel %vm2041, %v1904, 0
        %2048 = vmatprep.subr.mxu0 0.0
        %2049 = vmatpush1.msra.mxu0 0.0
        %2050 = vmatprep.subr.mxu0 0.0
        %2051 = vmatpush1.msra.mxu0 0.0
        %2052 = vmatprep.subr.mxu0 0.0
        %2053 = vmatpush1.msra.mxu0 0.0
        %2054 = vmatprep.subr.mxu0 0.0
        %2055 = vmatpush1.msra.mxu0 0.0
        %2056 = vmatprep.subr.mxu0 0.0
        %2057 = vmatpush1.msra.mxu0 0.0
        %2058 = vmatprep.subr.mxu0 0.0
        %2059 = vmatpush1.msra.mxu0 0.0
        %2060 = vmatprep.subr.mxu0 0.0
        %2061 = vmatpush1.msra.mxu0 0.0
        %2062 = vmatprep.subr.mxu0 0.0
        %2063 = vmatpush1.msra.mxu0 0.0
        %2064 = vmatprep.subr.mxu0 0.0
        %2065 = vmatpush1.msra.mxu0 0.0
        %2066 = vmatprep.subr.mxu0 0.0
        %2067 = vmatpush1.msra.mxu0 0.0
        %2068 = vmatprep.subr.mxu0 %v2026
        %2069 = vmatpush1.msra.mxu0 %v2025
        %2070 = vmatprep.subr.mxu0 %v2018
        %2071 = vmatpush1.msra.mxu0 %v2017
        %2072 = vmatprep.subr.mxu0 %v1896
        %2073 = vmatpush1.msra.mxu0 %v1895
        %2074 = vmatprep.subr.mxu0 %v1888
        %2075 = vmatpush1.msra.mxu0 %v1887
        %2076 = vmatprep.subr.mxu0 %v1962
        %2077 = vmatpush1.msra.mxu0 %v1961
        %2078 = vmatprep.subr.mxu0 %v1954
        %2079 = vmatpush1.msra.mxu0 %v1953
        %2080 = vmatprep.subr.mxu0 0.0
        %2081 = vmatpush2.msra.mxu0 0.0
        %2082 = vmatprep.subr.mxu0 0.0
        %2083 = vmatpush2.msra.mxu0 0.0
        %2084 = vmatprep.subr.mxu0 0.0
        %2085 = vmatpush2.msra.mxu0 0.0
        %2086 = vmatprep.subr.mxu0 0.0
        %2087 = vmatpush2.msra.mxu0 0.0
        %2088 = vmatprep.subr.mxu0 0.0
        %2089 = vmatpush2.msra.mxu0 0.0
        %2090 = vmatprep.subr.mxu0 0.0
        %2091 = vmatpush2.msra.mxu0 0.0
        %2092 = vmatprep.subr.mxu0 0.0
        %2093 = vmatpush2.msra.mxu0 0.0
        %2094 = vmatprep.subr.mxu0 0.0
        %2095 = vmatpush2.msra.mxu0 0.0
        %2096 = vmatprep.subr.mxu0 0.0
        %2097 = vmatpush2.msra.mxu0 0.0
        %2098 = vmatprep.subr.mxu0 0.0
        %2099 = vmatpush2.msra.mxu0 0.0
        %2100 = vmatprep.subr.mxu0 0.0
        %2101 = vmatpush2.msra.mxu0 0.0
        %2102 = vmatprep.subr.mxu0 0.0
        %2103 = vmatpush2.msra.mxu0 0.0
        %2104 = vmatprep.subr.mxu0 0.0
        %2105 = vmatpush2.msra.mxu0 0.0
        %2106 = vmatprep.subr.mxu0 0.0
        %2107 = vmatpush2.msra.mxu0 0.0
        %2108 = vmatprep.subr.mxu0 0.0
        %2109 = vmatpush2.msra.mxu0 0.0
        %2110 = vmatprep.subr.mxu0 0.0
        %2111 = vmatpush2.msra.mxu0 0.0
        %2112 = vmatprep.mubr.f32.mxu0 0.0
        %2113 = vmatmul.mubr.f32.gmra.mxu0 %v2043
        %v2114 = vpop.f32.mrf.mxu0
        %v2115 = vadd.f32 %v2035, %v2114
        %v2116 = vpop.f32.mrf.mxu0
        %v2117 = vadd.f32 %v2035, %v2116
        %2118 = vmatprep.mubr.f32.mxu0 0.0
        %2119 = vmatmul.mubr.f32.gmra.mxu0 %v2046
        %v2120 = vpop.f32.mrf.mxu0
        %v2121 = vadd.f32 %v2039, %v2120
        %v2122 = vpop.f32.mrf.mxu0
        %v2123 = vadd.f32 %v2039, %v2122
        %2124 = vdwg.mxu0
        %2125 = vmatprep.subr.mxu0 0.0
        %2126 = vmatpush1.msra.mxu0 0.0
        %2127 = vmatprep.subr.mxu0 0.0
        %2128 = vmatpush1.msra.mxu0 0.0
        %2129 = vmatprep.subr.mxu0 0.0
        %2130 = vmatpush1.msra.mxu0 0.0
        %2131 = vmatprep.subr.mxu0 0.0
        %2132 = vmatpush1.msra.mxu0 0.0
        %2133 = vmatprep.subr.mxu0 0.0
        %2134 = vmatpush1.msra.mxu0 0.0
        %2135 = vmatprep.subr.mxu0 0.0
        %2136 = vmatpush1.msra.mxu0 0.0
        %2137 = vmatprep.subr.mxu0 0.0
        %2138 = vmatpush1.msra.mxu0 0.0
        %2139 = vmatprep.subr.mxu0 0.0
        %2140 = vmatpush1.msra.mxu0 0.0
        %2141 = vmatprep.subr.mxu0 0.0
        %2142 = vmatpush1.msra.mxu0 0.0
        %2143 = vmatprep.subr.mxu0 0.0
        %2144 = vmatpush1.msra.mxu0 0.0
        %2145 = vmatprep.subr.mxu0 %v2028
        %2146 = vmatpush1.msra.mxu0 %v2027
        %2147 = vmatprep.subr.mxu0 %v2020
        %2148 = vmatpush1.msra.mxu0 %v2019
        %2149 = vmatprep.subr.mxu0 %v1898
        %2150 = vmatpush1.msra.mxu0 %v1897
        %2151 = vmatprep.subr.mxu0 %v1890
        %2152 = vmatpush1.msra.mxu0 %v1889
        %2153 = vmatprep.subr.mxu0 %v1964
        %2154 = vmatpush1.msra.mxu0 %v1963
        %2155 = vmatprep.subr.mxu0 %v1956
        %2156 = vmatpush1.msra.mxu0 %v1955
        %2157 = vmatprep.subr.mxu0 0.0
        %2158 = vmatpush2.msra.mxu0 0.0
        %2159 = vmatprep.subr.mxu0 0.0
        %2160 = vmatpush2.msra.mxu0 0.0
        %2161 = vmatprep.subr.mxu0 0.0
        %2162 = vmatpush2.msra.mxu0 0.0
        %2163 = vmatprep.subr.mxu0 0.0
        %2164 = vmatpush2.msra.mxu0 0.0
        %2165 = vmatprep.subr.mxu0 0.0
        %2166 = vmatpush2.msra.mxu0 0.0
        %2167 = vmatprep.subr.mxu0 0.0
        %2168 = vmatpush2.msra.mxu0 0.0
        %2169 = vmatprep.subr.mxu0 0.0
        %2170 = vmatpush2.msra.mxu0 0.0
        %2171 = vmatprep.subr.mxu0 0.0
        %2172 = vmatpush2.msra.mxu0 0.0
        %2173 = vmatprep.subr.mxu0 0.0
        %2174 = vmatpush2.msra.mxu0 0.0
        %2175 = vmatprep.subr.mxu0 0.0
        %2176 = vmatpush2.msra.mxu0 0.0
        %2177 = vmatprep.subr.mxu0 0.0
        %2178 = vmatpush2.msra.mxu0 0.0
        %2179 = vmatprep.subr.mxu0 0.0
        %2180 = vmatpush2.msra.mxu0 0.0
        %2181 = vmatprep.subr.mxu0 0.0
        %2182 = vmatpush2.msra.mxu0 0.0
        %2183 = vmatprep.subr.mxu0 0.0
        %2184 = vmatpush2.msra.mxu0 0.0
        %2185 = vmatprep.subr.mxu0 0.0
        %2186 = vmatpush2.msra.mxu0 0.0
        %2187 = vmatprep.subr.mxu0 0.0
        %2188 = vmatpush2.msra.mxu0 0.0
        %2189 = vmatprep.mubr.f32.mxu0 0.0
        %2190 = vmatmul.mubr.f32.gmra.mxu0 %v2043
        %v2191 = vpop.f32.mrf.mxu0
        %v2192 = vadd.f32 %v2035, %v2191
        %v2193 = vpop.f32.mrf.mxu0
        %v2194 = vadd.f32 %v2035, %v2193
        %2195 = vmatprep.mubr.f32.mxu0 0.0
        %2196 = vmatmul.mubr.f32.gmra.mxu0 %v2046
        %v2197 = vpop.f32.mrf.mxu0
        %v2198 = vadd.f32 %v2039, %v2197
        %v2199 = vpop.f32.mrf.mxu0
        %v2200 = vadd.f32 %v2039, %v2199
        %2201 = vdwg.mxu0
        %2202 = vmatprep.subr.mxu0 0.0
        %2203 = vmatpush1.msra.mxu0 0.0
        %2204 = vmatprep.subr.mxu0 0.0
        %2205 = vmatpush1.msra.mxu0 0.0
        %2206 = vmatprep.subr.mxu0 0.0
        %2207 = vmatpush1.msra.mxu0 0.0
        %2208 = vmatprep.subr.mxu0 0.0
        %2209 = vmatpush1.msra.mxu0 0.0
        %2210 = vmatprep.subr.mxu0 0.0
        %2211 = vmatpush1.msra.mxu0 0.0
        %2212 = vmatprep.subr.mxu0 0.0
        %2213 = vmatpush1.msra.mxu0 0.0
        %2214 = vmatprep.subr.mxu0 0.0
        %2215 = vmatpush1.msra.mxu0 0.0
        %2216 = vmatprep.subr.mxu0 0.0
        %2217 = vmatpush1.msra.mxu0 0.0
        %2218 = vmatprep.subr.mxu0 0.0
        %2219 = vmatpush1.msra.mxu0 0.0
        %2220 = vmatprep.subr.mxu0 0.0
        %2221 = vmatpush1.msra.mxu0 0.0
        %2222 = vmatprep.subr.mxu0 %v2030
        %2223 = vmatpush1.msra.mxu0 %v2029
        %2224 = vmatprep.subr.mxu0 %v2022
        %2225 = vmatpush1.msra.mxu0 %v2021
        %2226 = vmatprep.subr.mxu0 %v1900
        %2227 = vmatpush1.msra.mxu0 %v1899
        %2228 = vmatprep.subr.mxu0 %v1892
        %2229 = vmatpush1.msra.mxu0 %v1891
        %2230 = vmatprep.subr.mxu0 %v1966
        %2231 = vmatpush1.msra.mxu0 %v1965
        %2232 = vmatprep.subr.mxu0 %v1958
        %2233 = vmatpush1.msra.mxu0 %v1957
        %2234 = vmatprep.subr.mxu0 0.0
        %2235 = vmatpush2.msra.mxu0 0.0
        %2236 = vmatprep.subr.mxu0 0.0
        %2237 = vmatpush2.msra.mxu0 0.0
        %2238 = vmatprep.subr.mxu0 0.0
        %2239 = vmatpush2.msra.mxu0 0.0
        %2240 = vmatprep.subr.mxu0 0.0
        %2241 = vmatpush2.msra.mxu0 0.0
        %2242 = vmatprep.subr.mxu0 0.0
        %2243 = vmatpush2.msra.mxu0 0.0
        %2244 = vmatprep.subr.mxu0 0.0
        %2245 = vmatpush2.msra.mxu0 0.0
        %2246 = vmatprep.subr.mxu0 0.0
        %2247 = vmatpush2.msra.mxu0 0.0
        %2248 = vmatprep.subr.mxu0 0.0
        %2249 = vmatpush2.msra.mxu0 0.0
        %2250 = vmatprep.subr.mxu0 0.0
        %2251 = vmatpush2.msra.mxu0 0.0
        %2252 = vmatprep.subr.mxu0 0.0
        %2253 = vmatpush2.msra.mxu0 0.0
        %2254 = vmatprep.subr.mxu0 0.0
        %2255 = vmatpush2.msra.mxu0 0.0
        %2256 = vmatprep.subr.mxu0 0.0
        %2257 = vmatpush2.msra.mxu0 0.0
        %2258 = vmatprep.subr.mxu0 0.0
        %2259 = vmatpush2.msra.mxu0 0.0
        %2260 = vmatprep.subr.mxu0 0.0
        %2261 = vmatpush2.msra.mxu0 0.0
        %2262 = vmatprep.subr.mxu0 0.0
        %2263 = vmatpush2.msra.mxu0 0.0
        %2264 = vmatprep.subr.mxu0 0.0
        %2265 = vmatpush2.msra.mxu0 0.0
        %2266 = vmatprep.mubr.f32.mxu0 0.0
        %2267 = vmatmul.mubr.f32.gmra.mxu0 %v2043
        %v2268 = vpop.f32.mrf.mxu0
        %v2269 = vadd.f32 %v2035, %v2268
        %v2270 = vpop.f32.mrf.mxu0
        %v2271 = vadd.f32 %v2035, %v2270
        %2272 = vmatprep.mubr.f32.mxu0 0.0
        %2273 = vmatmul.mubr.f32.gmra.mxu0 %v2046
        %v2274 = vpop.f32.mrf.mxu0
        %v2275 = vadd.f32 %v2039, %v2274
        %v2276 = vpop.f32.mrf.mxu0
        %v2277 = vadd.f32 %v2039, %v2276
        %2278 = vdwg.mxu0
        %2279 = vmatprep.subr.mxu0 0.0
        %2280 = vmatpush1.msra.mxu0 0.0
        %2281 = vmatprep.subr.mxu0 0.0
        %2282 = vmatpush1.msra.mxu0 0.0
        %2283 = vmatprep.subr.mxu0 0.0
        %2284 = vmatpush1.msra.mxu0 0.0
        %2285 = vmatprep.subr.mxu0 0.0
        %2286 = vmatpush1.msra.mxu0 0.0
        %2287 = vmatprep.subr.mxu0 0.0
        %2288 = vmatpush1.msra.mxu0 0.0
        %2289 = vmatprep.subr.mxu0 0.0
        %2290 = vmatpush1.msra.mxu0 0.0
        %2291 = vmatprep.subr.mxu0 0.0
        %2292 = vmatpush1.msra.mxu0 0.0
        %2293 = vmatprep.subr.mxu0 0.0
        %2294 = vmatpush1.msra.mxu0 0.0
        %2295 = vmatprep.subr.mxu0 0.0
        %2296 = vmatpush1.msra.mxu0 0.0
        %2297 = vmatprep.subr.mxu0 0.0
        %2298 = vmatpush1.msra.mxu0 0.0
        %2299 = vmatprep.subr.mxu0 %v2032
        %2300 = vmatpush1.msra.mxu0 %v2031
        %2301 = vmatprep.subr.mxu0 %v2024
        %2302 = vmatpush1.msra.mxu0 %v2023
        %2303 = vmatprep.subr.mxu0 %v1902
        %2304 = vmatpush1.msra.mxu0 %v1901
        %2305 = vmatprep.subr.mxu0 %v1894
        %2306 = vmatpush1.msra.mxu0 %v1893
        %2307 = vmatprep.subr.mxu0 %v1968
        %2308 = vmatpush1.msra.mxu0 %v1967
        %2309 = vmatprep.subr.mxu0 %v1960
        %2310 = vmatpush1.msra.mxu0 %v1959
        %2311 = vmatprep.subr.mxu0 0.0
        %2312 = vmatpush2.msra.mxu0 0.0
        %2313 = vmatprep.subr.mxu0 0.0
        %2314 = vmatpush2.msra.mxu0 0.0
        %2315 = vmatprep.subr.mxu0 0.0
        %2316 = vmatpush2.msra.mxu0 0.0
        %2317 = vmatprep.subr.mxu0 0.0
        %2318 = vmatpush2.msra.mxu0 0.0
        %2319 = vmatprep.subr.mxu0 0.0
        %2320 = vmatpush2.msra.mxu0 0.0
        %2321 = vmatprep.subr.mxu0 0.0
        %2322 = vmatpush2.msra.mxu0 0.0
        %2323 = vmatprep.subr.mxu0 0.0
        %2324 = vmatpush2.msra.mxu0 0.0
        %2325 = vmatprep.subr.mxu0 0.0
        %2326 = vmatpush2.msra.mxu0 0.0
        %2327 = vmatprep.subr.mxu0 0.0
        %2328 = vmatpush2.msra.mxu0 0.0
        %2329 = vmatprep.subr.mxu0 0.0
        %2330 = vmatpush2.msra.mxu0 0.0
        %2331 = vmatprep.subr.mxu0 0.0
        %2332 = vmatpush2.msra.mxu0 0.0
        %2333 = vmatprep.subr.mxu0 0.0
        %2334 = vmatpush2.msra.mxu0 0.0
        %2335 = vmatprep.subr.mxu0 0.0
        %2336 = vmatpush2.msra.mxu0 0.0
        %2337 = vmatprep.subr.mxu0 0.0
        %2338 = vmatpush2.msra.mxu0 0.0
        %2339 = vmatprep.subr.mxu0 0.0
        %2340 = vmatpush2.msra.mxu0 0.0
        %2341 = vmatprep.subr.mxu0 0.0
        %2342 = vmatpush2.msra.mxu0 0.0
        %2343 = vmatprep.mubr.f32.mxu0 0.0
        %2344 = vmatmul.mubr.f32.gmra.mxu0 %v2043
        %v2345 = vpop.f32.mrf.mxu0
        %v2346 = vadd.f32 %v2035, %v2345
        %v2347 = vpop.f32.mrf.mxu0
        %v2348 = vadd.f32 %v2035, %v2347
        %2349 = vmatprep.mubr.f32.mxu0 0.0
        %2350 = vmatmul.mubr.f32.gmra.mxu0 %v2046
        %v2351 = vpop.f32.mrf.mxu0
        %v2352 = vadd.f32 %v2039, %v2351
        %v2353 = vpop.f32.mrf.mxu0
        %v2354 = vadd.f32 %v2039, %v2353
        %2355 = vdwg.mxu0
        %v2356 = vxor.u32 %v2115, 2147483648
        %v2357 = vxor.u32 %v2117, 2147483648
        %v2358 = vxor.u32 %v2192, 2147483648
        %v2359 = vxor.u32 %v2194, 2147483648
        %v2360 = vxor.u32 %v2269, 2147483648
        %v2361 = vxor.u32 %v2271, 2147483648
        %v2362 = vxor.u32 %v2346, 2147483648
        %v2363 = vxor.u32 %v2348, 2147483648
        %v2364 = vxor.u32 %v2121, 2147483648
        %v2365 = vxor.u32 %v2123, 2147483648
        %v2366 = vxor.u32 %v2198, 2147483648
        %v2367 = vxor.u32 %v2200, 2147483648
        %v2368 = vxor.u32 %v2275, 2147483648
        %v2369 = vxor.u32 %v2277, 2147483648
        %v2370 = vxor.u32 %v2352, 2147483648
        %v2371 = vxor.u32 %v2354, 2147483648
        %v2372 = vmul.f32 %v2356, 1.442695
        %v2373 = vpow.pop %v2372
        %v2374 = vmul.f32 %v2357, 1.442695
        %v2375 = vpow.pop %v2374
        %v2376 = vmul.f32 %v2358, 1.442695
        %v2377 = vpow.pop %v2376
        %v2378 = vmul.f32 %v2359, 1.442695
        %v2379 = vpow.pop %v2378
        %v2380 = vmul.f32 %v2360, 1.442695
        %v2381 = vpow.pop %v2380
        %v2382 = vmul.f32 %v2361, 1.442695
        %v2383 = vpow.pop %v2382
        %v2384 = vmul.f32 %v2362, 1.442695
        %v2385 = vpow.pop %v2384
        %v2386 = vmul.f32 %v2363, 1.442695
        %v2387 = vpow.pop %v2386
        %v2388 = vmul.f32 %v2364, 1.442695
        %v2389 = vpow.pop %v2388
        %v2390 = vmul.f32 %v2365, 1.442695
        %v2391 = vpow.pop %v2390
        %v2392 = vmul.f32 %v2366, 1.442695
        %v2393 = vpow.pop %v2392
        %v2394 = vmul.f32 %v2367, 1.442695
        %v2395 = vpow.pop %v2394
        %v2396 = vmul.f32 %v2368, 1.442695
        %v2397 = vpow.pop %v2396
        %v2398 = vmul.f32 %v2369, 1.442695
        %v2399 = vpow.pop %v2398
        %v2400 = vmul.f32 %v2370, 1.442695
        %v2401 = vpow.pop %v2400
        %v2402 = vmul.f32 %v2371, 1.442695
        %v2403 = vpow.pop %v2402
        %v2404 = vadd.f32 %v2373, 1.0
        %v2405 = vadd.f32 %v2375, 1.0
        %v2406 = vadd.f32 %v2377, 1.0
        %v2407 = vadd.f32 %v2379, 1.0
        %v2408 = vadd.f32 %v2381, 1.0
        %v2409 = vadd.f32 %v2383, 1.0
        %v2410 = vadd.f32 %v2385, 1.0
        %v2411 = vadd.f32 %v2387, 1.0
        %v2412 = vadd.f32 %v2389, 1.0
        %v2413 = vadd.f32 %v2391, 1.0
        %v2414 = vadd.f32 %v2393, 1.0
        %v2415 = vadd.f32 %v2395, 1.0
        %v2416 = vadd.f32 %v2397, 1.0
        %v2417 = vadd.f32 %v2399, 1.0
        %v2418 = vadd.f32 %v2401, 1.0
        %v2419 = vadd.f32 %v2403, 1.0
        %v2420 = vrcp.pop %v2404
        %v2421 = vmul.f32 1.0, %v2420
        %v2422 = vrcp.pop %v2405
        %v2423 = vmul.f32 1.0, %v2422
        %v2424 = vrcp.pop %v2406
        %v2425 = vmul.f32 1.0, %v2424
        %v2426 = vrcp.pop %v2407
        %v2427 = vmul.f32 1.0, %v2426
        %v2428 = vrcp.pop %v2408
        %v2429 = vmul.f32 1.0, %v2428
        %v2430 = vrcp.pop %v2409
        %v2431 = vmul.f32 1.0, %v2430
        %v2432 = vrcp.pop %v2410
        %v2433 = vmul.f32 1.0, %v2432
        %v2434 = vrcp.pop %v2411
        %v2435 = vmul.f32 1.0, %v2434
        %v2436 = vrcp.pop %v2412
        %v2437 = vmul.f32 1.0, %v2436
        %v2438 = vrcp.pop %v2413
        %v2439 = vmul.f32 1.0, %v2438
        %v2440 = vrcp.pop %v2414
        %v2441 = vmul.f32 1.0, %v2440
        %v2442 = vrcp.pop %v2415
        %v2443 = vmul.f32 1.0, %v2442
        %v2444 = vrcp.pop %v2416
        %v2445 = vmul.f32 1.0, %v2444
        %v2446 = vrcp.pop %v2417
        %v2447 = vmul.f32 1.0, %v2446
        %v2448 = vrcp.pop %v2418
        %v2449 = vmul.f32 1.0, %v2448
        %v2450 = vrcp.pop %v2419
        %v2451 = vmul.f32 1.0, %v2450
        %v2452 = vmul.f32 %v2115, %v2421
        %v2453 = vmul.f32 %v2117, %v2423
        %v2454 = vmul.f32 %v2192, %v2425
        %v2455 = vmul.f32 %v2194, %v2427
        %v2456 = vmul.f32 %v2269, %v2429
        %v2457 = vmul.f32 %v2271, %v2431
        %v2458 = vmul.f32 %v2346, %v2433
        %v2459 = vmul.f32 %v2348, %v2435
        %v2460 = vmul.f32 %v2121, %v2437
        %v2461 = vmul.f32 %v2123, %v2439
        %v2462 = vmul.f32 %v2198, %v2441
        %v2463 = vmul.f32 %v2200, %v2443
        %v2464 = vmul.f32 %v2275, %v2445
        %v2465 = vmul.f32 %v2277, %v2447
        %v2466 = vmul.f32 %v2352, %v2449
        %v2467 = vmul.f32 %v2354, %v2451
        %v2468 = vld [vmem:[%s6] sm:$0xff]
        %v2469 = vld [vmem:[%s6 + $0x8] sm:$0xff]
        %2470 = vset.pattern.permute.xlu0 7
        %2471 = vperm.xlu0 %2470, %v305
        %v2472 = vpop.permute.xlu0 %2471
        %2474 = vset.pattern.permute.xlu0 7
        %2475 = vperm.xlu0 %2474, %v306
        %v2476 = vpop.permute.xlu0 %2475
        %vm2478 = vcmask 64512
        %v2480 = vsel %vm2478, %v2468, 0
        %v2483 = vsel %vm2478, %v2469, 0
        %2485 = vmatprep.subr.mxu0 0.0
        %2486 = vmatpush1.msra.mxu0 0.0
        %2487 = vmatprep.subr.mxu0 0.0
        %2488 = vmatpush1.msra.mxu0 0.0
        %2489 = vmatprep.subr.mxu0 0.0
        %2490 = vmatpush1.msra.mxu0 0.0
        %2491 = vmatprep.subr.mxu0 0.0
        %2492 = vmatpush1.msra.mxu0 0.0
        %2493 = vmatprep.subr.mxu0 0.0
        %2494 = vmatpush1.msra.mxu0 0.0
        %2495 = vmatprep.subr.mxu0 0.0
        %2496 = vmatpush1.msra.mxu0 0.0
        %2497 = vmatprep.subr.mxu0 0.0
        %2498 = vmatpush1.msra.mxu0 0.0
        %2499 = vmatprep.subr.mxu0 0.0
        %2500 = vmatpush1.msra.mxu0 0.0
        %2501 = vmatprep.subr.mxu0 0.0
        %2502 = vmatpush1.msra.mxu0 0.0
        %2503 = vmatprep.subr.mxu0 0.0
        %2504 = vmatpush1.msra.mxu0 0.0
        %2505 = vmatprep.subr.mxu0 0.0
        %2506 = vmatpush1.msra.mxu0 0.0
        %2507 = vmatprep.subr.mxu0 0.0
        %2508 = vmatpush1.msra.mxu0 0.0
        %2509 = vmatprep.subr.mxu0 0.0
        %2510 = vmatpush1.msra.mxu0 0.0
        %2511 = vmatprep.subr.mxu0 0.0
        %2512 = vmatpush1.msra.mxu0 0.0
        %2513 = vmatprep.subr.mxu0 0.0
        %2514 = vmatpush1.msra.mxu0 0.0
        %2515 = vmatprep.subr.mxu0 %v679
        %2516 = vmatpush1.msra.mxu0 %v678
        %2517 = vmatprep.subr.mxu0 0.0
        %2518 = vmatpush2.msra.mxu0 0.0
        %2519 = vmatprep.subr.mxu0 0.0
        %2520 = vmatpush2.msra.mxu0 0.0
        %2521 = vmatprep.subr.mxu0 0.0
        %2522 = vmatpush2.msra.mxu0 0.0
        %2523 = vmatprep.subr.mxu0 0.0
        %2524 = vmatpush2.msra.mxu0 0.0
        %2525 = vmatprep.subr.mxu0 0.0
        %2526 = vmatpush2.msra.mxu0 0.0
        %2527 = vmatprep.subr.mxu0 0.0
        %2528 = vmatpush2.msra.mxu0 0.0
        %2529 = vmatprep.subr.mxu0 0.0
        %2530 = vmatpush2.msra.mxu0 0.0
        %2531 = vmatprep.subr.mxu0 0.0
        %2532 = vmatpush2.msra.mxu0 0.0
        %2533 = vmatprep.subr.mxu0 0.0
        %2534 = vmatpush2.msra.mxu0 0.0
        %2535 = vmatprep.subr.mxu0 0.0
        %2536 = vmatpush2.msra.mxu0 0.0
        %2537 = vmatprep.subr.mxu0 0.0
        %2538 = vmatpush2.msra.mxu0 0.0
        %2539 = vmatprep.subr.mxu0 0.0
        %2540 = vmatpush2.msra.mxu0 0.0
        %2541 = vmatprep.subr.mxu0 0.0
        %2542 = vmatpush2.msra.mxu0 0.0
        %2543 = vmatprep.subr.mxu0 0.0
        %2544 = vmatpush2.msra.mxu0 0.0
        %2545 = vmatprep.subr.mxu0 0.0
        %2546 = vmatpush2.msra.mxu0 0.0
        %2547 = vmatprep.subr.mxu0 0.0
        %2548 = vmatpush2.msra.mxu0 0.0
        %2549 = vmatprep.mubr.f32.mxu0 0.0
        %2550 = vmatmul.mubr.f32.gmra.mxu0 %v2480
        %v2551 = vpop.f32.mrf.mxu0
        %v2552 = vadd.f32 %v2472, %v2551
        %v2553 = vpop.f32.mrf.mxu0
        %v2554 = vadd.f32 %v2472, %v2553
        %2555 = vmatprep.mubr.f32.mxu0 0.0
        %2556 = vmatmul.mubr.f32.gmra.mxu0 %v2483
        %v2557 = vpop.f32.mrf.mxu0
        %v2558 = vadd.f32 %v2476, %v2557
        %v2559 = vpop.f32.mrf.mxu0
        %v2560 = vadd.f32 %v2476, %v2559
        %2561 = vdwg.mxu0
        %2562 = vmatprep.subr.mxu0 0.0
        %2563 = vmatpush1.msra.mxu0 0.0
        %2564 = vmatprep.subr.mxu0 0.0
        %2565 = vmatpush1.msra.mxu0 0.0
        %2566 = vmatprep.subr.mxu0 0.0
        %2567 = vmatpush1.msra.mxu0 0.0
        %2568 = vmatprep.subr.mxu0 0.0
        %2569 = vmatpush1.msra.mxu0 0.0
        %2570 = vmatprep.subr.mxu0 0.0
        %2571 = vmatpush1.msra.mxu0 0.0
        %2572 = vmatprep.subr.mxu0 0.0
        %2573 = vmatpush1.msra.mxu0 0.0
        %2574 = vmatprep.subr.mxu0 0.0
        %2575 = vmatpush1.msra.mxu0 0.0
        %2576 = vmatprep.subr.mxu0 0.0
        %2577 = vmatpush1.msra.mxu0 0.0
        %2578 = vmatprep.subr.mxu0 0.0
        %2579 = vmatpush1.msra.mxu0 0.0
        %2580 = vmatprep.subr.mxu0 0.0
        %2581 = vmatpush1.msra.mxu0 0.0
        %2582 = vmatprep.subr.mxu0 0.0
        %2583 = vmatpush1.msra.mxu0 0.0
        %2584 = vmatprep.subr.mxu0 0.0
        %2585 = vmatpush1.msra.mxu0 0.0
        %2586 = vmatprep.subr.mxu0 0.0
        %2587 = vmatpush1.msra.mxu0 0.0
        %2588 = vmatprep.subr.mxu0 0.0
        %2589 = vmatpush1.msra.mxu0 0.0
        %2590 = vmatprep.subr.mxu0 0.0
        %2591 = vmatpush1.msra.mxu0 0.0
        %2592 = vmatprep.subr.mxu0 %v681
        %2593 = vmatpush1.msra.mxu0 %v680
        %2594 = vmatprep.subr.mxu0 0.0
        %2595 = vmatpush2.msra.mxu0 0.0
        %2596 = vmatprep.subr.mxu0 0.0
        %2597 = vmatpush2.msra.mxu0 0.0
        %2598 = vmatprep.subr.mxu0 0.0
        %2599 = vmatpush2.msra.mxu0 0.0
        %2600 = vmatprep.subr.mxu0 0.0
        %2601 = vmatpush2.msra.mxu0 0.0
        %2602 = vmatprep.subr.mxu0 0.0
        %2603 = vmatpush2.msra.mxu0 0.0
        %2604 = vmatprep.subr.mxu0 0.0
        %2605 = vmatpush2.msra.mxu0 0.0
        %2606 = vmatprep.subr.mxu0 0.0
        %2607 = vmatpush2.msra.mxu0 0.0
        %2608 = vmatprep.subr.mxu0 0.0
        %2609 = vmatpush2.msra.mxu0 0.0
        %2610 = vmatprep.subr.mxu0 0.0
        %2611 = vmatpush2.msra.mxu0 0.0
        %2612 = vmatprep.subr.mxu0 0.0
        %2613 = vmatpush2.msra.mxu0 0.0
        %2614 = vmatprep.subr.mxu0 0.0
        %2615 = vmatpush2.msra.mxu0 0.0
        %2616 = vmatprep.subr.mxu0 0.0
        %2617 = vmatpush2.msra.mxu0 0.0
        %2618 = vmatprep.subr.mxu0 0.0
        %2619 = vmatpush2.msra.mxu0 0.0
        %2620 = vmatprep.subr.mxu0 0.0
        %2621 = vmatpush2.msra.mxu0 0.0
        %2622 = vmatprep.subr.mxu0 0.0
        %2623 = vmatpush2.msra.mxu0 0.0
        %2624 = vmatprep.subr.mxu0 0.0
        %2625 = vmatpush2.msra.mxu0 0.0
        %2626 = vmatprep.mubr.f32.mxu0 0.0
        %2627 = vmatmul.mubr.f32.gmra.mxu0 %v2480
        %v2628 = vpop.f32.mrf.mxu0
        %v2629 = vadd.f32 %v2472, %v2628
        %v2630 = vpop.f32.mrf.mxu0
        %v2631 = vadd.f32 %v2472, %v2630
        %2632 = vmatprep.mubr.f32.mxu0 0.0
        %2633 = vmatmul.mubr.f32.gmra.mxu0 %v2483
        %v2634 = vpop.f32.mrf.mxu0
        %v2635 = vadd.f32 %v2476, %v2634
        %v2636 = vpop.f32.mrf.mxu0
        %v2637 = vadd.f32 %v2476, %v2636
        %2638 = vdwg.mxu0
        %2639 = vmatprep.subr.mxu0 0.0
        %2640 = vmatpush1.msra.mxu0 0.0
        %2641 = vmatprep.subr.mxu0 0.0
        %2642 = vmatpush1.msra.mxu0 0.0
        %2643 = vmatprep.subr.mxu0 0.0
        %2644 = vmatpush1.msra.mxu0 0.0
        %2645 = vmatprep.subr.mxu0 0.0
        %2646 = vmatpush1.msra.mxu0 0.0
        %2647 = vmatprep.subr.mxu0 0.0
        %2648 = vmatpush1.msra.mxu0 0.0
        %2649 = vmatprep.subr.mxu0 0.0
        %2650 = vmatpush1.msra.mxu0 0.0
        %2651 = vmatprep.subr.mxu0 0.0
        %2652 = vmatpush1.msra.mxu0 0.0
        %2653 = vmatprep.subr.mxu0 0.0
        %2654 = vmatpush1.msra.mxu0 0.0
        %2655 = vmatprep.subr.mxu0 0.0
        %2656 = vmatpush1.msra.mxu0 0.0
        %2657 = vmatprep.subr.mxu0 0.0
        %2658 = vmatpush1.msra.mxu0 0.0
        %2659 = vmatprep.subr.mxu0 0.0
        %2660 = vmatpush1.msra.mxu0 0.0
        %2661 = vmatprep.subr.mxu0 0.0
        %2662 = vmatpush1.msra.mxu0 0.0
        %2663 = vmatprep.subr.mxu0 0.0
        %2664 = vmatpush1.msra.mxu0 0.0
        %2665 = vmatprep.subr.mxu0 0.0
        %2666 = vmatpush1.msra.mxu0 0.0
        %2667 = vmatprep.subr.mxu0 0.0
        %2668 = vmatpush1.msra.mxu0 0.0
        %2669 = vmatprep.subr.mxu0 %v683
        %2670 = vmatpush1.msra.mxu0 %v682
        %2671 = vmatprep.subr.mxu0 0.0
        %2672 = vmatpush2.msra.mxu0 0.0
        %2673 = vmatprep.subr.mxu0 0.0
        %2674 = vmatpush2.msra.mxu0 0.0
        %2675 = vmatprep.subr.mxu0 0.0
        %2676 = vmatpush2.msra.mxu0 0.0
        %2677 = vmatprep.subr.mxu0 0.0
        %2678 = vmatpush2.msra.mxu0 0.0
        %2679 = vmatprep.subr.mxu0 0.0
        %2680 = vmatpush2.msra.mxu0 0.0
        %2681 = vmatprep.subr.mxu0 0.0
        %2682 = vmatpush2.msra.mxu0 0.0
        %2683 = vmatprep.subr.mxu0 0.0
        %2684 = vmatpush2.msra.mxu0 0.0
        %2685 = vmatprep.subr.mxu0 0.0
        %2686 = vmatpush2.msra.mxu0 0.0
        %2687 = vmatprep.subr.mxu0 0.0
        %2688 = vmatpush2.msra.mxu0 0.0
        %2689 = vmatprep.subr.mxu0 0.0
        %2690 = vmatpush2.msra.mxu0 0.0
        %2691 = vmatprep.subr.mxu0 0.0
        %2692 = vmatpush2.msra.mxu0 0.0
        %2693 = vmatprep.subr.mxu0 0.0
        %2694 = vmatpush2.msra.mxu0 0.0
        %2695 = vmatprep.subr.mxu0 0.0
        %2696 = vmatpush2.msra.mxu0 0.0
        %2697 = vmatprep.subr.mxu0 0.0
        %2698 = vmatpush2.msra.mxu0 0.0
        %2699 = vmatprep.subr.mxu0 0.0
        %2700 = vmatpush2.msra.mxu0 0.0
        %2701 = vmatprep.subr.mxu0 0.0
        %2702 = vmatpush2.msra.mxu0 0.0
        %2703 = vmatprep.mubr.f32.mxu0 0.0
        %2704 = vmatmul.mubr.f32.gmra.mxu0 %v2480
        %v2705 = vpop.f32.mrf.mxu0
        %v2706 = vadd.f32 %v2472, %v2705
        %v2707 = vpop.f32.mrf.mxu0
        %v2708 = vadd.f32 %v2472, %v2707
        %2709 = vmatprep.mubr.f32.mxu0 0.0
        %2710 = vmatmul.mubr.f32.gmra.mxu0 %v2483
        %v2711 = vpop.f32.mrf.mxu0
        %v2712 = vadd.f32 %v2476, %v2711
        %v2713 = vpop.f32.mrf.mxu0
        %v2714 = vadd.f32 %v2476, %v2713
        %2715 = vdwg.mxu0
        %2716 = vmatprep.subr.mxu0 0.0
        %2717 = vmatpush1.msra.mxu0 0.0
        %2718 = vmatprep.subr.mxu0 0.0
        %2719 = vmatpush1.msra.mxu0 0.0
        %2720 = vmatprep.subr.mxu0 0.0
        %2721 = vmatpush1.msra.mxu0 0.0
        %2722 = vmatprep.subr.mxu0 0.0
        %2723 = vmatpush1.msra.mxu0 0.0
        %2724 = vmatprep.subr.mxu0 0.0
        %2725 = vmatpush1.msra.mxu0 0.0
        %2726 = vmatprep.subr.mxu0 0.0
        %2727 = vmatpush1.msra.mxu0 0.0
        %2728 = vmatprep.subr.mxu0 0.0
        %2729 = vmatpush1.msra.mxu0 0.0
        %2730 = vmatprep.subr.mxu0 0.0
        %2731 = vmatpush1.msra.mxu0 0.0
        %2732 = vmatprep.subr.mxu0 0.0
        %2733 = vmatpush1.msra.mxu0 0.0
        %2734 = vmatprep.subr.mxu0 0.0
        %2735 = vmatpush1.msra.mxu0 0.0
        %2736 = vmatprep.subr.mxu0 0.0
        %2737 = vmatpush1.msra.mxu0 0.0
        %2738 = vmatprep.subr.mxu0 0.0
        %2739 = vmatpush1.msra.mxu0 0.0
        %2740 = vmatprep.subr.mxu0 0.0
        %2741 = vmatpush1.msra.mxu0 0.0
        %2742 = vmatprep.subr.mxu0 0.0
        %2743 = vmatpush1.msra.mxu0 0.0
        %2744 = vmatprep.subr.mxu0 0.0
        %2745 = vmatpush1.msra.mxu0 0.0
        %2746 = vmatprep.subr.mxu0 %v685
        %2747 = vmatpush1.msra.mxu0 %v684
        %2748 = vmatprep.subr.mxu0 0.0
        %2749 = vmatpush2.msra.mxu0 0.0
        %2750 = vmatprep.subr.mxu0 0.0
        %2751 = vmatpush2.msra.mxu0 0.0
        %2752 = vmatprep.subr.mxu0 0.0
        %2753 = vmatpush2.msra.mxu0 0.0
        %2754 = vmatprep.subr.mxu0 0.0
        %2755 = vmatpush2.msra.mxu0 0.0
        %2756 = vmatprep.subr.mxu0 0.0
        %2757 = vmatpush2.msra.mxu0 0.0
        %2758 = vmatprep.subr.mxu0 0.0
        %2759 = vmatpush2.msra.mxu0 0.0
        %2760 = vmatprep.subr.mxu0 0.0
        %2761 = vmatpush2.msra.mxu0 0.0
        %2762 = vmatprep.subr.mxu0 0.0
        %2763 = vmatpush2.msra.mxu0 0.0
        %2764 = vmatprep.subr.mxu0 0.0
        %2765 = vmatpush2.msra.mxu0 0.0
        %2766 = vmatprep.subr.mxu0 0.0
        %2767 = vmatpush2.msra.mxu0 0.0
        %2768 = vmatprep.subr.mxu0 0.0
        %2769 = vmatpush2.msra.mxu0 0.0
        %2770 = vmatprep.subr.mxu0 0.0
        %2771 = vmatpush2.msra.mxu0 0.0
        %2772 = vmatprep.subr.mxu0 0.0
        %2773 = vmatpush2.msra.mxu0 0.0
        %2774 = vmatprep.subr.mxu0 0.0
        %2775 = vmatpush2.msra.mxu0 0.0
        %2776 = vmatprep.subr.mxu0 0.0
        %2777 = vmatpush2.msra.mxu0 0.0
        %2778 = vmatprep.subr.mxu0 0.0
        %2779 = vmatpush2.msra.mxu0 0.0
        %2780 = vmatprep.mubr.f32.mxu0 0.0
        %2781 = vmatmul.mubr.f32.gmra.mxu0 %v2480
        %v2782 = vpop.f32.mrf.mxu0
        %v2783 = vadd.f32 %v2472, %v2782
        %v2784 = vpop.f32.mrf.mxu0
        %v2785 = vadd.f32 %v2472, %v2784
        %2786 = vmatprep.mubr.f32.mxu0 0.0
        %2787 = vmatmul.mubr.f32.gmra.mxu0 %v2483
        %v2788 = vpop.f32.mrf.mxu0
        %v2789 = vadd.f32 %v2476, %v2788
        %v2790 = vpop.f32.mrf.mxu0
        %v2791 = vadd.f32 %v2476, %v2790
        %2792 = vdwg.mxu0
        %v2793 = vadd.f32 %v2452, %v2552
        %v2794 = vadd.f32 %v2453, %v2554
        %v2795 = vadd.f32 %v2454, %v2629
        %v2796 = vadd.f32 %v2455, %v2631
        %v2797 = vadd.f32 %v2456, %v2706
        %v2798 = vadd.f32 %v2457, %v2708
        %v2799 = vadd.f32 %v2458, %v2783
        %v2800 = vadd.f32 %v2459, %v2785
        %v2801 = vadd.f32 %v2460, %v2558
        %v2802 = vadd.f32 %v2461, %v2560
        %v2803 = vadd.f32 %v2462, %v2635
        %v2804 = vadd.f32 %v2463, %v2637
        %v2805 = vadd.f32 %v2464, %v2712
        %v2806 = vadd.f32 %v2465, %v2714
        %v2807 = vadd.f32 %v2466, %v2789
        %v2808 = vadd.f32 %v2467, %v2791
        %v2809 = vmul.f32 %v2793, 0.70710677
        %v2810 = vmul.f32 %v2794, 0.70710677
        %v2811 = vmul.f32 %v2795, 0.70710677
        %v2812 = vmul.f32 %v2796, 0.70710677
        %v2813 = vmul.f32 %v2797, 0.70710677
        %v2814 = vmul.f32 %v2798, 0.70710677
        %v2815 = vmul.f32 %v2799, 0.70710677
        %v2816 = vmul.f32 %v2800, 0.70710677
        %v2817 = vmul.f32 %v2801, 0.70710677
        %v2818 = vmul.f32 %v2802, 0.70710677
        %v2819 = vmul.f32 %v2803, 0.70710677
        %v2820 = vmul.f32 %v2804, 0.70710677
        %v2821 = vmul.f32 %v2805, 0.70710677
        %v2822 = vmul.f32 %v2806, 0.70710677
        %v2823 = vmul.f32 %v2807, 0.70710677
        %v2824 = vmul.f32 %v2808, 0.70710677
        %2825 = vst [vmem:[%s294] sm:$0xff] %v2809
        %2826 = vst [vmem:[%s294 + $0x8] sm:$0xff] %v2810
        %2827 = vst [vmem:[%s294 + $0x10] sm:$0xff] %v2811
        %2828 = vst [vmem:[%s294 + $0x18] sm:$0xff] %v2812
        %2829 = vst [vmem:[%s294 + $0x20] sm:$0xff] %v2813
        %2830 = vst [vmem:[%s294 + $0x28] sm:$0xff] %v2814
        %2831 = vst [vmem:[%s294 + $0x30] sm:$0xff] %v2815
        %2832 = vst [vmem:[%s294 + $0x38] sm:$0xff] %v2816
        %2833 = vst [vmem:[%s294 + $0x40] sm:$0xff] %v2817
        %2834 = vst [vmem:[%s294 + $0x48] sm:$0xff] %v2818
        %2835 = vst [vmem:[%s294 + $0x50] sm:$0xff] %v2819
        %2836 = vst [vmem:[%s294 + $0x58] sm:$0xff] %v2820
        %2837 = vst [vmem:[%s294 + $0x60] sm:$0xff] %v2821
        %2838 = vst [vmem:[%s294 + $0x68] sm:$0xff] %v2822
        %2839 = vst [vmem:[%s294 + $0x70] sm:$0xff] %v2823
        %2840 = vst [vmem:[%s294 + $0x78] sm:$0xff] %v2824
        %s2841 = sand.u32 %s184, 1
        %s2842 = scalar_lea.sflag [#allocation4], %s2841
        %s2843 = sand.u32 %s184, 1
        %s2844 = smul.addr %s2843, 128
        %s2845 = scalar_lea.vmem [#allocation5], %s2844
        // Predicated region
        $region53: #{tpu_custom_call.1} parent=47 // pred_check
          %p2846 = pneg %p194
        $region54: #{tpu_custom_call.1} parent=47 // pred_check_branch
          %2848 = sbr.rel (%p2846) target = $region56
        $region55: #{tpu_custom_call.1} parent=47 // pred_region
          %s2849 = smul.u32 8, %s24
          %s2851 = ssub.s32 2048, 2048
          %2852 = vsyncadd %s2842, %s2851
          %s2853 = smul.addr %s2849, 128
          %s2854 = scalar_lea.hbm %s7, %s2853
          %s2855 = sshll.u32 %s2845, 4
          %s2856 = int_to_ptr.vmem [resolvable:$true] %s2855
          %2861 = dma.vmem_to_hbm [thread:$0]  %s2856, 2048, %s2854, %s2842, 1024, 2048, 64
        $region56: #{tpu_custom_call.1} parent=47 // pred_fallthru
          _
      $region48: #{tpu_custom_call.1} parent=5 // pred_fallthru
        _
      %p2862 = scmp.le.s32.totalorder 2, %s19
      // Predicated region
      $region57: #{tpu_custom_call.1} parent=5 // pred_check
        %p2863 = pneg %p2862
      $region58: #{tpu_custom_call.1} parent=5 // pred_check_branch
        %2865 = sbr.rel (%p2863) target = $region60
      $region59: #{tpu_custom_call.1} parent=5 // pred_region
        %s2866 = ssub.s32 %s19, 2
        // Predicated region
        $region61: #{tpu_custom_call.1} parent=59 // pred_check
          %p2867 = pneg %p200
        $region62: #{tpu_custom_call.1} parent=59 // pred_check_branch
          %2869 = sbr.rel (%p2867) target = $region64
        $region63: #{tpu_custom_call.1} parent=59 // pred_region
          %s2870 = sand.u32 %s185, 1
          %s2871 = scalar_lea.sflag [#allocation4], %s2870
          %s2872 = sand.u32 %s185, 1
          %s2873 = smul.addr %s2872, 128
          %s2874 = scalar_lea.vmem [#allocation5], %s2873
          %2875 = dma.done %s2871, 2048
        $region64: #{tpu_custom_call.1} parent=59 // pred_fallthru
          _
      $region60: #{tpu_custom_call.1} parent=5 // pred_fallthru
        _
    $region6: #{tpu_custom_call.1} parent=1 // loop_footer
      %s23 = sadd.s32 1, %s19
    $region7: #{tpu_custom_call.1} parent=1 // loop_footer_branch
      %18 = sbr.rel target = $region3
    $region8: #{tpu_custom_call.1} parent=1 // loop_exit
      _
    %2876 = vsyncpa [#allocation3], 1
    %s2877 = scalar_lea.sflag [#allocation3], 1
    %2878 = vsyncpa %s2877, 1
    %2879 = vsyncpa [#allocation4], 1
    %s2880 = scalar_lea.sflag [#allocation4], 1
    %2881 = vsyncpa %s2880, 1

</llo_original>
